<compile_context>
chip_gen: v7x
topology: tpu7x:2x2x1
jax: 0.10.0
libtpu: 0.0.40
codegen_flags: <defaults>
</compile_context>

<pallas_src>
import jax
import jax.numpy as jnp
from jax import lax
from jax.experimental import pallas as pl
from jax.experimental.pallas import tpu as pltpu

# ---- Config values from exp034.Config ----
C_OUT = 128                  # hidden_size_3d
KD, KH, KW = 7, 5, 5         # kernel_size_3d
SD, SH, SW = 2, 1, 1         # stride_3d
PD, PH, PW = 0, 1, 1         # padding of nn.LazyConv3d(..., padding=(0,1,1))
BN_EPS = 1e-5


def _fused_gemm_bn_relu_kernel(p_ref, w_ref, scale_ref, shift_ref, o_ref):
    # p_ref     : (1, K, col_tile)    bf16  im2col patch columns
    # w_ref     : (Cout, K)           bf16  flattened conv weight
    # scale_ref : (Cout, 1)           f32   folded BatchNorm scale
    # shift_ref : (Cout, 1)           f32   folded BatchNorm shift
    # o_ref     : (1, Cout, col_tile) f32
    acc = jnp.dot(w_ref[...], p_ref[0],
                  preferred_element_type=jnp.float32)            # (Cout, col_tile)
    y = jnp.maximum(acc * scale_ref[...] + shift_ref[...], 0.0)  # BN(eval) + ReLU
    o_ref[0] = y.astype(o_ref.dtype)


def _pick_col_tile(total_cols, k_dim, vmem_budget_bytes=6 * 1024 * 1024):
    """Largest 128-multiple divisor of total_cols within a per-step VMEM budget."""
    best = None
    for t in range(128, total_cols + 1, 128):
        if total_cols % t:
            continue
        # double-buffered bf16 patch tile + double-buffered f32 output tile
        step_bytes = 2 * (k_dim * t * 2) + 2 * (C_OUT * t * 4)
        if step_bytes <= vmem_budget_bytes:
            best = t
    if best is None:
        best = total_cols        # full extent is always a legal block shape
    return best


def simple_conv3d(x_ncdhw, w_oidhw, gamma, beta, run_mean, run_var):
    """SimpleConv3d.forward (eval mode). Input NCDHW, output NCDHW."""
    n, c_in, d, h, w = x_ncdhw.shape
    d_out = (d + 2 * PD - KD) // SD + 1
    h_out = (h + 2 * PH - KH) // SH + 1
    w_out = (w + 2 * PW - KW) // SW + 1
    hw = h_out * w_out
    total_cols = d_out * hw
    k_dim = c_in * KD * KH * KW

    # ------------- wrapper glue (plain JAX): im2col + BN folding ---------------
    xb = x_ncdhw.astype(jnp.bfloat16)                       # bf16 MXU operands
    xp = jnp.pad(xb, ((0, 0), (0, 0), (0, 0), (PH, PH), (PW, PW)))
    # spatial taps -> (N, Cin, D, KH*KW, Hout, Wout)
    cols = [xp[:, :, :, kh:kh + h_out, kw:kw + w_out]
            for kh in range(KH) for kw in range(KW)]
    sp = jnp.stack(cols, axis=3)
    # depth taps of the strided depth convolution: (Dout, KD) input-depth indices
    d_idx = (jnp.arange(d_out) * SD)[:, None] + jnp.arange(KD)[None, :]
    g = sp[:, :, d_idx]                  # (N, Cin, Dout, KD, KH*KW, Hout, Wout)
    # K ordered (cin, kd, kh, kw) to match w.reshape(Cout, -1);
    # columns ordered (do, h, w) to match the NCDHW output flatten.
    patches = jnp.transpose(g, (0, 1, 3, 4, 2, 5, 6)).reshape(n, k_dim, total_cols)

    w_t = w_oidhw.reshape(C_OUT, k_dim).astype(jnp.bfloat16)

    inv_std = 1.0 / jnp.sqrt(run_var.astype(jnp.float32) + BN_EPS)
    scale = (gamma * inv_std).reshape(C_OUT, 1).astype(jnp.float32)
    shift = (beta - run_mean * gamma * inv_std).reshape(C_OUT, 1).astype(jnp.float32)

    col_tile = _pick_col_tile(total_cols, k_dim)
    n_col_tiles = total_cols // col_tile

    out = pl.pallas_call(
        _fused_gemm_bn_relu_kernel,
        out_shape=jax.ShapeDtypeStruct((n, C_OUT, total_cols), jnp.float32),
        grid_spec=pltpu.PrefetchScalarGridSpec(
            num_scalar_prefetch=0,
            grid=(n, n_col_tiles),
            in_specs=[
                pl.BlockSpec((1, k_dim, col_tile), lambda i, j: (i, 0, j)),
                pl.BlockSpec((C_OUT, k_dim), lambda i, j: (0, 0)),
                pl.BlockSpec((C_OUT, 1), lambda i, j: (0, 0)),
                pl.BlockSpec((C_OUT, 1), lambda i, j: (0, 0)),
            ],
            out_specs=pl.BlockSpec((1, C_OUT, col_tile), lambda i, j: (i, 0, j)),
        ),
        compiler_params=pltpu.CompilerParams(
            dimension_semantics=("parallel", "parallel"),
            vmem_limit_bytes=32 * 1024 * 1024,
        ),
    )(patches, w_t, scale, shift)

    # TODO(synk): train-mode Dropout(p=0.2) and BatchNorm batch statistics are not
    # implemented; this reproduces eval-mode forward semantics.
    return out.reshape(n, C_OUT, d_out, h_out, w_out)        # NCDHW, no transpose


def _reference(x, w, gamma, beta, run_mean, run_var):
    conv = lax.conv_general_dilated(
        x, w,
        window_strides=(SD, SH, SW),
        padding=((PD, PD), (PH, PH), (PW, PW)),
        dimension_numbers=("NCDHW", "OIDHW", "NCDHW"),
        precision=lax.Precision.HIGHEST,
    )
    inv_std = 1.0 / jnp.sqrt(run_var + BN_EPS)
    scale = (gamma * inv_std).reshape(1, -1, 1, 1, 1)
    shift = (beta - run_mean * gamma * inv_std).reshape(1, -1, 1, 1, 1)
    return jnp.maximum(conv * scale + shift, 0.0)


if __name__ == "__main__":
    # Small deterministic example: batch=2, in_channels=3 (RGB frames),
    # frames D=15, spatial 18x18  ->  output (2, 128, 5, 16, 16).
    N, C_IN, D, H, W = 2, 3, 15, 18, 18

    key = jax.random.PRNGKey(0)
    k1, k2, k3, k4, k5, k6 = jax.random.split(key, 6)
    x = jax.random.normal(k1, (N, C_IN, D, H, W), jnp.float32)
    w = jax.random.normal(k2, (C_OUT, C_IN, KD, KH, KW), jnp.float32) * 0.05
    gamma = jax.random.uniform(k3, (C_OUT,), jnp.float32, 0.5, 1.5)
    beta = jax.random.normal(k4, (C_OUT,), jnp.float32) * 0.1
    run_mean = jax.random.normal(k5, (C_OUT,), jnp.float32) * 0.1
    run_var = jax.random.uniform(k6, (C_OUT,), jnp.float32, 0.5, 1.5)

    y = simple_conv3d(x, w, gamma, beta, run_mean, run_var)
    y = jax.block_until_ready(y)

    y_ref = _reference(x, w, gamma, beta, run_mean, run_var)
    assert y.shape == y_ref.shape == (N, C_OUT, (D - KD) // SD + 1, H - 2, W - 2), y.shape
    # bf16 MXU operands with f32 accumulation -> slightly looser tolerance than f32.
    assert jnp.allclose(y, y_ref, atol=3e-2, rtol=2e-2), float(jnp.max(jnp.abs(y - y_ref)))

    print("KERNEL_OK")
</pallas_src>

<mosaic_0001>
module attributes {stable_mosaic.version = 11 : i64} {
  func.func @_fused_gemm_bn_relu_kernel(%arg0: i32, %arg1: i32, %arg2: memref<1x525x1280xbf16, #tpu.memory_space<vmem>>, %arg3: memref<128x525xbf16, #tpu.memory_space<vmem>>, %arg4: memref<128x1xf32, #tpu.memory_space<vmem>>, %arg5: memref<128x1xf32, #tpu.memory_space<vmem>>, %arg6: memref<1x128x1280xf32, #tpu.memory_space<vmem>>) attributes {dimension_semantics = [#tpu.dimension_semantics<parallel>, #tpu.dimension_semantics<parallel>], iteration_bounds = array<i64: 2, 1>, scalar_prefetch = 0 : i64, scratch_operands = 0 : i64, tpu.core_type = #tpu.core_type<tc>, window_params = [{transform_indices = @transform_0, window_bounds = array<i64: 1, 525, 1280>}, {pipeline_mode = #tpu.pipeline_mode<synchronous>, transform_indices = @transform_1, window_bounds = array<i64: 128, 525>}, {pipeline_mode = #tpu.pipeline_mode<synchronous>, transform_indices = @transform_2, window_bounds = array<i64: 128, 1>}, {pipeline_mode = #tpu.pipeline_mode<synchronous>, transform_indices = @transform_3, window_bounds = array<i64: 128, 1>}, {transform_indices = @transform_4, window_bounds = array<i64: 1, 128, 1280>}]} {
    %c0 = arith.constant 0 : index
    %c0_0 = arith.constant 0 : index
    %0 = vector.load %arg3[%c0, %c0_0] : memref<128x525xbf16, #tpu.memory_space<vmem>>, vector<128x525xbf16>
    %c0_1 = arith.constant 0 : index
    %c0_2 = arith.constant 0 : index
    %c0_3 = arith.constant 0 : index
    %1 = vector.load %arg2[%c0_1, %c0_2, %c0_3] : memref<1x525x1280xbf16, #tpu.memory_space<vmem>>, vector<1x525x1280xbf16>
    %2 = vector.shape_cast %1 : vector<1x525x1280xbf16> to vector<525x1280xbf16>
    %cst = arith.constant dense<0.000000e+00> : vector<128x1280xf32>
    %3 = tpu.matmul %0, %2, %cst {dimension_numbers = #tpu.dot_dimension_numbers<[1], [0], [0], [1], [0, 0, 1, 1], [], []>} : vector<128x525xbf16>, vector<525x1280xbf16>, vector<128x1280xf32> -> vector<128x1280xf32>
    %c0_4 = arith.constant 0 : index
    %c0_5 = arith.constant 0 : index
    %4 = vector.load %arg4[%c0_4, %c0_5] : memref<128x1xf32, #tpu.memory_space<vmem>>, vector<128x1xf32>
    %5 = vector.broadcast %4 : vector<128x1xf32> to vector<128x1280xf32>
    %6 = arith.mulf %3, %5 : vector<128x1280xf32>
    %c0_6 = arith.constant 0 : index
    %c0_7 = arith.constant 0 : index
    %7 = vector.load %arg5[%c0_6, %c0_7] : memref<128x1xf32, #tpu.memory_space<vmem>>, vector<128x1xf32>
    %8 = vector.broadcast %7 : vector<128x1xf32> to vector<128x1280xf32>
    %9 = arith.addf %6, %8 : vector<128x1280xf32>
    %cst_8 = arith.constant 0.000000e+00 : f32
    %10 = vector.broadcast %cst_8 : f32 to vector<128x1280xf32>
    %11 = arith.maximumf %9, %10 : vector<128x1280xf32>
    %c0_9 = arith.constant 0 : index
    %c0_10 = arith.constant 0 : index
    %c0_11 = arith.constant 0 : index
    %12 = vector.load %arg6[%c0_9, %c0_10, %c0_11] : memref<1x128x1280xf32, #tpu.memory_space<vmem>>, vector<1x128x1280xf32>
    %13 = vector.shape_cast %12 : vector<1x128x1280xf32> to vector<128x1280xf32>
    %14 = vector.shape_cast %11 : vector<128x1280xf32> to vector<1x128x1280xf32>
    tpu.vector_store %arg6[%c0_9, %c0_10, %c0_11], %14 {strides = array<i32>} : memref<1x128x1280xf32, #tpu.memory_space<vmem>>, vector<1x128x1280xf32>,
    return
  }
  func.func @transform_0(%arg0: i32, %arg1: i32) -> (i32, i32, i32) {
    %c0_i32 = arith.constant 0 : i32
    %c0_i32_0 = arith.constant 0 : i32
    return %arg0, %c0_i32, %arg1 : i32, i32, i32
  }
  func.func @transform_1(%arg0: i32, %arg1: i32) -> (i32, i32) {
    %c0_i32 = arith.constant 0 : i32
    %c0_i32_0 = arith.constant 0 : i32
    %c0_i32_1 = arith.constant 0 : i32
    return %c0_i32, %c0_i32_0 : i32, i32
  }
  func.func @transform_2(%arg0: i32, %arg1: i32) -> (i32, i32) {
    %c0_i32 = arith.constant 0 : i32
    %c0_i32_0 = arith.constant 0 : i32
    %c0_i32_1 = arith.constant 0 : i32
    return %c0_i32, %c0_i32_0 : i32, i32
  }
  func.func @transform_3(%arg0: i32, %arg1: i32) -> (i32, i32) {
    %c0_i32 = arith.constant 0 : i32
    %c0_i32_0 = arith.constant 0 : i32
    %c0_i32_1 = arith.constant 0 : i32
    return %c0_i32, %c0_i32_0 : i32, i32
  }
  func.func @transform_4(%arg0: i32, %arg1: i32) -> (i32, i32, i32) {
    %c0_i32 = arith.constant 0 : i32
    %c0_i32_0 = arith.constant 0 : i32
    return %arg0, %c0_i32, %arg1 : i32, i32, i32
  }
}

</mosaic_0001>

<llo_original>
// kernel: tpu_custom_call.1
$region0: #{tpu_custom_call.1}
  #allocation0 [shape = 'u32[]', space=smem, size = 0x4, offset = 0x4, fixed_abs, tag = 'smem constant byte address 0x4 - core index']
  #allocation1 [shape = 'u32[144,128]{1,0:T(1,128)}', space=vmem, size = 0x12000, scoped, tag = 'internal scratch']
  %s0 = inlined_call_operand.vmem [shape: bf16[2,525,1280], index: 0, kind: input, shape index: {}]
  %s1 = inlined_call_operand.vmem [shape: bf16[128,525], index: 1, kind: input, shape index: {}]
  %s2 = inlined_call_operand.vmem [shape: f32[128,1], index: 2, kind: input, shape index: {}]
  %s3 = inlined_call_operand.vmem [shape: f32[128,1], index: 3, kind: input, shape index: {}]
  %s4 = inlined_call_operand.hbm [shape: f32[2,128,1280], index: 4, kind: output, shape index: {}]
  %s5 = sld [smem:[#allocation0]]
  $region49: #{tpu_custom_call.1} parent=0
    _
  %s7 = ssub.s32 1, %s5
  %s8 = scalar_select 0, %s7, %s5
  $region1: #{tpu_custom_call.1} parent=0
    #allocation2 [shape = 'u8[1310720]{0}', space=vmem, size = 0x140000, scoped, tag = 'output window, operand 0']
    #allocation3 [shape = 's32[2]{0}', space=sflag, size = 0x8, scoped, tag = 'scoped memory for tpu_custom_call.1']
    %9 = vsyncpa [#allocation3], 0
    %s10 = scalar_lea.sflag [#allocation3], 1
    %11 = vsyncpa %s10, 0
    loop: start=0, step=1, limit=4
    $region2: #{tpu_custom_call.1} parent=1 // loop_pre_header
      _
    $region3: #{tpu_custom_call.1} parent=1 // loop_header
      %s13 = sphi 0, %s17
      %p14 = scmp.ge.s32.totalorder %s13, 4
      %s20 = sphi 0, %s32
      %s21 = sphi 0, %s28
      %s22 = sphi 0, %s20
      %s23 = sphi 0, %s21
      %s24 = sphi 0, %s22
      %s25 = sphi 0, %s23
      %s37 = sphi 0, %s39
      %s40 = sphi 0, %s37
      %s41 = sphi 0, %s40
      %s57 = sphi 0, %s41
      %s61 = sphi 0, %s61
      %s63 = sphi 0, %s61
      %s64 = sphi 0, %s63
      %s78 = sphi 0, %s64
      %s82 = sphi 0, %s82
      %s84 = sphi 0, %s82
      %s85 = sphi 0, %s84
      %s99 = sphi 0, %s85
      %s103 = sphi 0, %s103
      %s105 = sphi 0, %s103
      %s106 = sphi 0, %s105
      %s120 = sphi 0, %s106
      %s128 = sphi 0, %s130
      %s131 = sphi 0, %s128
      %s132 = sphi 0, %s131
      %s148 = sphi 0, %s132
    $region4: #{tpu_custom_call.1} parent=1 // loop_header_branch
      %16 = sbr.rel (%p14) target = $region8
    $region5: #{tpu_custom_call.1} parent=1 // loop_body
      %s18 = ssub.s32 %s13, 1
      %s19 = ssub.s32 %s13, 2
      %s26 = sadd.s32 1, %s21
      %p27 = scmp.ge.s32.totalorder %s26, 1
      %s28 = scalar_select %p27, 0, %s26
      %s29 = sadd.s32 1, %s20
      %s30 = scalar_select %p27, %s29, %s20
      %p31 = scmp.ge.s32.totalorder %s30, 2
      %s32 = scalar_select %p31, 0, %s30
      %s33 = ssub.s32 %s20, %s32
      %s34 = ssub.s32 %s21, %s28
      %s35 = sor.u32 %s33, %s34
      %p36 = scmp.eq.s32.totalorder %s35, 0
      %s38 = sadd.s32 %s37, 1
      %s39 = scalar_select %p36, %s37, %s38
      %p42 = pneg %p36
      %p43 = scmp.eq.s32.totalorder %s13, 1
      %p44 = por %p42, %p43
      %p45 = scmp.ne.s32.totalorder %s37, %s40
      %p46 = scmp.eq.s32.totalorder %s13, 0
      %p47 = por %p45, %p46
      %p48 = scmp.ne.s32.totalorder %s37, %s40
      %p49 = scmp.eq.s32.totalorder %s18, 1
      %p50 = por %p48, %p49
      %p51 = scmp.ne.s32.totalorder %s40, %s41
      %p52 = scmp.eq.s32.totalorder %s18, 0
      %p53 = por %p51, %p52
      %p54 = scmp.ne.s32.totalorder %s40, %s41
      %p55 = scmp.eq.s32.totalorder %s19, 1
      %p56 = por %p54, %p55
      %p58 = scmp.ne.s32.totalorder %s41, %s57
      %p59 = scmp.eq.s32.totalorder %s19, 0
      %p60 = por %p58, %p59
      %s62 = sadd.s32 %s61, 1
      %p65 = scmp.eq.s32.totalorder %s13, 1
      %p66 = scmp.ne.s32.totalorder %s61, %s63
      %p67 = scmp.eq.s32.totalorder %s13, 0
      %p68 = por %p66, %p67
      %p69 = scmp.ne.s32.totalorder %s61, %s63
      %p70 = scmp.eq.s32.totalorder %s18, 1
      %p71 = por %p69, %p70
      %p72 = scmp.ne.s32.totalorder %s63, %s64
      %p73 = scmp.eq.s32.totalorder %s18, 0
      %p74 = por %p72, %p73
      %p75 = scmp.ne.s32.totalorder %s63, %s64
      %p76 = scmp.eq.s32.totalorder %s19, 1
      %p77 = por %p75, %p76
      %p79 = scmp.ne.s32.totalorder %s64, %s78
      %p80 = scmp.eq.s32.totalorder %s19, 0
      %p81 = por %p79, %p80
      %s83 = sadd.s32 %s82, 1
      %p86 = scmp.eq.s32.totalorder %s13, 1
      %p87 = scmp.ne.s32.totalorder %s82, %s84
      %p88 = scmp.eq.s32.totalorder %s13, 0
      %p89 = por %p87, %p88
      %p90 = scmp.ne.s32.totalorder %s82, %s84
      %p91 = scmp.eq.s32.totalorder %s18, 1
      %p92 = por %p90, %p91
      %p93 = scmp.ne.s32.totalorder %s84, %s85
      %p94 = scmp.eq.s32.totalorder %s18, 0
      %p95 = por %p93, %p94
      %p96 = scmp.ne.s32.totalorder %s84, %s85
      %p97 = scmp.eq.s32.totalorder %s19, 1
      %p98 = por %p96, %p97
      %p100 = scmp.ne.s32.totalorder %s85, %s99
      %p101 = scmp.eq.s32.totalorder %s19, 0
      %p102 = por %p100, %p101
      %s104 = sadd.s32 %s103, 1
      %p107 = scmp.eq.s32.totalorder %s13, 1
      %p108 = scmp.ne.s32.totalorder %s103, %s105
      %p109 = scmp.eq.s32.totalorder %s13, 0
      %p110 = por %p108, %p109
      %p111 = scmp.ne.s32.totalorder %s103, %s105
      %p112 = scmp.eq.s32.totalorder %s18, 1
      %p113 = por %p111, %p112
      %p114 = scmp.ne.s32.totalorder %s105, %s106
      %p115 = scmp.eq.s32.totalorder %s18, 0
      %p116 = por %p114, %p115
      %p117 = scmp.ne.s32.totalorder %s105, %s106
      %p118 = scmp.eq.s32.totalorder %s19, 1
      %p119 = por %p117, %p118
      %p121 = scmp.ne.s32.totalorder %s106, %s120
      %p122 = scmp.eq.s32.totalorder %s19, 0
      %p123 = por %p121, %p122
      %s124 = ssub.s32 %s20, %s32
      %s125 = ssub.s32 %s21, %s28
      %s126 = sor.u32 %s124, %s125
      %p127 = scmp.eq.s32.totalorder %s126, 0
      %s129 = sadd.s32 %s128, 1
      %s130 = scalar_select %p127, %s128, %s129
      %p133 = pneg %p127
      %p134 = scmp.eq.s32.totalorder %s13, 1
      %p135 = por %p133, %p134
      %p136 = scmp.ne.s32.totalorder %s128, %s131
      %p137 = scmp.eq.s32.totalorder %s13, 0
      %p138 = por %p136, %p137
      %p139 = scmp.ne.s32.totalorder %s128, %s131
      %p140 = scmp.eq.s32.totalorder %s18, 1
      %p141 = por %p139, %p140
      %p142 = scmp.ne.s32.totalorder %s131, %s132
      %p143 = scmp.eq.s32.totalorder %s18, 0
      %p144 = por %p142, %p143
      %p145 = scmp.ne.s32.totalorder %s131, %s132
      %p146 = scmp.eq.s32.totalorder %s19, 1
      %p147 = por %p145, %p146
      %p149 = scmp.ne.s32.totalorder %s132, %s148
      %p150 = scmp.eq.s32.totalorder %s19, 0
      %p151 = por %p149, %p150
      %p152 = scmp.le.s32.totalorder 1, %s13
      %p153 = scmp.lt.s32.totalorder %s13, 3
      %p154 = pnand %p152, %p153
      %p155 = pneg %p154
      // Predicated region
      $region9: #{tpu_custom_call.1} parent=5 // pred_check
        _
      $region10: #{tpu_custom_call.1} parent=5 // pred_check_branch
        %157 = sbr.rel (%p154) target = $region12
      $region11: #{tpu_custom_call.1} parent=5 // pred_region
        %s158 = ssub.s32 %s13, 1
        // Predicated region
        $region13: #{tpu_custom_call.1} parent=11 // pred_check
          %p159 = pneg %p74
        $region14: #{tpu_custom_call.1} parent=11 // pred_check_branch
          %161 = sbr.rel (%p159) target = $region16
        $region15: #{tpu_custom_call.1} parent=11 // pred_region
          _
        $region16: #{tpu_custom_call.1} parent=11 // pred_fallthru
          _
        // Predicated region
        $region17: #{tpu_custom_call.1} parent=11 // pred_check
          %p162 = pneg %p95
        $region18: #{tpu_custom_call.1} parent=11 // pred_check_branch
          %164 = sbr.rel (%p162) target = $region20
        $region19: #{tpu_custom_call.1} parent=11 // pred_region
          _
        $region20: #{tpu_custom_call.1} parent=11 // pred_fallthru
          _
        // Predicated region
        $region21: #{tpu_custom_call.1} parent=11 // pred_check
          %p165 = pneg %p116
        $region22: #{tpu_custom_call.1} parent=11 // pred_check_branch
          %167 = sbr.rel (%p165) target = $region24
        $region23: #{tpu_custom_call.1} parent=11 // pred_region
          _
        $region24: #{tpu_custom_call.1} parent=11 // pred_fallthru
          _
      $region12: #{tpu_custom_call.1} parent=5 // pred_fallthru
        _
      %p168 = scmp.lt.s32.totalorder %s13, 2
      // Predicated region
      $region25: #{tpu_custom_call.1} parent=5 // pred_check
        %p169 = pneg %p168
      $region26: #{tpu_custom_call.1} parent=5 // pred_check_branch
        %171 = sbr.rel (%p169) target = $region28
      $region27: #{tpu_custom_call.1} parent=5 // pred_region
        // Predicated region
        $region29: #{tpu_custom_call.1} parent=27 // pred_check
          %p172 = pneg %p47
        $region30: #{tpu_custom_call.1} parent=27 // pred_check_branch
          %174 = sbr.rel (%p172) target = $region32
        $region31: #{tpu_custom_call.1} parent=27 // pred_region
          %s175 = smul.u32 10, %s21
          %p176 = scmp.lt.s32.totalorder %s20, 1
          %s177 = scalar_select %p176, %s20, 1
          %p178 = scmp.lt.s32.totalorder %s175, 9
          %s179 = scalar_select %p178, %s175, 9
          %s180 = smul.addr %s177, 660
          %s181 = sadd.s32 %s179, %s180
          %s182 = smul.addr %s181, 4
          %s183 = scalar_lea.vmem %s0, %s182
          %s184 = smul.u32 10, %s21
        $region32: #{tpu_custom_call.1} parent=27 // pred_fallthru
          _
      $region28: #{tpu_custom_call.1} parent=5 // pred_fallthru
        _
      %p185 = scmp.le.s32.totalorder 1, %s13
      %p186 = scmp.lt.s32.totalorder %s13, 3
      %p187 = pnand %p185, %p186
      %p188 = pneg %p187
      // Predicated region
      $region33: #{tpu_custom_call.1} parent=5 // pred_check
        _
      $region34: #{tpu_custom_call.1} parent=5 // pred_check_branch
        %190 = sbr.rel (%p187) target = $region36
      $region35: #{tpu_custom_call.1} parent=5 // pred_region
        %s191 = ssub.s32 %s13, 1
        %s192 = smul.u32 10, %s23
        %p193 = scmp.lt.s32.totalorder %s22, 1
        %s194 = scalar_select %p193, %s22, 1
        %p195 = scmp.lt.s32.totalorder %s192, 9
        %s196 = scalar_select %p195, %s192, 9
        %s197 = smul.addr %s194, 660
        %s198 = sadd.s32 %s196, %s197
        %s199 = smul.addr %s198, 4
        %s200 = scalar_lea.vmem %s0, %s199
        %p201 = pneg %p53
        %p202 = pneg %p50
        %p203 = pneg %p74
        %p204 = pneg %p71
        %p205 = pneg %p95
        %p206 = pneg %p92
        %p207 = pneg %p116
        %p208 = pneg %p113
        %p209 = pneg %p144
        %p210 = pneg %p141
        %s211 = sand.u32 %s131, 1
        %s212 = scalar_lea.sflag [#allocation3], %s211
        %s213 = sand.u32 %s131, 1
        %s214 = smul.addr %s213, 1280
        %s215 = scalar_lea.vmem [#allocation2], %s214
        %s216 = smul.u32 10, %s23
        %p217 = scmp.lt.s32.totalorder %s22, 1
        %s218 = scalar_select %p217, %s22, 1
        %p219 = scmp.lt.s32.totalorder %s216, 9
        %s220 = scalar_select %p219, %s216, 9
        %s221 = smul.addr %s218, 660
        %s222 = sadd.s32 %s220, %s221
        %s223 = smul.addr %s222, 4
        %s224 = scalar_lea.vmem %s0, %s223
        %s225 = smul.u32 10, %s23
        %s226 = smul.u32 10, %s23
        %v228 = vld [vmem:[%s1] sm:$0xff]
        %v229 = vld [vmem:[%s1 + $0x8] sm:$0xff]
        %v230 = vld [vmem:[%s1 + $0x10] sm:$0xf]
        %v231 = vld [vmem:[%s1 + $0x14] sm:$0xff]
        %v232 = vld [vmem:[%s1 + $0x1c] sm:$0xff]
        %v233 = vld [vmem:[%s1 + $0x24] sm:$0xf]
        %v234 = vld [vmem:[%s1 + $0x28] sm:$0xff]
        %v235 = vld [vmem:[%s1 + $0x30] sm:$0xff]
        %v236 = vld [vmem:[%s1 + $0x38] sm:$0xf]
        %v237 = vld [vmem:[%s1 + $0x3c] sm:$0xff]
        %v238 = vld [vmem:[%s1 + $0x44] sm:$0xff]
        %v239 = vld [vmem:[%s1 + $0x4c] sm:$0xf]
        %v240 = vld [vmem:[%s1 + $0x50] sm:$0xff]
        %v241 = vld [vmem:[%s1 + $0x58] sm:$0xff]
        %v242 = vld [vmem:[%s1 + $0x60] sm:$0xf]
        %v243 = vld [vmem:[%s1 + $0x64] sm:$0xff]
        %v244 = vld [vmem:[%s1 + $0x6c] sm:$0xff]
        %v245 = vld [vmem:[%s1 + $0x74] sm:$0xf]
        %v246 = vld [vmem:[%s1 + $0x78] sm:$0xff]
        %v247 = vld [vmem:[%s1 + $0x80] sm:$0xff]
        %v248 = vld [vmem:[%s1 + $0x88] sm:$0xf]
        %v249 = vld [vmem:[%s1 + $0x8c] sm:$0xff]
        %v250 = vld [vmem:[%s1 + $0x94] sm:$0xff]
        %v251 = vld [vmem:[%s1 + $0x9c] sm:$0xf]
        %v252 = vld [vmem:[%s1 + $0xa0] sm:$0xff]
        %v253 = vld [vmem:[%s1 + $0xa8] sm:$0xff]
        %v254 = vld [vmem:[%s1 + $0xb0] sm:$0xf]
        %v255 = vld [vmem:[%s1 + $0xb4] sm:$0xff]
        %v256 = vld [vmem:[%s1 + $0xbc] sm:$0xff]
        %v257 = vld [vmem:[%s1 + $0xc4] sm:$0xf]
        %v258 = vld [vmem:[%s1 + $0xc8] sm:$0xff]
        %v259 = vld [vmem:[%s1 + $0xd0] sm:$0xff]
        %v260 = vld [vmem:[%s1 + $0xd8] sm:$0xf]
        %v261 = vld [vmem:[%s1 + $0xdc] sm:$0xff]
        %v262 = vld [vmem:[%s1 + $0xe4] sm:$0xff]
        %v263 = vld [vmem:[%s1 + $0xec] sm:$0xf]
        %v264 = vld [vmem:[%s1 + $0xf0] sm:$0xff]
        %v265 = vld [vmem:[%s1 + $0xf8] sm:$0xff]
        %v266 = vld [vmem:[%s1 + $0x100] sm:$0xf]
        %v267 = vld [vmem:[%s1 + $0x104] sm:$0xff]
        %v268 = vld [vmem:[%s1 + $0x10c] sm:$0xff]
        %v269 = vld [vmem:[%s1 + $0x114] sm:$0xf]
        %v270 = vld [vmem:[%s1 + $0x118] sm:$0xff]
        %v271 = vld [vmem:[%s1 + $0x120] sm:$0xff]
        %v272 = vld [vmem:[%s1 + $0x128] sm:$0xf]
        %v273 = vld [vmem:[%s1 + $0x12c] sm:$0xff]
        %v274 = vld [vmem:[%s1 + $0x134] sm:$0xff]
        %v275 = vld [vmem:[%s1 + $0x13c] sm:$0xf]
        %v276 = vld [vmem:[%s224] sm:$0xff]
        %v277 = vld [vmem:[%s224 + $0x8] sm:$0xff]
        %v278 = vld [vmem:[%s224 + $0x10] sm:$0xff]
        %v279 = vld [vmem:[%s224 + $0x18] sm:$0xff]
        %v280 = vld [vmem:[%s224 + $0x20] sm:$0xff]
        %v281 = vld [vmem:[%s224 + $0x28] sm:$0xff]
        %v282 = vld [vmem:[%s224 + $0x30] sm:$0xff]
        %v283 = vld [vmem:[%s224 + $0x38] sm:$0xff]
        %v284 = vld [vmem:[%s224 + $0x40] sm:$0xff]
        %v285 = vld [vmem:[%s224 + $0x48] sm:$0xff]
        %v286 = vld [vmem:[%s224 + $0x50] sm:$0xff]
        %v287 = vld [vmem:[%s224 + $0x58] sm:$0xff]
        %v288 = vld [vmem:[%s224 + $0x60] sm:$0xff]
        %v289 = vld [vmem:[%s224 + $0x68] sm:$0xff]
        %v290 = vld [vmem:[%s224 + $0x70] sm:$0xff]
        %v291 = vld [vmem:[%s224 + $0x78] sm:$0xff]
        %v292 = vld [vmem:[%s224 + $0x80] sm:$0xff]
        %v293 = vld [vmem:[%s224 + $0x88] sm:$0xff]
        %v294 = vld [vmem:[%s224 + $0x90] sm:$0xff]
        %v295 = vld [vmem:[%s224 + $0x98] sm:$0xff]
        %v296 = vld [vmem:[%s224 + $0xa0] sm:$0xff]
        %v297 = vld [vmem:[%s224 + $0xa8] sm:$0xff]
        %v298 = vld [vmem:[%s224 + $0xb0] sm:$0xff]
        %v299 = vld [vmem:[%s224 + $0xb8] sm:$0xff]
        %v300 = vld [vmem:[%s224 + $0xc0] sm:$0xff]
        %v301 = vld [vmem:[%s224 + $0xc8] sm:$0xff]
        %v302 = vld [vmem:[%s224 + $0xd0] sm:$0xff]
        %v303 = vld [vmem:[%s224 + $0xd8] sm:$0xff]
        %v304 = vld [vmem:[%s224 + $0xe0] sm:$0xff]
        %v305 = vld [vmem:[%s224 + $0xe8] sm:$0xff]
        %v306 = vld [vmem:[%s224 + $0xf0] sm:$0xff]
        %v307 = vld [vmem:[%s224 + $0xf8] sm:$0xff]
        %v308 = vld [vmem:[%s224 + $0x100] sm:$0xff]
        %v309 = vld [vmem:[%s224 + $0x108] sm:$0xff]
        %v310 = vld [vmem:[%s224 + $0x110] sm:$0xff]
        %v311 = vld [vmem:[%s224 + $0x118] sm:$0xff]
        %v312 = vld [vmem:[%s224 + $0x120] sm:$0xff]
        %v313 = vld [vmem:[%s224 + $0x128] sm:$0xff]
        %v314 = vld [vmem:[%s224 + $0x130] sm:$0xff]
        %v315 = vld [vmem:[%s224 + $0x138] sm:$0xff]
        %v316 = vld [vmem:[%s224 + $0x140] sm:$0xff]
        %v317 = vld [vmem:[%s224 + $0x148] sm:$0xff]
        %v318 = vld [vmem:[%s224 + $0x150] sm:$0xff]
        %v319 = vld [vmem:[%s224 + $0x158] sm:$0xff]
        %v320 = vld [vmem:[%s224 + $0x160] sm:$0xff]
        %v321 = vld [vmem:[%s224 + $0x168] sm:$0xff]
        %v322 = vld [vmem:[%s224 + $0x170] sm:$0xff]
        %v323 = vld [vmem:[%s224 + $0x178] sm:$0xff]
        %v324 = vld [vmem:[%s224 + $0x180] sm:$0xff]
        %v325 = vld [vmem:[%s224 + $0x188] sm:$0xff]
        %v326 = vld [vmem:[%s224 + $0x190] sm:$0xff]
        %v327 = vld [vmem:[%s224 + $0x198] sm:$0xff]
        %v328 = vld [vmem:[%s224 + $0x1a0] sm:$0xff]
        %v329 = vld [vmem:[%s224 + $0x1a8] sm:$0xff]
        %v330 = vld [vmem:[%s224 + $0x1b0] sm:$0xff]
        %v331 = vld [vmem:[%s224 + $0x1b8] sm:$0xff]
        %v332 = vld [vmem:[%s224 + $0x1c0] sm:$0xff]
        %v333 = vld [vmem:[%s224 + $0x1c8] sm:$0xff]
        %v334 = vld [vmem:[%s224 + $0x1d0] sm:$0xff]
        %v335 = vld [vmem:[%s224 + $0x1d8] sm:$0xff]
        %v336 = vld [vmem:[%s224 + $0x1e0] sm:$0xff]
        %v337 = vld [vmem:[%s224 + $0x1e8] sm:$0xff]
        %v338 = vld [vmem:[%s224 + $0x1f0] sm:$0xff]
        %v339 = vld [vmem:[%s224 + $0x1f8] sm:$0xff]
        %v340 = vld [vmem:[%s224 + $0x200] sm:$0xff]
        %v341 = vld [vmem:[%s224 + $0x208] sm:$0xff]
        %v342 = vld [vmem:[%s224 + $0x210] sm:$0xff]
        %v343 = vld [vmem:[%s224 + $0x218] sm:$0xff]
        %v344 = vld [vmem:[%s224 + $0x220] sm:$0xff]
        %v345 = vld [vmem:[%s224 + $0x228] sm:$0xff]
        %v346 = vld [vmem:[%s224 + $0x230] sm:$0xff]
        %v347 = vld [vmem:[%s224 + $0x238] sm:$0xff]
        %v348 = vld [vmem:[%s224 + $0x240] sm:$0xff]
        %v349 = vld [vmem:[%s224 + $0x248] sm:$0xff]
        %v350 = vld [vmem:[%s224 + $0x250] sm:$0xff]
        %v351 = vld [vmem:[%s224 + $0x258] sm:$0xff]
        %v352 = vld [vmem:[%s224 + $0x260] sm:$0xff]
        %v353 = vld [vmem:[%s224 + $0x268] sm:$0xff]
        %v354 = vld [vmem:[%s224 + $0x270] sm:$0xff]
        %v355 = vld [vmem:[%s224 + $0x278] sm:$0xff]
        %v356 = vld [vmem:[%s224 + $0x280] sm:$0xff]
        %v357 = vld [vmem:[%s224 + $0x288] sm:$0xff]
        %v358 = vld [vmem:[%s224 + $0x290] sm:$0xff]
        %v359 = vld [vmem:[%s224 + $0x298] sm:$0xff]
        %v360 = vld [vmem:[%s224 + $0x2a0] sm:$0xff]
        %v361 = vld [vmem:[%s224 + $0x2a8] sm:$0xff]
        %v362 = vld [vmem:[%s224 + $0x2b0] sm:$0xff]
        %v363 = vld [vmem:[%s224 + $0x2b8] sm:$0xff]
        %v364 = vld [vmem:[%s224 + $0x2c0] sm:$0xff]
        %v365 = vld [vmem:[%s224 + $0x2c8] sm:$0xff]
        %v366 = vld [vmem:[%s224 + $0x2d0] sm:$0xff]
        %v367 = vld [vmem:[%s224 + $0x2d8] sm:$0xff]
        %v368 = vld [vmem:[%s224 + $0x2e0] sm:$0xff]
        %v369 = vld [vmem:[%s224 + $0x2e8] sm:$0xff]
        %v370 = vld [vmem:[%s224 + $0x2f0] sm:$0xff]
        %v371 = vld [vmem:[%s224 + $0x2f8] sm:$0xff]
        %v372 = vld [vmem:[%s224 + $0x300] sm:$0xff]
        %v373 = vld [vmem:[%s224 + $0x308] sm:$0xff]
        %v374 = vld [vmem:[%s224 + $0x310] sm:$0xff]
        %v375 = vld [vmem:[%s224 + $0x318] sm:$0xff]
        %v376 = vld [vmem:[%s224 + $0x320] sm:$0xff]
        %v377 = vld [vmem:[%s224 + $0x328] sm:$0xff]
        %v378 = vld [vmem:[%s224 + $0x330] sm:$0xff]
        %v379 = vld [vmem:[%s224 + $0x338] sm:$0xff]
        %v380 = vld [vmem:[%s224 + $0x340] sm:$0xff]
        %v381 = vld [vmem:[%s224 + $0x348] sm:$0xff]
        %v382 = vld [vmem:[%s224 + $0x350] sm:$0xff]
        %v383 = vld [vmem:[%s224 + $0x358] sm:$0xff]
        %v384 = vld [vmem:[%s224 + $0x360] sm:$0xff]
        %v385 = vld [vmem:[%s224 + $0x368] sm:$0xff]
        %v386 = vld [vmem:[%s224 + $0x370] sm:$0xff]
        %v387 = vld [vmem:[%s224 + $0x378] sm:$0xff]
        %v388 = vld [vmem:[%s224 + $0x380] sm:$0xff]
        %v389 = vld [vmem:[%s224 + $0x388] sm:$0xff]
        %v390 = vld [vmem:[%s224 + $0x390] sm:$0xff]
        %v391 = vld [vmem:[%s224 + $0x398] sm:$0xff]
        %v392 = vld [vmem:[%s224 + $0x3a0] sm:$0xff]
        %v393 = vld [vmem:[%s224 + $0x3a8] sm:$0xff]
        %v394 = vld [vmem:[%s224 + $0x3b0] sm:$0xff]
        %v395 = vld [vmem:[%s224 + $0x3b8] sm:$0xff]
        %v396 = vld [vmem:[%s224 + $0x3c0] sm:$0xff]
        %v397 = vld [vmem:[%s224 + $0x3c8] sm:$0xff]
        %v398 = vld [vmem:[%s224 + $0x3d0] sm:$0xff]
        %v399 = vld [vmem:[%s224 + $0x3d8] sm:$0xff]
        %v400 = vld [vmem:[%s224 + $0x3e0] sm:$0xff]
        %v401 = vld [vmem:[%s224 + $0x3e8] sm:$0xff]
        %v402 = vld [vmem:[%s224 + $0x3f0] sm:$0xff]
        %v403 = vld [vmem:[%s224 + $0x3f8] sm:$0xff]
        %v404 = vld [vmem:[%s224 + $0x400] sm:$0xff]
        %v405 = vld [vmem:[%s224 + $0x408] sm:$0xff]
        %v406 = vld [vmem:[%s224 + $0x410] sm:$0xff]
        %v407 = vld [vmem:[%s224 + $0x418] sm:$0xff]
        %v408 = vld [vmem:[%s224 + $0x420] sm:$0xff]
        %v409 = vld [vmem:[%s224 + $0x428] sm:$0xff]
        %v410 = vld [vmem:[%s224 + $0x430] sm:$0xff]
        %v411 = vld [vmem:[%s224 + $0x438] sm:$0xff]
        %v412 = vld [vmem:[%s224 + $0x440] sm:$0xff]
        %v413 = vld [vmem:[%s224 + $0x448] sm:$0xff]
        %v414 = vld [vmem:[%s224 + $0x450] sm:$0xff]
        %v415 = vld [vmem:[%s224 + $0x458] sm:$0xff]
        %v416 = vld [vmem:[%s224 + $0x460] sm:$0xff]
        %v417 = vld [vmem:[%s224 + $0x468] sm:$0xff]
        %v418 = vld [vmem:[%s224 + $0x470] sm:$0xff]
        %v419 = vld [vmem:[%s224 + $0x478] sm:$0xff]
        %v420 = vld [vmem:[%s224 + $0x480] sm:$0xff]
        %v421 = vld [vmem:[%s224 + $0x488] sm:$0xff]
        %v422 = vld [vmem:[%s224 + $0x490] sm:$0xff]
        %v423 = vld [vmem:[%s224 + $0x498] sm:$0xff]
        %v424 = vld [vmem:[%s224 + $0x4a0] sm:$0xff]
        %v425 = vld [vmem:[%s224 + $0x4a8] sm:$0xff]
        %v426 = vld [vmem:[%s224 + $0x4b0] sm:$0xff]
        %v427 = vld [vmem:[%s224 + $0x4b8] sm:$0xff]
        %v428 = vld [vmem:[%s224 + $0x4c0] sm:$0xff]
        %v429 = vld [vmem:[%s224 + $0x4c8] sm:$0xff]
        %v430 = vld [vmem:[%s224 + $0x4d0] sm:$0xff]
        %v431 = vld [vmem:[%s224 + $0x4d8] sm:$0xff]
        %v432 = vld [vmem:[%s224 + $0x4e0] sm:$0xff]
        %v433 = vld [vmem:[%s224 + $0x4e8] sm:$0xff]
        %v434 = vld [vmem:[%s224 + $0x4f0] sm:$0xff]
        %v435 = vld [vmem:[%s224 + $0x4f8] sm:$0xff]
        %v436 = vld [vmem:[%s224 + $0x500] sm:$0xff]
        %v437 = vld [vmem:[%s224 + $0x508] sm:$0xff]
        %v438 = vld [vmem:[%s224 + $0x510] sm:$0xff]
        %v439 = vld [vmem:[%s224 + $0x518] sm:$0xff]
        %v440 = vld [vmem:[%s224 + $0x520] sm:$0xff]
        %v441 = vld [vmem:[%s224 + $0x528] sm:$0xff]
        %v442 = vld [vmem:[%s224 + $0x530] sm:$0xff]
        %v443 = vld [vmem:[%s224 + $0x538] sm:$0xff]
        %v444 = vld [vmem:[%s224 + $0x540] sm:$0xff]
        %v445 = vld [vmem:[%s224 + $0x548] sm:$0xff]
        %v446 = vld [vmem:[%s224 + $0x550] sm:$0xff]
        %v447 = vld [vmem:[%s224 + $0x558] sm:$0xff]
        %v448 = vld [vmem:[%s224 + $0x560] sm:$0xff]
        %v449 = vld [vmem:[%s224 + $0x568] sm:$0xff]
        %v450 = vld [vmem:[%s224 + $0x570] sm:$0xff]
        %v451 = vld [vmem:[%s224 + $0x578] sm:$0xff]
        %v452 = vld [vmem:[%s224 + $0x580] sm:$0xff]
        %v453 = vld [vmem:[%s224 + $0x588] sm:$0xff]
        %v454 = vld [vmem:[%s224 + $0x590] sm:$0xff]
        %v455 = vld [vmem:[%s224 + $0x598] sm:$0xff]
        %v456 = vld [vmem:[%s224 + $0x5a0] sm:$0xff]
        %v457 = vld [vmem:[%s224 + $0x5a8] sm:$0xff]
        %v458 = vld [vmem:[%s224 + $0x5b0] sm:$0xff]
        %v459 = vld [vmem:[%s224 + $0x5b8] sm:$0xff]
        %v460 = vld [vmem:[%s224 + $0x5c0] sm:$0xff]
        %v461 = vld [vmem:[%s224 + $0x5c8] sm:$0xff]
        %v462 = vld [vmem:[%s224 + $0x5d0] sm:$0xff]
        %v463 = vld [vmem:[%s224 + $0x5d8] sm:$0xff]
        %v464 = vld [vmem:[%s224 + $0x5e0] sm:$0xff]
        %v465 = vld [vmem:[%s224 + $0x5e8] sm:$0xff]
        %v466 = vld [vmem:[%s224 + $0x5f0] sm:$0xff]
        %v467 = vld [vmem:[%s224 + $0x5f8] sm:$0xff]
        %v468 = vld [vmem:[%s224 + $0x600] sm:$0xff]
        %v469 = vld [vmem:[%s224 + $0x608] sm:$0xff]
        %v470 = vld [vmem:[%s224 + $0x610] sm:$0xff]
        %v471 = vld [vmem:[%s224 + $0x618] sm:$0xff]
        %v472 = vld [vmem:[%s224 + $0x620] sm:$0xff]
        %v473 = vld [vmem:[%s224 + $0x628] sm:$0xff]
        %v474 = vld [vmem:[%s224 + $0x630] sm:$0xff]
        %v475 = vld [vmem:[%s224 + $0x638] sm:$0xff]
        %v476 = vld [vmem:[%s224 + $0x640] sm:$0xff]
        %v477 = vld [vmem:[%s224 + $0x648] sm:$0xff]
        %v478 = vld [vmem:[%s224 + $0x650] sm:$0xff]
        %v479 = vld [vmem:[%s224 + $0x658] sm:$0xff]
        %v480 = vld [vmem:[%s224 + $0x660] sm:$0xff]
        %v481 = vld [vmem:[%s224 + $0x668] sm:$0xff]
        %v482 = vld [vmem:[%s224 + $0x670] sm:$0xff]
        %v483 = vld [vmem:[%s224 + $0x678] sm:$0xff]
        %v484 = vld [vmem:[%s224 + $0x680] sm:$0xff]
        %v485 = vld [vmem:[%s224 + $0x688] sm:$0xff]
        %v486 = vld [vmem:[%s224 + $0x690] sm:$0xff]
        %v487 = vld [vmem:[%s224 + $0x698] sm:$0xff]
        %v488 = vld [vmem:[%s224 + $0x6a0] sm:$0xff]
        %v489 = vld [vmem:[%s224 + $0x6a8] sm:$0xff]
        %v490 = vld [vmem:[%s224 + $0x6b0] sm:$0xff]
        %v491 = vld [vmem:[%s224 + $0x6b8] sm:$0xff]
        %v492 = vld [vmem:[%s224 + $0x6c0] sm:$0xff]
        %v493 = vld [vmem:[%s224 + $0x6c8] sm:$0xff]
        %v494 = vld [vmem:[%s224 + $0x6d0] sm:$0xff]
        %v495 = vld [vmem:[%s224 + $0x6d8] sm:$0xff]
        %v496 = vld [vmem:[%s224 + $0x6e0] sm:$0xff]
        %v497 = vld [vmem:[%s224 + $0x6e8] sm:$0xff]
        %v498 = vld [vmem:[%s224 + $0x6f0] sm:$0xff]
        %v499 = vld [vmem:[%s224 + $0x6f8] sm:$0xff]
        %v500 = vld [vmem:[%s224 + $0x700] sm:$0xff]
        %v501 = vld [vmem:[%s224 + $0x708] sm:$0xff]
        %v502 = vld [vmem:[%s224 + $0x710] sm:$0xff]
        %v503 = vld [vmem:[%s224 + $0x718] sm:$0xff]
        %v504 = vld [vmem:[%s224 + $0x720] sm:$0xff]
        %v505 = vld [vmem:[%s224 + $0x728] sm:$0xff]
        %v506 = vld [vmem:[%s224 + $0x730] sm:$0xff]
        %v507 = vld [vmem:[%s224 + $0x738] sm:$0xff]
        %v508 = vld [vmem:[%s224 + $0x740] sm:$0xff]
        %v509 = vld [vmem:[%s224 + $0x748] sm:$0xff]
        %v510 = vld [vmem:[%s224 + $0x750] sm:$0xff]
        %v511 = vld [vmem:[%s224 + $0x758] sm:$0xff]
        %v512 = vld [vmem:[%s224 + $0x760] sm:$0xff]
        %v513 = vld [vmem:[%s224 + $0x768] sm:$0xff]
        %v514 = vld [vmem:[%s224 + $0x770] sm:$0xff]
        %v515 = vld [vmem:[%s224 + $0x778] sm:$0xff]
        %v516 = vld [vmem:[%s224 + $0x780] sm:$0xff]
        %v517 = vld [vmem:[%s224 + $0x788] sm:$0xff]
        %v518 = vld [vmem:[%s224 + $0x790] sm:$0xff]
        %v519 = vld [vmem:[%s224 + $0x798] sm:$0xff]
        %v520 = vld [vmem:[%s224 + $0x7a0] sm:$0xff]
        %v521 = vld [vmem:[%s224 + $0x7a8] sm:$0xff]
        %v522 = vld [vmem:[%s224 + $0x7b0] sm:$0xff]
        %v523 = vld [vmem:[%s224 + $0x7b8] sm:$0xff]
        %v524 = vld [vmem:[%s224 + $0x7c0] sm:$0xff]
        %v525 = vld [vmem:[%s224 + $0x7c8] sm:$0xff]
        %v526 = vld [vmem:[%s224 + $0x7d0] sm:$0xff]
        %v527 = vld [vmem:[%s224 + $0x7d8] sm:$0xff]
        %v528 = vld [vmem:[%s224 + $0x7e0] sm:$0xff]
        %v529 = vld [vmem:[%s224 + $0x7e8] sm:$0xff]
        %v530 = vld [vmem:[%s224 + $0x7f0] sm:$0xff]
        %v531 = vld [vmem:[%s224 + $0x7f8] sm:$0xff]
        %v532 = vld [vmem:[%s224 + $0x800] sm:$0xff]
        %v533 = vld [vmem:[%s224 + $0x808] sm:$0xff]
        %v534 = vld [vmem:[%s224 + $0x810] sm:$0xff]
        %v535 = vld [vmem:[%s224 + $0x818] sm:$0xff]
        %v536 = vld [vmem:[%s224 + $0x820] sm:$0xff]
        %v537 = vld [vmem:[%s224 + $0x828] sm:$0xff]
        %v538 = vld [vmem:[%s224 + $0x830] sm:$0xff]
        %v539 = vld [vmem:[%s224 + $0x838] sm:$0xff]
        %v540 = vld [vmem:[%s224 + $0x840] sm:$0xff]
        %v541 = vld [vmem:[%s224 + $0x848] sm:$0xff]
        %v542 = vld [vmem:[%s224 + $0x850] sm:$0xff]
        %v543 = vld [vmem:[%s224 + $0x858] sm:$0xff]
        %v544 = vld [vmem:[%s224 + $0x860] sm:$0xff]
        %v545 = vld [vmem:[%s224 + $0x868] sm:$0xff]
        %v546 = vld [vmem:[%s224 + $0x870] sm:$0xff]
        %v547 = vld [vmem:[%s224 + $0x878] sm:$0xff]
        %v548 = vld [vmem:[%s224 + $0x880] sm:$0xff]
        %v549 = vld [vmem:[%s224 + $0x888] sm:$0xff]
        %v550 = vld [vmem:[%s224 + $0x890] sm:$0xff]
        %v551 = vld [vmem:[%s224 + $0x898] sm:$0xff]
        %v552 = vld [vmem:[%s224 + $0x8a0] sm:$0xff]
        %v553 = vld [vmem:[%s224 + $0x8a8] sm:$0xff]
        %v554 = vld [vmem:[%s224 + $0x8b0] sm:$0xff]
        %v555 = vld [vmem:[%s224 + $0x8b8] sm:$0xff]
        %v556 = vld [vmem:[%s224 + $0x8c0] sm:$0xff]
        %v557 = vld [vmem:[%s224 + $0x8c8] sm:$0xff]
        %v558 = vld [vmem:[%s224 + $0x8d0] sm:$0xff]
        %v559 = vld [vmem:[%s224 + $0x8d8] sm:$0xff]
        %v560 = vld [vmem:[%s224 + $0x8e0] sm:$0xff]
        %v561 = vld [vmem:[%s224 + $0x8e8] sm:$0xff]
        %v562 = vld [vmem:[%s224 + $0x8f0] sm:$0xff]
        %v563 = vld [vmem:[%s224 + $0x8f8] sm:$0xff]
        %v564 = vld [vmem:[%s224 + $0x900] sm:$0xff]
        %v565 = vld [vmem:[%s224 + $0x908] sm:$0xff]
        %v566 = vld [vmem:[%s224 + $0x910] sm:$0xff]
        %v567 = vld [vmem:[%s224 + $0x918] sm:$0xff]
        %v568 = vld [vmem:[%s224 + $0x920] sm:$0xff]
        %v569 = vld [vmem:[%s224 + $0x928] sm:$0xff]
        %v570 = vld [vmem:[%s224 + $0x930] sm:$0xff]
        %v571 = vld [vmem:[%s224 + $0x938] sm:$0xff]
        %v572 = vld [vmem:[%s224 + $0x940] sm:$0xff]
        %v573 = vld [vmem:[%s224 + $0x948] sm:$0xff]
        %v574 = vld [vmem:[%s224 + $0x950] sm:$0xff]
        %v575 = vld [vmem:[%s224 + $0x958] sm:$0xff]
        %v576 = vld [vmem:[%s224 + $0x960] sm:$0xff]
        %v577 = vld [vmem:[%s224 + $0x968] sm:$0xff]
        %v578 = vld [vmem:[%s224 + $0x970] sm:$0xff]
        %v579 = vld [vmem:[%s224 + $0x978] sm:$0xff]
        %v580 = vld [vmem:[%s224 + $0x980] sm:$0xff]
        %v581 = vld [vmem:[%s224 + $0x988] sm:$0xff]
        %v582 = vld [vmem:[%s224 + $0x990] sm:$0xff]
        %v583 = vld [vmem:[%s224 + $0x998] sm:$0xff]
        %v584 = vld [vmem:[%s224 + $0x9a0] sm:$0xff]
        %v585 = vld [vmem:[%s224 + $0x9a8] sm:$0xff]
        %v586 = vld [vmem:[%s224 + $0x9b0] sm:$0xff]
        %v587 = vld [vmem:[%s224 + $0x9b8] sm:$0xff]
        %v588 = vld [vmem:[%s224 + $0x9c0] sm:$0xff]
        %v589 = vld [vmem:[%s224 + $0x9c8] sm:$0xff]
        %v590 = vld [vmem:[%s224 + $0x9d0] sm:$0xff]
        %v591 = vld [vmem:[%s224 + $0x9d8] sm:$0xff]
        %v592 = vld [vmem:[%s224 + $0x9e0] sm:$0xff]
        %v593 = vld [vmem:[%s224 + $0x9e8] sm:$0xff]
        %v594 = vld [vmem:[%s224 + $0x9f0] sm:$0xff]
        %v595 = vld [vmem:[%s224 + $0x9f8] sm:$0xff]
        %v596 = vld [vmem:[%s224 + $0xa00] sm:$0xff]
        %v597 = vld [vmem:[%s224 + $0xa08] sm:$0xff]
        %v598 = vld [vmem:[%s224 + $0xa10] sm:$0xff]
        %v599 = vld [vmem:[%s224 + $0xa18] sm:$0xff]
        %v600 = vld [vmem:[%s224 + $0xa20] sm:$0xff]
        %v601 = vld [vmem:[%s224 + $0xa28] sm:$0x77]
        %v602 = vld [vmem:[%s224 + $0xa30] sm:$0x77]
        %v603 = vld [vmem:[%s224 + $0xa38] sm:$0x77]
        %v604 = vld [vmem:[%s224 + $0xa40] sm:$0x77]
        %v605 = vld [vmem:[%s224 + $0xa48] sm:$0x77]
        %v654 = vunpack.c.l.b16 %v228
        %v655 = vunpack.c.h.b16 %v228
        %v656 = vunpack.c.l.b16 %v229
        %v657 = vunpack.c.h.b16 %v229
        %v658 = vunpack.c.l.b16 %v230
        %v659 = vunpack.c.l.b16 %v231
        %v660 = vunpack.c.h.b16 %v231
        %v661 = vunpack.c.l.b16 %v232
        %v662 = vunpack.c.h.b16 %v232
        %v663 = vunpack.c.l.b16 %v233
        %v664 = vunpack.c.l.b16 %v234
        %v665 = vunpack.c.h.b16 %v234
        %v666 = vunpack.c.l.b16 %v235
        %v667 = vunpack.c.h.b16 %v235
        %v668 = vunpack.c.l.b16 %v236
        %v669 = vunpack.c.l.b16 %v237
        %v670 = vunpack.c.h.b16 %v237
        %v671 = vunpack.c.l.b16 %v238
        %v672 = vunpack.c.h.b16 %v238
        %v673 = vunpack.c.l.b16 %v239
        %v674 = vunpack.c.l.b16 %v240
        %v675 = vunpack.c.h.b16 %v240
        %v676 = vunpack.c.l.b16 %v241
        %v677 = vunpack.c.h.b16 %v241
        %v678 = vunpack.c.l.b16 %v242
        %v679 = vunpack.c.l.b16 %v243
        %v680 = vunpack.c.h.b16 %v243
        %v681 = vunpack.c.l.b16 %v244
        %v682 = vunpack.c.h.b16 %v244
        %v683 = vunpack.c.l.b16 %v245
        %v684 = vunpack.c.l.b16 %v246
        %v685 = vunpack.c.h.b16 %v246
        %v686 = vunpack.c.l.b16 %v247
        %v687 = vunpack.c.h.b16 %v247
        %v688 = vunpack.c.l.b16 %v248
        %v689 = vunpack.c.l.b16 %v249
        %v690 = vunpack.c.h.b16 %v249
        %v691 = vunpack.c.l.b16 %v250
        %v692 = vunpack.c.h.b16 %v250
        %v693 = vunpack.c.l.b16 %v251
        %v694 = vunpack.c.l.b16 %v252
        %v695 = vunpack.c.h.b16 %v252
        %v696 = vunpack.c.l.b16 %v253
        %v697 = vunpack.c.h.b16 %v253
        %v698 = vunpack.c.l.b16 %v254
        %v699 = vunpack.c.l.b16 %v255
        %v700 = vunpack.c.h.b16 %v255
        %v701 = vunpack.c.l.b16 %v256
        %v702 = vunpack.c.h.b16 %v256
        %v703 = vunpack.c.l.b16 %v257
        %v704 = vunpack.c.l.b16 %v258
        %v705 = vunpack.c.h.b16 %v258
        %v706 = vunpack.c.l.b16 %v259
        %v707 = vunpack.c.h.b16 %v259
        %v708 = vunpack.c.l.b16 %v260
        %v709 = vunpack.c.l.b16 %v261
        %v710 = vunpack.c.h.b16 %v261
        %v711 = vunpack.c.l.b16 %v262
        %v712 = vunpack.c.h.b16 %v262
        %v713 = vunpack.c.l.b16 %v263
        %v714 = vunpack.c.l.b16 %v264
        %v715 = vunpack.c.h.b16 %v264
        %v716 = vunpack.c.l.b16 %v265
        %v717 = vunpack.c.h.b16 %v265
        %v718 = vunpack.c.l.b16 %v266
        %v719 = vunpack.c.l.b16 %v267
        %v720 = vunpack.c.h.b16 %v267
        %v721 = vunpack.c.l.b16 %v268
        %v722 = vunpack.c.h.b16 %v268
        %v723 = vunpack.c.l.b16 %v269
        %v724 = vunpack.c.l.b16 %v270
        %v725 = vunpack.c.h.b16 %v270
        %v726 = vunpack.c.l.b16 %v271
        %v727 = vunpack.c.h.b16 %v271
        %v728 = vunpack.c.l.b16 %v272
        %v729 = vunpack.c.l.b16 %v273
        %v730 = vunpack.c.h.b16 %v273
        %v731 = vunpack.c.l.b16 %v274
        %v732 = vunpack.c.h.b16 %v274
        %v733 = vunpack.c.l.b16 %v275
        %v734 = vpack.c.b16 %v659, %v654
        %v735 = vpack.c.b16 %v660, %v655
        %v736 = vpack.c.b16 %v661, %v656
        %v737 = vpack.c.b16 %v662, %v657
        %v738 = vpack.c.b16 %v663, %v658
        %v739 = vpack.c.b16 %v669, %v664
        %v740 = vpack.c.b16 %v670, %v665
        %v741 = vpack.c.b16 %v671, %v666
        %v742 = vpack.c.b16 %v672, %v667
        %v743 = vpack.c.b16 %v673, %v668
        %v744 = vpack.c.b16 %v679, %v674
        %v745 = vpack.c.b16 %v680, %v675
        %v746 = vpack.c.b16 %v681, %v676
        %v747 = vpack.c.b16 %v682, %v677
        %v748 = vpack.c.b16 %v683, %v678
        %v749 = vpack.c.b16 %v689, %v684
        %v750 = vpack.c.b16 %v690, %v685
        %v751 = vpack.c.b16 %v691, %v686
        %v752 = vpack.c.b16 %v692, %v687
        %v753 = vpack.c.b16 %v693, %v688
        %v754 = vpack.c.b16 %v699, %v694
        %v755 = vpack.c.b16 %v700, %v695
        %v756 = vpack.c.b16 %v701, %v696
        %v757 = vpack.c.b16 %v702, %v697
        %v758 = vpack.c.b16 %v703, %v698
        %v759 = vpack.c.b16 %v709, %v704
        %v760 = vpack.c.b16 %v710, %v705
        %v761 = vpack.c.b16 %v711, %v706
        %v762 = vpack.c.b16 %v712, %v707
        %v763 = vpack.c.b16 %v713, %v708
        %v764 = vpack.c.b16 %v719, %v714
        %v765 = vpack.c.b16 %v720, %v715
        %v766 = vpack.c.b16 %v721, %v716
        %v767 = vpack.c.b16 %v722, %v717
        %v768 = vpack.c.b16 %v723, %v718
        %v769 = vpack.c.b16 %v729, %v724
        %v770 = vpack.c.b16 %v730, %v725
        %v771 = vpack.c.b16 %v731, %v726
        %v772 = vpack.c.b16 %v732, %v727
        %v773 = vpack.c.b16 %v733, %v728
        %v1136 = vunpack.c.l.b16 %v276
        %v1137 = vunpack.c.h.b16 %v276
        %v1138 = vunpack.c.l.b16 %v277
        %v1139 = vunpack.c.h.b16 %v277
        %v1140 = vunpack.c.l.b16 %v278
        %v1141 = vunpack.c.h.b16 %v278
        %v1142 = vunpack.c.l.b16 %v279
        %v1143 = vunpack.c.h.b16 %v279
        %v1144 = vunpack.c.l.b16 %v280
        %v1145 = vunpack.c.h.b16 %v280
        %v1146 = vunpack.c.l.b16 %v281
        %v1147 = vunpack.c.h.b16 %v281
        %v1148 = vunpack.c.l.b16 %v282
        %v1149 = vunpack.c.h.b16 %v282
        %v1150 = vunpack.c.l.b16 %v283
        %v1151 = vunpack.c.h.b16 %v283
        %v1152 = vunpack.c.l.b16 %v284
        %v1153 = vunpack.c.h.b16 %v284
        %v1154 = vunpack.c.l.b16 %v285
        %v1155 = vunpack.c.h.b16 %v285
        %v1156 = vunpack.c.l.b16 %v286
        %v1157 = vunpack.c.h.b16 %v286
        %v1158 = vunpack.c.l.b16 %v287
        %v1159 = vunpack.c.h.b16 %v287
        %v1160 = vunpack.c.l.b16 %v288
        %v1161 = vunpack.c.h.b16 %v288
        %v1162 = vunpack.c.l.b16 %v289
        %v1163 = vunpack.c.h.b16 %v289
        %v1164 = vunpack.c.l.b16 %v290
        %v1165 = vunpack.c.h.b16 %v290
        %v1166 = vunpack.c.l.b16 %v291
        %v1167 = vunpack.c.h.b16 %v291
        %v1168 = vunpack.c.l.b16 %v292
        %v1169 = vunpack.c.h.b16 %v292
        %v1170 = vunpack.c.l.b16 %v293
        %v1171 = vunpack.c.h.b16 %v293
        %v1172 = vunpack.c.l.b16 %v294
        %v1173 = vunpack.c.h.b16 %v294
        %v1174 = vunpack.c.l.b16 %v295
        %v1175 = vunpack.c.h.b16 %v295
        %v1176 = vunpack.c.l.b16 %v296
        %v1177 = vunpack.c.h.b16 %v296
        %v1178 = vunpack.c.l.b16 %v297
        %v1179 = vunpack.c.h.b16 %v297
        %v1180 = vunpack.c.l.b16 %v298
        %v1181 = vunpack.c.h.b16 %v298
        %v1182 = vunpack.c.l.b16 %v299
        %v1183 = vunpack.c.h.b16 %v299
        %v1184 = vunpack.c.l.b16 %v300
        %v1185 = vunpack.c.h.b16 %v300
        %v1186 = vunpack.c.l.b16 %v301
        %v1187 = vunpack.c.h.b16 %v301
        %v1188 = vunpack.c.l.b16 %v302
        %v1189 = vunpack.c.h.b16 %v302
        %v1190 = vunpack.c.l.b16 %v303
        %v1191 = vunpack.c.h.b16 %v303
        %v1192 = vunpack.c.l.b16 %v304
        %v1193 = vunpack.c.h.b16 %v304
        %v1194 = vunpack.c.l.b16 %v305
        %v1195 = vunpack.c.h.b16 %v305
        %v1196 = vunpack.c.l.b16 %v306
        %v1197 = vunpack.c.h.b16 %v306
        %v1198 = vunpack.c.l.b16 %v307
        %v1199 = vunpack.c.h.b16 %v307
        %v1200 = vunpack.c.l.b16 %v308
        %v1201 = vunpack.c.h.b16 %v308
        %v1202 = vunpack.c.l.b16 %v309
        %v1203 = vunpack.c.h.b16 %v309
        %v1204 = vunpack.c.l.b16 %v310
        %v1205 = vunpack.c.h.b16 %v310
        %v1206 = vunpack.c.l.b16 %v311
        %v1207 = vunpack.c.h.b16 %v311
        %v1208 = vunpack.c.l.b16 %v312
        %v1209 = vunpack.c.h.b16 %v312
        %v1210 = vunpack.c.l.b16 %v313
        %v1211 = vunpack.c.h.b16 %v313
        %v1212 = vunpack.c.l.b16 %v314
        %v1213 = vunpack.c.h.b16 %v314
        %v1214 = vunpack.c.l.b16 %v315
        %v1215 = vunpack.c.h.b16 %v315
        %v1216 = vunpack.c.l.b16 %v316
        %v1217 = vunpack.c.h.b16 %v316
        %v1218 = vunpack.c.l.b16 %v317
        %v1219 = vunpack.c.h.b16 %v317
        %v1220 = vunpack.c.l.b16 %v318
        %v1221 = vunpack.c.h.b16 %v318
        %v1222 = vunpack.c.l.b16 %v319
        %v1223 = vunpack.c.h.b16 %v319
        %v1224 = vunpack.c.l.b16 %v320
        %v1225 = vunpack.c.h.b16 %v320
        %v1226 = vunpack.c.l.b16 %v321
        %v1227 = vunpack.c.h.b16 %v321
        %v1228 = vunpack.c.l.b16 %v322
        %v1229 = vunpack.c.h.b16 %v322
        %v1230 = vunpack.c.l.b16 %v323
        %v1231 = vunpack.c.h.b16 %v323
        %v1232 = vunpack.c.l.b16 %v324
        %v1233 = vunpack.c.h.b16 %v324
        %v1234 = vunpack.c.l.b16 %v325
        %v1235 = vunpack.c.h.b16 %v325
        %v1236 = vunpack.c.l.b16 %v326
        %v1237 = vunpack.c.h.b16 %v326
        %v1238 = vunpack.c.l.b16 %v327
        %v1239 = vunpack.c.h.b16 %v327
        %v1240 = vunpack.c.l.b16 %v328
        %v1241 = vunpack.c.h.b16 %v328
        %v1242 = vunpack.c.l.b16 %v329
        %v1243 = vunpack.c.h.b16 %v329
        %v1244 = vunpack.c.l.b16 %v330
        %v1245 = vunpack.c.h.b16 %v330
        %v1246 = vunpack.c.l.b16 %v331
        %v1247 = vunpack.c.h.b16 %v331
        %v1248 = vunpack.c.l.b16 %v332
        %v1249 = vunpack.c.h.b16 %v332
        %v1250 = vunpack.c.l.b16 %v333
        %v1251 = vunpack.c.h.b16 %v333
        %v1252 = vunpack.c.l.b16 %v334
        %v1253 = vunpack.c.h.b16 %v334
        %v1254 = vunpack.c.l.b16 %v335
        %v1255 = vunpack.c.h.b16 %v335
        %v1256 = vunpack.c.l.b16 %v336
        %v1257 = vunpack.c.h.b16 %v336
        %v1258 = vunpack.c.l.b16 %v337
        %v1259 = vunpack.c.h.b16 %v337
        %v1260 = vunpack.c.l.b16 %v338
        %v1261 = vunpack.c.h.b16 %v338
        %v1262 = vunpack.c.l.b16 %v339
        %v1263 = vunpack.c.h.b16 %v339
        %v1264 = vunpack.c.l.b16 %v340
        %v1265 = vunpack.c.h.b16 %v340
        %v1266 = vunpack.c.l.b16 %v341
        %v1267 = vunpack.c.h.b16 %v341
        %v1268 = vunpack.c.l.b16 %v342
        %v1269 = vunpack.c.h.b16 %v342
        %v1270 = vunpack.c.l.b16 %v343
        %v1271 = vunpack.c.h.b16 %v343
        %v1272 = vunpack.c.l.b16 %v344
        %v1273 = vunpack.c.h.b16 %v344
        %v1274 = vunpack.c.l.b16 %v345
        %v1275 = vunpack.c.h.b16 %v345
        %v1276 = vunpack.c.l.b16 %v346
        %v1277 = vunpack.c.h.b16 %v346
        %v1278 = vunpack.c.l.b16 %v347
        %v1279 = vunpack.c.h.b16 %v347
        %v1280 = vunpack.c.l.b16 %v348
        %v1281 = vunpack.c.h.b16 %v348
        %v1282 = vunpack.c.l.b16 %v349
        %v1283 = vunpack.c.h.b16 %v349
        %v1284 = vunpack.c.l.b16 %v350
        %v1285 = vunpack.c.h.b16 %v350
        %v1286 = vunpack.c.l.b16 %v351
        %v1287 = vunpack.c.h.b16 %v351
        %v1288 = vunpack.c.l.b16 %v352
        %v1289 = vunpack.c.h.b16 %v352
        %v1290 = vunpack.c.l.b16 %v353
        %v1291 = vunpack.c.h.b16 %v353
        %v1292 = vunpack.c.l.b16 %v354
        %v1293 = vunpack.c.h.b16 %v354
        %v1294 = vunpack.c.l.b16 %v355
        %v1295 = vunpack.c.h.b16 %v355
        %v1296 = vunpack.c.l.b16 %v356
        %v1297 = vunpack.c.h.b16 %v356
        %v1298 = vunpack.c.l.b16 %v357
        %v1299 = vunpack.c.h.b16 %v357
        %v1300 = vunpack.c.l.b16 %v358
        %v1301 = vunpack.c.h.b16 %v358
        %v1302 = vunpack.c.l.b16 %v359
        %v1303 = vunpack.c.h.b16 %v359
        %v1304 = vunpack.c.l.b16 %v360
        %v1305 = vunpack.c.h.b16 %v360
        %v1306 = vunpack.c.l.b16 %v361
        %v1307 = vunpack.c.h.b16 %v361
        %v1308 = vunpack.c.l.b16 %v362
        %v1309 = vunpack.c.h.b16 %v362
        %v1310 = vunpack.c.l.b16 %v363
        %v1311 = vunpack.c.h.b16 %v363
        %v1312 = vunpack.c.l.b16 %v364
        %v1313 = vunpack.c.h.b16 %v364
        %v1314 = vunpack.c.l.b16 %v365
        %v1315 = vunpack.c.h.b16 %v365
        %v1316 = vunpack.c.l.b16 %v366
        %v1317 = vunpack.c.h.b16 %v366
        %v1318 = vunpack.c.l.b16 %v367
        %v1319 = vunpack.c.h.b16 %v367
        %v1320 = vunpack.c.l.b16 %v368
        %v1321 = vunpack.c.h.b16 %v368
        %v1322 = vunpack.c.l.b16 %v369
        %v1323 = vunpack.c.h.b16 %v369
        %v1324 = vunpack.c.l.b16 %v370
        %v1325 = vunpack.c.h.b16 %v370
        %v1326 = vunpack.c.l.b16 %v371
        %v1327 = vunpack.c.h.b16 %v371
        %v1328 = vunpack.c.l.b16 %v372
        %v1329 = vunpack.c.h.b16 %v372
        %v1330 = vunpack.c.l.b16 %v373
        %v1331 = vunpack.c.h.b16 %v373
        %v1332 = vunpack.c.l.b16 %v374
        %v1333 = vunpack.c.h.b16 %v374
        %v1334 = vunpack.c.l.b16 %v375
        %v1335 = vunpack.c.h.b16 %v375
        %v1336 = vunpack.c.l.b16 %v376
        %v1337 = vunpack.c.h.b16 %v376
        %v1338 = vunpack.c.l.b16 %v377
        %v1339 = vunpack.c.h.b16 %v377
        %v1340 = vunpack.c.l.b16 %v378
        %v1341 = vunpack.c.h.b16 %v378
        %v1342 = vunpack.c.l.b16 %v379
        %v1343 = vunpack.c.h.b16 %v379
        %v1344 = vunpack.c.l.b16 %v380
        %v1345 = vunpack.c.h.b16 %v380
        %v1346 = vunpack.c.l.b16 %v381
        %v1347 = vunpack.c.h.b16 %v381
        %v1348 = vunpack.c.l.b16 %v382
        %v1349 = vunpack.c.h.b16 %v382
        %v1350 = vunpack.c.l.b16 %v383
        %v1351 = vunpack.c.h.b16 %v383
        %v1352 = vunpack.c.l.b16 %v384
        %v1353 = vunpack.c.h.b16 %v384
        %v1354 = vunpack.c.l.b16 %v385
        %v1355 = vunpack.c.h.b16 %v385
        %v1356 = vunpack.c.l.b16 %v386
        %v1357 = vunpack.c.h.b16 %v386
        %v1358 = vunpack.c.l.b16 %v387
        %v1359 = vunpack.c.h.b16 %v387
        %v1360 = vunpack.c.l.b16 %v388
        %v1361 = vunpack.c.h.b16 %v388
        %v1362 = vunpack.c.l.b16 %v389
        %v1363 = vunpack.c.h.b16 %v389
        %v1364 = vunpack.c.l.b16 %v390
        %v1365 = vunpack.c.h.b16 %v390
        %v1366 = vunpack.c.l.b16 %v391
        %v1367 = vunpack.c.h.b16 %v391
        %v1368 = vunpack.c.l.b16 %v392
        %v1369 = vunpack.c.h.b16 %v392
        %v1370 = vunpack.c.l.b16 %v393
        %v1371 = vunpack.c.h.b16 %v393
        %v1372 = vunpack.c.l.b16 %v394
        %v1373 = vunpack.c.h.b16 %v394
        %v1374 = vunpack.c.l.b16 %v395
        %v1375 = vunpack.c.h.b16 %v395
        %v1376 = vunpack.c.l.b16 %v396
        %v1377 = vunpack.c.h.b16 %v396
        %v1378 = vunpack.c.l.b16 %v397
        %v1379 = vunpack.c.h.b16 %v397
        %v1380 = vunpack.c.l.b16 %v398
        %v1381 = vunpack.c.h.b16 %v398
        %v1382 = vunpack.c.l.b16 %v399
        %v1383 = vunpack.c.h.b16 %v399
        %v1384 = vunpack.c.l.b16 %v400
        %v1385 = vunpack.c.h.b16 %v400
        %v1386 = vunpack.c.l.b16 %v401
        %v1387 = vunpack.c.h.b16 %v401
        %v1388 = vunpack.c.l.b16 %v402
        %v1389 = vunpack.c.h.b16 %v402
        %v1390 = vunpack.c.l.b16 %v403
        %v1391 = vunpack.c.h.b16 %v403
        %v1392 = vunpack.c.l.b16 %v404
        %v1393 = vunpack.c.h.b16 %v404
        %v1394 = vunpack.c.l.b16 %v405
        %v1395 = vunpack.c.h.b16 %v405
        %v1396 = vunpack.c.l.b16 %v406
        %v1397 = vunpack.c.h.b16 %v406
        %v1398 = vunpack.c.l.b16 %v407
        %v1399 = vunpack.c.h.b16 %v407
        %v1400 = vunpack.c.l.b16 %v408
        %v1401 = vunpack.c.h.b16 %v408
        %v1402 = vunpack.c.l.b16 %v409
        %v1403 = vunpack.c.h.b16 %v409
        %v1404 = vunpack.c.l.b16 %v410
        %v1405 = vunpack.c.h.b16 %v410
        %v1406 = vunpack.c.l.b16 %v411
        %v1407 = vunpack.c.h.b16 %v411
        %v1408 = vunpack.c.l.b16 %v412
        %v1409 = vunpack.c.h.b16 %v412
        %v1410 = vunpack.c.l.b16 %v413
        %v1411 = vunpack.c.h.b16 %v413
        %v1412 = vunpack.c.l.b16 %v414
        %v1413 = vunpack.c.h.b16 %v414
        %v1414 = vunpack.c.l.b16 %v415
        %v1415 = vunpack.c.h.b16 %v415
        %v1416 = vunpack.c.l.b16 %v416
        %v1417 = vunpack.c.h.b16 %v416
        %v1418 = vunpack.c.l.b16 %v417
        %v1419 = vunpack.c.h.b16 %v417
        %v1420 = vunpack.c.l.b16 %v418
        %v1421 = vunpack.c.h.b16 %v418
        %v1422 = vunpack.c.l.b16 %v419
        %v1423 = vunpack.c.h.b16 %v419
        %v1424 = vunpack.c.l.b16 %v420
        %v1425 = vunpack.c.h.b16 %v420
        %v1426 = vunpack.c.l.b16 %v421
        %v1427 = vunpack.c.h.b16 %v421
        %v1428 = vunpack.c.l.b16 %v422
        %v1429 = vunpack.c.h.b16 %v422
        %v1430 = vunpack.c.l.b16 %v423
        %v1431 = vunpack.c.h.b16 %v423
        %v1432 = vunpack.c.l.b16 %v424
        %v1433 = vunpack.c.h.b16 %v424
        %v1434 = vunpack.c.l.b16 %v425
        %v1435 = vunpack.c.h.b16 %v425
        %v1436 = vunpack.c.l.b16 %v426
        %v1437 = vunpack.c.h.b16 %v426
        %v1438 = vunpack.c.l.b16 %v427
        %v1439 = vunpack.c.h.b16 %v427
        %v1440 = vunpack.c.l.b16 %v428
        %v1441 = vunpack.c.h.b16 %v428
        %v1442 = vunpack.c.l.b16 %v429
        %v1443 = vunpack.c.h.b16 %v429
        %v1444 = vunpack.c.l.b16 %v430
        %v1445 = vunpack.c.h.b16 %v430
        %v1446 = vunpack.c.l.b16 %v431
        %v1447 = vunpack.c.h.b16 %v431
        %v1448 = vunpack.c.l.b16 %v432
        %v1449 = vunpack.c.h.b16 %v432
        %v1450 = vunpack.c.l.b16 %v433
        %v1451 = vunpack.c.h.b16 %v433
        %v1452 = vunpack.c.l.b16 %v434
        %v1453 = vunpack.c.h.b16 %v434
        %v1454 = vunpack.c.l.b16 %v435
        %v1455 = vunpack.c.h.b16 %v435
        %v1456 = vunpack.c.l.b16 %v436
        %v1457 = vunpack.c.h.b16 %v436
        %v1458 = vunpack.c.l.b16 %v437
        %v1459 = vunpack.c.h.b16 %v437
        %v1460 = vunpack.c.l.b16 %v438
        %v1461 = vunpack.c.h.b16 %v438
        %v1462 = vunpack.c.l.b16 %v439
        %v1463 = vunpack.c.h.b16 %v439
        %v1464 = vunpack.c.l.b16 %v440
        %v1465 = vunpack.c.h.b16 %v440
        %v1466 = vunpack.c.l.b16 %v441
        %v1467 = vunpack.c.h.b16 %v441
        %v1468 = vunpack.c.l.b16 %v442
        %v1469 = vunpack.c.h.b16 %v442
        %v1470 = vunpack.c.l.b16 %v443
        %v1471 = vunpack.c.h.b16 %v443
        %v1472 = vunpack.c.l.b16 %v444
        %v1473 = vunpack.c.h.b16 %v444
        %v1474 = vunpack.c.l.b16 %v445
        %v1475 = vunpack.c.h.b16 %v445
        %v1476 = vunpack.c.l.b16 %v446
        %v1477 = vunpack.c.h.b16 %v446
        %v1478 = vunpack.c.l.b16 %v447
        %v1479 = vunpack.c.h.b16 %v447
        %v1480 = vunpack.c.l.b16 %v448
        %v1481 = vunpack.c.h.b16 %v448
        %v1482 = vunpack.c.l.b16 %v449
        %v1483 = vunpack.c.h.b16 %v449
        %v1484 = vunpack.c.l.b16 %v450
        %v1485 = vunpack.c.h.b16 %v450
        %v1486 = vunpack.c.l.b16 %v451
        %v1487 = vunpack.c.h.b16 %v451
        %v1488 = vunpack.c.l.b16 %v452
        %v1489 = vunpack.c.h.b16 %v452
        %v1490 = vunpack.c.l.b16 %v453
        %v1491 = vunpack.c.h.b16 %v453
        %v1492 = vunpack.c.l.b16 %v454
        %v1493 = vunpack.c.h.b16 %v454
        %v1494 = vunpack.c.l.b16 %v455
        %v1495 = vunpack.c.h.b16 %v455
        %v1496 = vunpack.c.l.b16 %v456
        %v1497 = vunpack.c.h.b16 %v456
        %v1498 = vunpack.c.l.b16 %v457
        %v1499 = vunpack.c.h.b16 %v457
        %v1500 = vunpack.c.l.b16 %v458
        %v1501 = vunpack.c.h.b16 %v458
        %v1502 = vunpack.c.l.b16 %v459
        %v1503 = vunpack.c.h.b16 %v459
        %v1504 = vunpack.c.l.b16 %v460
        %v1505 = vunpack.c.h.b16 %v460
        %v1506 = vunpack.c.l.b16 %v461
        %v1507 = vunpack.c.h.b16 %v461
        %v1508 = vunpack.c.l.b16 %v462
        %v1509 = vunpack.c.h.b16 %v462
        %v1510 = vunpack.c.l.b16 %v463
        %v1511 = vunpack.c.h.b16 %v463
        %v1512 = vunpack.c.l.b16 %v464
        %v1513 = vunpack.c.h.b16 %v464
        %v1514 = vunpack.c.l.b16 %v465
        %v1515 = vunpack.c.h.b16 %v465
        %v1516 = vunpack.c.l.b16 %v466
        %v1517 = vunpack.c.h.b16 %v466
        %v1518 = vunpack.c.l.b16 %v467
        %v1519 = vunpack.c.h.b16 %v467
        %v1520 = vunpack.c.l.b16 %v468
        %v1521 = vunpack.c.h.b16 %v468
        %v1522 = vunpack.c.l.b16 %v469
        %v1523 = vunpack.c.h.b16 %v469
        %v1524 = vunpack.c.l.b16 %v470
        %v1525 = vunpack.c.h.b16 %v470
        %v1526 = vunpack.c.l.b16 %v471
        %v1527 = vunpack.c.h.b16 %v471
        %v1528 = vunpack.c.l.b16 %v472
        %v1529 = vunpack.c.h.b16 %v472
        %v1530 = vunpack.c.l.b16 %v473
        %v1531 = vunpack.c.h.b16 %v473
        %v1532 = vunpack.c.l.b16 %v474
        %v1533 = vunpack.c.h.b16 %v474
        %v1534 = vunpack.c.l.b16 %v475
        %v1535 = vunpack.c.h.b16 %v475
        %v1536 = vunpack.c.l.b16 %v476
        %v1537 = vunpack.c.h.b16 %v476
        %v1538 = vunpack.c.l.b16 %v477
        %v1539 = vunpack.c.h.b16 %v477
        %v1540 = vunpack.c.l.b16 %v478
        %v1541 = vunpack.c.h.b16 %v478
        %v1542 = vunpack.c.l.b16 %v479
        %v1543 = vunpack.c.h.b16 %v479
        %v1544 = vunpack.c.l.b16 %v480
        %v1545 = vunpack.c.h.b16 %v480
        %v1546 = vunpack.c.l.b16 %v481
        %v1547 = vunpack.c.h.b16 %v481
        %v1548 = vunpack.c.l.b16 %v482
        %v1549 = vunpack.c.h.b16 %v482
        %v1550 = vunpack.c.l.b16 %v483
        %v1551 = vunpack.c.h.b16 %v483
        %v1552 = vunpack.c.l.b16 %v484
        %v1553 = vunpack.c.h.b16 %v484
        %v1554 = vunpack.c.l.b16 %v485
        %v1555 = vunpack.c.h.b16 %v485
        %v1556 = vunpack.c.l.b16 %v486
        %v1557 = vunpack.c.h.b16 %v486
        %v1558 = vunpack.c.l.b16 %v487
        %v1559 = vunpack.c.h.b16 %v487
        %v1560 = vunpack.c.l.b16 %v488
        %v1561 = vunpack.c.h.b16 %v488
        %v1562 = vunpack.c.l.b16 %v489
        %v1563 = vunpack.c.h.b16 %v489
        %v1564 = vunpack.c.l.b16 %v490
        %v1565 = vunpack.c.h.b16 %v490
        %v1566 = vunpack.c.l.b16 %v491
        %v1567 = vunpack.c.h.b16 %v491
        %v1568 = vunpack.c.l.b16 %v492
        %v1569 = vunpack.c.h.b16 %v492
        %v1570 = vunpack.c.l.b16 %v493
        %v1571 = vunpack.c.h.b16 %v493
        %v1572 = vunpack.c.l.b16 %v494
        %v1573 = vunpack.c.h.b16 %v494
        %v1574 = vunpack.c.l.b16 %v495
        %v1575 = vunpack.c.h.b16 %v495
        %v1576 = vunpack.c.l.b16 %v496
        %v1577 = vunpack.c.h.b16 %v496
        %v1578 = vunpack.c.l.b16 %v497
        %v1579 = vunpack.c.h.b16 %v497
        %v1580 = vunpack.c.l.b16 %v498
        %v1581 = vunpack.c.h.b16 %v498
        %v1582 = vunpack.c.l.b16 %v499
        %v1583 = vunpack.c.h.b16 %v499
        %v1584 = vunpack.c.l.b16 %v500
        %v1585 = vunpack.c.h.b16 %v500
        %v1586 = vunpack.c.l.b16 %v501
        %v1587 = vunpack.c.h.b16 %v501
        %v1588 = vunpack.c.l.b16 %v502
        %v1589 = vunpack.c.h.b16 %v502
        %v1590 = vunpack.c.l.b16 %v503
        %v1591 = vunpack.c.h.b16 %v503
        %v1592 = vunpack.c.l.b16 %v504
        %v1593 = vunpack.c.h.b16 %v504
        %v1594 = vunpack.c.l.b16 %v505
        %v1595 = vunpack.c.h.b16 %v505
        %v1596 = vunpack.c.l.b16 %v506
        %v1597 = vunpack.c.h.b16 %v506
        %v1598 = vunpack.c.l.b16 %v507
        %v1599 = vunpack.c.h.b16 %v507
        %v1600 = vunpack.c.l.b16 %v508
        %v1601 = vunpack.c.h.b16 %v508
        %v1602 = vunpack.c.l.b16 %v509
        %v1603 = vunpack.c.h.b16 %v509
        %v1604 = vunpack.c.l.b16 %v510
        %v1605 = vunpack.c.h.b16 %v510
        %v1606 = vunpack.c.l.b16 %v511
        %v1607 = vunpack.c.h.b16 %v511
        %v1608 = vunpack.c.l.b16 %v512
        %v1609 = vunpack.c.h.b16 %v512
        %v1610 = vunpack.c.l.b16 %v513
        %v1611 = vunpack.c.h.b16 %v513
        %v1612 = vunpack.c.l.b16 %v514
        %v1613 = vunpack.c.h.b16 %v514
        %v1614 = vunpack.c.l.b16 %v515
        %v1615 = vunpack.c.h.b16 %v515
        %v1616 = vunpack.c.l.b16 %v516
        %v1617 = vunpack.c.h.b16 %v516
        %v1618 = vunpack.c.l.b16 %v517
        %v1619 = vunpack.c.h.b16 %v517
        %v1620 = vunpack.c.l.b16 %v518
        %v1621 = vunpack.c.h.b16 %v518
        %v1622 = vunpack.c.l.b16 %v519
        %v1623 = vunpack.c.h.b16 %v519
        %v1624 = vunpack.c.l.b16 %v520
        %v1625 = vunpack.c.h.b16 %v520
        %v1626 = vunpack.c.l.b16 %v521
        %v1627 = vunpack.c.h.b16 %v521
        %v1628 = vunpack.c.l.b16 %v522
        %v1629 = vunpack.c.h.b16 %v522
        %v1630 = vunpack.c.l.b16 %v523
        %v1631 = vunpack.c.h.b16 %v523
        %v1632 = vunpack.c.l.b16 %v524
        %v1633 = vunpack.c.h.b16 %v524
        %v1634 = vunpack.c.l.b16 %v525
        %v1635 = vunpack.c.h.b16 %v525
        %v1636 = vunpack.c.l.b16 %v526
        %v1637 = vunpack.c.h.b16 %v526
        %v1638 = vunpack.c.l.b16 %v527
        %v1639 = vunpack.c.h.b16 %v527
        %v1640 = vunpack.c.l.b16 %v528
        %v1641 = vunpack.c.h.b16 %v528
        %v1642 = vunpack.c.l.b16 %v529
        %v1643 = vunpack.c.h.b16 %v529
        %v1644 = vunpack.c.l.b16 %v530
        %v1645 = vunpack.c.h.b16 %v530
        %v1646 = vunpack.c.l.b16 %v531
        %v1647 = vunpack.c.h.b16 %v531
        %v1648 = vunpack.c.l.b16 %v532
        %v1649 = vunpack.c.h.b16 %v532
        %v1650 = vunpack.c.l.b16 %v533
        %v1651 = vunpack.c.h.b16 %v533
        %v1652 = vunpack.c.l.b16 %v534
        %v1653 = vunpack.c.h.b16 %v534
        %v1654 = vunpack.c.l.b16 %v535
        %v1655 = vunpack.c.h.b16 %v535
        %v1656 = vunpack.c.l.b16 %v536
        %v1657 = vunpack.c.h.b16 %v536
        %v1658 = vunpack.c.l.b16 %v537
        %v1659 = vunpack.c.h.b16 %v537
        %v1660 = vunpack.c.l.b16 %v538
        %v1661 = vunpack.c.h.b16 %v538
        %v1662 = vunpack.c.l.b16 %v539
        %v1663 = vunpack.c.h.b16 %v539
        %v1664 = vunpack.c.l.b16 %v540
        %v1665 = vunpack.c.h.b16 %v540
        %v1666 = vunpack.c.l.b16 %v541
        %v1667 = vunpack.c.h.b16 %v541
        %v1668 = vunpack.c.l.b16 %v542
        %v1669 = vunpack.c.h.b16 %v542
        %v1670 = vunpack.c.l.b16 %v543
        %v1671 = vunpack.c.h.b16 %v543
        %v1672 = vunpack.c.l.b16 %v544
        %v1673 = vunpack.c.h.b16 %v544
        %v1674 = vunpack.c.l.b16 %v545
        %v1675 = vunpack.c.h.b16 %v545
        %v1676 = vunpack.c.l.b16 %v546
        %v1677 = vunpack.c.h.b16 %v546
        %v1678 = vunpack.c.l.b16 %v547
        %v1679 = vunpack.c.h.b16 %v547
        %v1680 = vunpack.c.l.b16 %v548
        %v1681 = vunpack.c.h.b16 %v548
        %v1682 = vunpack.c.l.b16 %v549
        %v1683 = vunpack.c.h.b16 %v549
        %v1684 = vunpack.c.l.b16 %v550
        %v1685 = vunpack.c.h.b16 %v550
        %v1686 = vunpack.c.l.b16 %v551
        %v1687 = vunpack.c.h.b16 %v551
        %v1688 = vunpack.c.l.b16 %v552
        %v1689 = vunpack.c.h.b16 %v552
        %v1690 = vunpack.c.l.b16 %v553
        %v1691 = vunpack.c.h.b16 %v553
        %v1692 = vunpack.c.l.b16 %v554
        %v1693 = vunpack.c.h.b16 %v554
        %v1694 = vunpack.c.l.b16 %v555
        %v1695 = vunpack.c.h.b16 %v555
        %v1696 = vunpack.c.l.b16 %v556
        %v1697 = vunpack.c.h.b16 %v556
        %v1698 = vunpack.c.l.b16 %v557
        %v1699 = vunpack.c.h.b16 %v557
        %v1700 = vunpack.c.l.b16 %v558
        %v1701 = vunpack.c.h.b16 %v558
        %v1702 = vunpack.c.l.b16 %v559
        %v1703 = vunpack.c.h.b16 %v559
        %v1704 = vunpack.c.l.b16 %v560
        %v1705 = vunpack.c.h.b16 %v560
        %v1706 = vunpack.c.l.b16 %v561
        %v1707 = vunpack.c.h.b16 %v561
        %v1708 = vunpack.c.l.b16 %v562
        %v1709 = vunpack.c.h.b16 %v562
        %v1710 = vunpack.c.l.b16 %v563
        %v1711 = vunpack.c.h.b16 %v563
        %v1712 = vunpack.c.l.b16 %v564
        %v1713 = vunpack.c.h.b16 %v564
        %v1714 = vunpack.c.l.b16 %v565
        %v1715 = vunpack.c.h.b16 %v565
        %v1716 = vunpack.c.l.b16 %v566
        %v1717 = vunpack.c.h.b16 %v566
        %v1718 = vunpack.c.l.b16 %v567
        %v1719 = vunpack.c.h.b16 %v567
        %v1720 = vunpack.c.l.b16 %v568
        %v1721 = vunpack.c.h.b16 %v568
        %v1722 = vunpack.c.l.b16 %v569
        %v1723 = vunpack.c.h.b16 %v569
        %v1724 = vunpack.c.l.b16 %v570
        %v1725 = vunpack.c.h.b16 %v570
        %v1726 = vunpack.c.l.b16 %v571
        %v1727 = vunpack.c.h.b16 %v571
        %v1728 = vunpack.c.l.b16 %v572
        %v1729 = vunpack.c.h.b16 %v572
        %v1730 = vunpack.c.l.b16 %v573
        %v1731 = vunpack.c.h.b16 %v573
        %v1732 = vunpack.c.l.b16 %v574
        %v1733 = vunpack.c.h.b16 %v574
        %v1734 = vunpack.c.l.b16 %v575
        %v1735 = vunpack.c.h.b16 %v575
        %v1736 = vunpack.c.l.b16 %v576
        %v1737 = vunpack.c.h.b16 %v576
        %v1738 = vunpack.c.l.b16 %v577
        %v1739 = vunpack.c.h.b16 %v577
        %v1740 = vunpack.c.l.b16 %v578
        %v1741 = vunpack.c.h.b16 %v578
        %v1742 = vunpack.c.l.b16 %v579
        %v1743 = vunpack.c.h.b16 %v579
        %v1744 = vunpack.c.l.b16 %v580
        %v1745 = vunpack.c.h.b16 %v580
        %v1746 = vunpack.c.l.b16 %v581
        %v1747 = vunpack.c.h.b16 %v581
        %v1748 = vunpack.c.l.b16 %v582
        %v1749 = vunpack.c.h.b16 %v582
        %v1750 = vunpack.c.l.b16 %v583
        %v1751 = vunpack.c.h.b16 %v583
        %v1752 = vunpack.c.l.b16 %v584
        %v1753 = vunpack.c.h.b16 %v584
        %v1754 = vunpack.c.l.b16 %v585
        %v1755 = vunpack.c.h.b16 %v585
        %v1756 = vunpack.c.l.b16 %v586
        %v1757 = vunpack.c.h.b16 %v586
        %v1758 = vunpack.c.l.b16 %v587
        %v1759 = vunpack.c.h.b16 %v587
        %v1760 = vunpack.c.l.b16 %v588
        %v1761 = vunpack.c.h.b16 %v588
        %v1762 = vunpack.c.l.b16 %v589
        %v1763 = vunpack.c.h.b16 %v589
        %v1764 = vunpack.c.l.b16 %v590
        %v1765 = vunpack.c.h.b16 %v590
        %v1766 = vunpack.c.l.b16 %v591
        %v1767 = vunpack.c.h.b16 %v591
        %v1768 = vunpack.c.l.b16 %v592
        %v1769 = vunpack.c.h.b16 %v592
        %v1770 = vunpack.c.l.b16 %v593
        %v1771 = vunpack.c.h.b16 %v593
        %v1772 = vunpack.c.l.b16 %v594
        %v1773 = vunpack.c.h.b16 %v594
        %v1774 = vunpack.c.l.b16 %v595
        %v1775 = vunpack.c.h.b16 %v595
        %v1776 = vunpack.c.l.b16 %v596
        %v1777 = vunpack.c.h.b16 %v596
        %v1778 = vunpack.c.l.b16 %v597
        %v1779 = vunpack.c.h.b16 %v597
        %v1780 = vunpack.c.l.b16 %v598
        %v1781 = vunpack.c.h.b16 %v598
        %v1782 = vunpack.c.l.b16 %v599
        %v1783 = vunpack.c.h.b16 %v599
        %v1784 = vunpack.c.l.b16 %v600
        %v1785 = vunpack.c.h.b16 %v600
        %v1786 = vunpack.c.l.b16 %v601
        %v1787 = vunpack.c.h.b16 %v601
        %v1788 = vunpack.c.l.b16 %v602
        %v1789 = vunpack.c.h.b16 %v602
        %v1790 = vunpack.c.l.b16 %v603
        %v1791 = vunpack.c.h.b16 %v603
        %v1792 = vunpack.c.l.b16 %v604
        %v1793 = vunpack.c.h.b16 %v604
        %v1794 = vunpack.c.l.b16 %v605
        %v1795 = vunpack.c.h.b16 %v605
        %v1796 = vpack.c.b16 %v1146, %v1136
        %v1797 = vpack.c.b16 %v1147, %v1137
        %v1798 = vpack.c.b16 %v1148, %v1138
        %v1799 = vpack.c.b16 %v1149, %v1139
        %v1800 = vpack.c.b16 %v1150, %v1140
        %v1801 = vpack.c.b16 %v1151, %v1141
        %v1802 = vpack.c.b16 %v1152, %v1142
        %v1803 = vpack.c.b16 %v1153, %v1143
        %v1804 = vpack.c.b16 %v1154, %v1144
        %v1805 = vpack.c.b16 %v1155, %v1145
        %v1806 = vpack.c.b16 %v1166, %v1156
        %v1807 = vpack.c.b16 %v1167, %v1157
        %v1808 = vpack.c.b16 %v1168, %v1158
        %v1809 = vpack.c.b16 %v1169, %v1159
        %v1810 = vpack.c.b16 %v1170, %v1160
        %v1811 = vpack.c.b16 %v1171, %v1161
        %v1812 = vpack.c.b16 %v1172, %v1162
        %v1813 = vpack.c.b16 %v1173, %v1163
        %v1814 = vpack.c.b16 %v1174, %v1164
        %v1815 = vpack.c.b16 %v1175, %v1165
        %v1816 = vpack.c.b16 %v1186, %v1176
        %v1817 = vpack.c.b16 %v1187, %v1177
        %v1818 = vpack.c.b16 %v1188, %v1178
        %v1819 = vpack.c.b16 %v1189, %v1179
        %v1820 = vpack.c.b16 %v1190, %v1180
        %v1821 = vpack.c.b16 %v1191, %v1181
        %v1822 = vpack.c.b16 %v1192, %v1182
        %v1823 = vpack.c.b16 %v1193, %v1183
        %v1824 = vpack.c.b16 %v1194, %v1184
        %v1825 = vpack.c.b16 %v1195, %v1185
        %v1826 = vpack.c.b16 %v1206, %v1196
        %v1827 = vpack.c.b16 %v1207, %v1197
        %v1828 = vpack.c.b16 %v1208, %v1198
        %v1829 = vpack.c.b16 %v1209, %v1199
        %v1830 = vpack.c.b16 %v1210, %v1200
        %v1831 = vpack.c.b16 %v1211, %v1201
        %v1832 = vpack.c.b16 %v1212, %v1202
        %v1833 = vpack.c.b16 %v1213, %v1203
        %v1834 = vpack.c.b16 %v1214, %v1204
        %v1835 = vpack.c.b16 %v1215, %v1205
        %v1836 = vpack.c.b16 %v1226, %v1216
        %v1837 = vpack.c.b16 %v1227, %v1217
        %v1838 = vpack.c.b16 %v1228, %v1218
        %v1839 = vpack.c.b16 %v1229, %v1219
        %v1840 = vpack.c.b16 %v1230, %v1220
        %v1841 = vpack.c.b16 %v1231, %v1221
        %v1842 = vpack.c.b16 %v1232, %v1222
        %v1843 = vpack.c.b16 %v1233, %v1223
        %v1844 = vpack.c.b16 %v1234, %v1224
        %v1845 = vpack.c.b16 %v1235, %v1225
        %v1846 = vpack.c.b16 %v1246, %v1236
        %v1847 = vpack.c.b16 %v1247, %v1237
        %v1848 = vpack.c.b16 %v1248, %v1238
        %v1849 = vpack.c.b16 %v1249, %v1239
        %v1850 = vpack.c.b16 %v1250, %v1240
        %v1851 = vpack.c.b16 %v1251, %v1241
        %v1852 = vpack.c.b16 %v1252, %v1242
        %v1853 = vpack.c.b16 %v1253, %v1243
        %v1854 = vpack.c.b16 %v1254, %v1244
        %v1855 = vpack.c.b16 %v1255, %v1245
        %v1856 = vpack.c.b16 %v1266, %v1256
        %v1857 = vpack.c.b16 %v1267, %v1257
        %v1858 = vpack.c.b16 %v1268, %v1258
        %v1859 = vpack.c.b16 %v1269, %v1259
        %v1860 = vpack.c.b16 %v1270, %v1260
        %v1861 = vpack.c.b16 %v1271, %v1261
        %v1862 = vpack.c.b16 %v1272, %v1262
        %v1863 = vpack.c.b16 %v1273, %v1263
        %v1864 = vpack.c.b16 %v1274, %v1264
        %v1865 = vpack.c.b16 %v1275, %v1265
        %v1866 = vpack.c.b16 %v1286, %v1276
        %v1867 = vpack.c.b16 %v1287, %v1277
        %v1868 = vpack.c.b16 %v1288, %v1278
        %v1869 = vpack.c.b16 %v1289, %v1279
        %v1870 = vpack.c.b16 %v1290, %v1280
        %v1871 = vpack.c.b16 %v1291, %v1281
        %v1872 = vpack.c.b16 %v1292, %v1282
        %v1873 = vpack.c.b16 %v1293, %v1283
        %v1874 = vpack.c.b16 %v1294, %v1284
        %v1875 = vpack.c.b16 %v1295, %v1285
        %v1876 = vpack.c.b16 %v1306, %v1296
        %v1877 = vpack.c.b16 %v1307, %v1297
        %v1878 = vpack.c.b16 %v1308, %v1298
        %v1879 = vpack.c.b16 %v1309, %v1299
        %v1880 = vpack.c.b16 %v1310, %v1300
        %v1881 = vpack.c.b16 %v1311, %v1301
        %v1882 = vpack.c.b16 %v1312, %v1302
        %v1883 = vpack.c.b16 %v1313, %v1303
        %v1884 = vpack.c.b16 %v1314, %v1304
        %v1885 = vpack.c.b16 %v1315, %v1305
        %v1886 = vpack.c.b16 %v1326, %v1316
        %v1887 = vpack.c.b16 %v1327, %v1317
        %v1888 = vpack.c.b16 %v1328, %v1318
        %v1889 = vpack.c.b16 %v1329, %v1319
        %v1890 = vpack.c.b16 %v1330, %v1320
        %v1891 = vpack.c.b16 %v1331, %v1321
        %v1892 = vpack.c.b16 %v1332, %v1322
        %v1893 = vpack.c.b16 %v1333, %v1323
        %v1894 = vpack.c.b16 %v1334, %v1324
        %v1895 = vpack.c.b16 %v1335, %v1325
        %v1896 = vpack.c.b16 %v1346, %v1336
        %v1897 = vpack.c.b16 %v1347, %v1337
        %v1898 = vpack.c.b16 %v1348, %v1338
        %v1899 = vpack.c.b16 %v1349, %v1339
        %v1900 = vpack.c.b16 %v1350, %v1340
        %v1901 = vpack.c.b16 %v1351, %v1341
        %v1902 = vpack.c.b16 %v1352, %v1342
        %v1903 = vpack.c.b16 %v1353, %v1343
        %v1904 = vpack.c.b16 %v1354, %v1344
        %v1905 = vpack.c.b16 %v1355, %v1345
        %v1906 = vpack.c.b16 %v1366, %v1356
        %v1907 = vpack.c.b16 %v1367, %v1357
        %v1908 = vpack.c.b16 %v1368, %v1358
        %v1909 = vpack.c.b16 %v1369, %v1359
        %v1910 = vpack.c.b16 %v1370, %v1360
        %v1911 = vpack.c.b16 %v1371, %v1361
        %v1912 = vpack.c.b16 %v1372, %v1362
        %v1913 = vpack.c.b16 %v1373, %v1363
        %v1914 = vpack.c.b16 %v1374, %v1364
        %v1915 = vpack.c.b16 %v1375, %v1365
        %v1916 = vpack.c.b16 %v1386, %v1376
        %v1917 = vpack.c.b16 %v1387, %v1377
        %v1918 = vpack.c.b16 %v1388, %v1378
        %v1919 = vpack.c.b16 %v1389, %v1379
        %v1920 = vpack.c.b16 %v1390, %v1380
        %v1921 = vpack.c.b16 %v1391, %v1381
        %v1922 = vpack.c.b16 %v1392, %v1382
        %v1923 = vpack.c.b16 %v1393, %v1383
        %v1924 = vpack.c.b16 %v1394, %v1384
        %v1925 = vpack.c.b16 %v1395, %v1385
        %v1926 = vpack.c.b16 %v1406, %v1396
        %v1927 = vpack.c.b16 %v1407, %v1397
        %v1928 = vpack.c.b16 %v1408, %v1398
        %v1929 = vpack.c.b16 %v1409, %v1399
        %v1930 = vpack.c.b16 %v1410, %v1400
        %v1931 = vpack.c.b16 %v1411, %v1401
        %v1932 = vpack.c.b16 %v1412, %v1402
        %v1933 = vpack.c.b16 %v1413, %v1403
        %v1934 = vpack.c.b16 %v1414, %v1404
        %v1935 = vpack.c.b16 %v1415, %v1405
        %v1936 = vpack.c.b16 %v1426, %v1416
        %v1937 = vpack.c.b16 %v1427, %v1417
        %v1938 = vpack.c.b16 %v1428, %v1418
        %v1939 = vpack.c.b16 %v1429, %v1419
        %v1940 = vpack.c.b16 %v1430, %v1420
        %v1941 = vpack.c.b16 %v1431, %v1421
        %v1942 = vpack.c.b16 %v1432, %v1422
        %v1943 = vpack.c.b16 %v1433, %v1423
        %v1944 = vpack.c.b16 %v1434, %v1424
        %v1945 = vpack.c.b16 %v1435, %v1425
        %v1946 = vpack.c.b16 %v1446, %v1436
        %v1947 = vpack.c.b16 %v1447, %v1437
        %v1948 = vpack.c.b16 %v1448, %v1438
        %v1949 = vpack.c.b16 %v1449, %v1439
        %v1950 = vpack.c.b16 %v1450, %v1440
        %v1951 = vpack.c.b16 %v1451, %v1441
        %v1952 = vpack.c.b16 %v1452, %v1442
        %v1953 = vpack.c.b16 %v1453, %v1443
        %v1954 = vpack.c.b16 %v1454, %v1444
        %v1955 = vpack.c.b16 %v1455, %v1445
        %v1956 = vpack.c.b16 %v1466, %v1456
        %v1957 = vpack.c.b16 %v1467, %v1457
        %v1958 = vpack.c.b16 %v1468, %v1458
        %v1959 = vpack.c.b16 %v1469, %v1459
        %v1960 = vpack.c.b16 %v1470, %v1460
        %v1961 = vpack.c.b16 %v1471, %v1461
        %v1962 = vpack.c.b16 %v1472, %v1462
        %v1963 = vpack.c.b16 %v1473, %v1463
        %v1964 = vpack.c.b16 %v1474, %v1464
        %v1965 = vpack.c.b16 %v1475, %v1465
        %v1966 = vpack.c.b16 %v1486, %v1476
        %v1967 = vpack.c.b16 %v1487, %v1477
        %v1968 = vpack.c.b16 %v1488, %v1478
        %v1969 = vpack.c.b16 %v1489, %v1479
        %v1970 = vpack.c.b16 %v1490, %v1480
        %v1971 = vpack.c.b16 %v1491, %v1481
        %v1972 = vpack.c.b16 %v1492, %v1482
        %v1973 = vpack.c.b16 %v1493, %v1483
        %v1974 = vpack.c.b16 %v1494, %v1484
        %v1975 = vpack.c.b16 %v1495, %v1485
        %v1976 = vpack.c.b16 %v1506, %v1496
        %v1977 = vpack.c.b16 %v1507, %v1497
        %v1978 = vpack.c.b16 %v1508, %v1498
        %v1979 = vpack.c.b16 %v1509, %v1499
        %v1980 = vpack.c.b16 %v1510, %v1500
        %v1981 = vpack.c.b16 %v1511, %v1501
        %v1982 = vpack.c.b16 %v1512, %v1502
        %v1983 = vpack.c.b16 %v1513, %v1503
        %v1984 = vpack.c.b16 %v1514, %v1504
        %v1985 = vpack.c.b16 %v1515, %v1505
        %v1986 = vpack.c.b16 %v1526, %v1516
        %v1987 = vpack.c.b16 %v1527, %v1517
        %v1988 = vpack.c.b16 %v1528, %v1518
        %v1989 = vpack.c.b16 %v1529, %v1519
        %v1990 = vpack.c.b16 %v1530, %v1520
        %v1991 = vpack.c.b16 %v1531, %v1521
        %v1992 = vpack.c.b16 %v1532, %v1522
        %v1993 = vpack.c.b16 %v1533, %v1523
        %v1994 = vpack.c.b16 %v1534, %v1524
        %v1995 = vpack.c.b16 %v1535, %v1525
        %v1996 = vpack.c.b16 %v1546, %v1536
        %v1997 = vpack.c.b16 %v1547, %v1537
        %v1998 = vpack.c.b16 %v1548, %v1538
        %v1999 = vpack.c.b16 %v1549, %v1539
        %v2000 = vpack.c.b16 %v1550, %v1540
        %v2001 = vpack.c.b16 %v1551, %v1541
        %v2002 = vpack.c.b16 %v1552, %v1542
        %v2003 = vpack.c.b16 %v1553, %v1543
        %v2004 = vpack.c.b16 %v1554, %v1544
        %v2005 = vpack.c.b16 %v1555, %v1545
        %v2006 = vpack.c.b16 %v1566, %v1556
        %v2007 = vpack.c.b16 %v1567, %v1557
        %v2008 = vpack.c.b16 %v1568, %v1558
        %v2009 = vpack.c.b16 %v1569, %v1559
        %v2010 = vpack.c.b16 %v1570, %v1560
        %v2011 = vpack.c.b16 %v1571, %v1561
        %v2012 = vpack.c.b16 %v1572, %v1562
        %v2013 = vpack.c.b16 %v1573, %v1563
        %v2014 = vpack.c.b16 %v1574, %v1564
        %v2015 = vpack.c.b16 %v1575, %v1565
        %v2016 = vpack.c.b16 %v1586, %v1576
        %v2017 = vpack.c.b16 %v1587, %v1577
        %v2018 = vpack.c.b16 %v1588, %v1578
        %v2019 = vpack.c.b16 %v1589, %v1579
        %v2020 = vpack.c.b16 %v1590, %v1580
        %v2021 = vpack.c.b16 %v1591, %v1581
        %v2022 = vpack.c.b16 %v1592, %v1582
        %v2023 = vpack.c.b16 %v1593, %v1583
        %v2024 = vpack.c.b16 %v1594, %v1584
        %v2025 = vpack.c.b16 %v1595, %v1585
        %v2026 = vpack.c.b16 %v1606, %v1596
        %v2027 = vpack.c.b16 %v1607, %v1597
        %v2028 = vpack.c.b16 %v1608, %v1598
        %v2029 = vpack.c.b16 %v1609, %v1599
        %v2030 = vpack.c.b16 %v1610, %v1600
        %v2031 = vpack.c.b16 %v1611, %v1601
        %v2032 = vpack.c.b16 %v1612, %v1602
        %v2033 = vpack.c.b16 %v1613, %v1603
        %v2034 = vpack.c.b16 %v1614, %v1604
        %v2035 = vpack.c.b16 %v1615, %v1605
        %v2036 = vpack.c.b16 %v1626, %v1616
        %v2037 = vpack.c.b16 %v1627, %v1617
        %v2038 = vpack.c.b16 %v1628, %v1618
        %v2039 = vpack.c.b16 %v1629, %v1619
        %v2040 = vpack.c.b16 %v1630, %v1620
        %v2041 = vpack.c.b16 %v1631, %v1621
        %v2042 = vpack.c.b16 %v1632, %v1622
        %v2043 = vpack.c.b16 %v1633, %v1623
        %v2044 = vpack.c.b16 %v1634, %v1624
        %v2045 = vpack.c.b16 %v1635, %v1625
        %v2046 = vpack.c.b16 %v1646, %v1636
        %v2047 = vpack.c.b16 %v1647, %v1637
        %v2048 = vpack.c.b16 %v1648, %v1638
        %v2049 = vpack.c.b16 %v1649, %v1639
        %v2050 = vpack.c.b16 %v1650, %v1640
        %v2051 = vpack.c.b16 %v1651, %v1641
        %v2052 = vpack.c.b16 %v1652, %v1642
        %v2053 = vpack.c.b16 %v1653, %v1643
        %v2054 = vpack.c.b16 %v1654, %v1644
        %v2055 = vpack.c.b16 %v1655, %v1645
        %v2056 = vpack.c.b16 %v1666, %v1656
        %v2057 = vpack.c.b16 %v1667, %v1657
        %v2058 = vpack.c.b16 %v1668, %v1658
        %v2059 = vpack.c.b16 %v1669, %v1659
        %v2060 = vpack.c.b16 %v1670, %v1660
        %v2061 = vpack.c.b16 %v1671, %v1661
        %v2062 = vpack.c.b16 %v1672, %v1662
        %v2063 = vpack.c.b16 %v1673, %v1663
        %v2064 = vpack.c.b16 %v1674, %v1664
        %v2065 = vpack.c.b16 %v1675, %v1665
        %v2066 = vpack.c.b16 %v1686, %v1676
        %v2067 = vpack.c.b16 %v1687, %v1677
        %v2068 = vpack.c.b16 %v1688, %v1678
        %v2069 = vpack.c.b16 %v1689, %v1679
        %v2070 = vpack.c.b16 %v1690, %v1680
        %v2071 = vpack.c.b16 %v1691, %v1681
        %v2072 = vpack.c.b16 %v1692, %v1682
        %v2073 = vpack.c.b16 %v1693, %v1683
        %v2074 = vpack.c.b16 %v1694, %v1684
        %v2075 = vpack.c.b16 %v1695, %v1685
        %v2076 = vpack.c.b16 %v1706, %v1696
        %v2077 = vpack.c.b16 %v1707, %v1697
        %v2078 = vpack.c.b16 %v1708, %v1698
        %v2079 = vpack.c.b16 %v1709, %v1699
        %v2080 = vpack.c.b16 %v1710, %v1700
        %v2081 = vpack.c.b16 %v1711, %v1701
        %v2082 = vpack.c.b16 %v1712, %v1702
        %v2083 = vpack.c.b16 %v1713, %v1703
        %v2084 = vpack.c.b16 %v1714, %v1704
        %v2085 = vpack.c.b16 %v1715, %v1705
        %v2086 = vpack.c.b16 %v1726, %v1716
        %v2087 = vpack.c.b16 %v1727, %v1717
        %v2088 = vpack.c.b16 %v1728, %v1718
        %v2089 = vpack.c.b16 %v1729, %v1719
        %v2090 = vpack.c.b16 %v1730, %v1720
        %v2091 = vpack.c.b16 %v1731, %v1721
        %v2092 = vpack.c.b16 %v1732, %v1722
        %v2093 = vpack.c.b16 %v1733, %v1723
        %v2094 = vpack.c.b16 %v1734, %v1724
        %v2095 = vpack.c.b16 %v1735, %v1725
        %v2096 = vpack.c.b16 %v1746, %v1736
        %v2097 = vpack.c.b16 %v1747, %v1737
        %v2098 = vpack.c.b16 %v1748, %v1738
        %v2099 = vpack.c.b16 %v1749, %v1739
        %v2100 = vpack.c.b16 %v1750, %v1740
        %v2101 = vpack.c.b16 %v1751, %v1741
        %v2102 = vpack.c.b16 %v1752, %v1742
        %v2103 = vpack.c.b16 %v1753, %v1743
        %v2104 = vpack.c.b16 %v1754, %v1744
        %v2105 = vpack.c.b16 %v1755, %v1745
        %v2106 = vpack.c.b16 %v1766, %v1756
        %v2107 = vpack.c.b16 %v1767, %v1757
        %v2108 = vpack.c.b16 %v1768, %v1758
        %v2109 = vpack.c.b16 %v1769, %v1759
        %v2110 = vpack.c.b16 %v1770, %v1760
        %v2111 = vpack.c.b16 %v1771, %v1761
        %v2112 = vpack.c.b16 %v1772, %v1762
        %v2113 = vpack.c.b16 %v1773, %v1763
        %v2114 = vpack.c.b16 %v1774, %v1764
        %v2115 = vpack.c.b16 %v1775, %v1765
        %v2116 = vpack.c.b16 %v1786, %v1776
        %v2117 = vpack.c.b16 %v1787, %v1777
        %v2118 = vpack.c.b16 %v1788, %v1778
        %v2119 = vpack.c.b16 %v1789, %v1779
        %v2120 = vpack.c.b16 %v1790, %v1780
        %v2121 = vpack.c.b16 %v1791, %v1781
        %v2122 = vpack.c.b16 %v1792, %v1782
        %v2123 = vpack.c.b16 %v1793, %v1783
        %v2124 = vpack.c.b16 %v1794, %v1784
        %v2125 = vpack.c.b16 %v1795, %v1785
        %vm2446 = vcmask 105472
        %v2448 = vsel %vm2446, %v738, 0
        %v2451 = vsel %vm2446, %v743, 0
        %v2454 = vsel %vm2446, %v748, 0
        %v2457 = vsel %vm2446, %v753, 0
        %v2460 = vsel %vm2446, %v758, 0
        %v2463 = vsel %vm2446, %v763, 0
        %v2466 = vsel %vm2446, %v768, 0
        %v2469 = vsel %vm2446, %v773, 0
        %vm2471 = vcmask 1045504
        %vm2472 = vcmask 1046528
        %v2473 = vsel %vm2471, 4294967295, 65535
        %v2474 = vsel %vm2472, %v2473, 0
        %v2476 = vand.u32 %v2116, %v2474
        %v2479 = vand.u32 %v2117, %v2474
        %v2482 = vand.u32 %v2118, %v2474
        %v2485 = vand.u32 %v2119, %v2474
        %v2488 = vand.u32 %v2120, %v2474
        %v2491 = vand.u32 %v2121, %v2474
        %v2494 = vand.u32 %v2122, %v2474
        %v2497 = vand.u32 %v2123, %v2474
        %v2500 = vand.u32 %v2124, %v2474
        %v2503 = vand.u32 %v2125, %v2474
        %2505 = vmatprep.subr.bf16.mxu0 %v1797
        %2506 = vmatpush1.bf16.msra.mxu0 %v1796
        %2507 = vmatprep.subr.bf16.mxu0 %v1807
        %2508 = vmatpush1.bf16.msra.mxu0 %v1806
        %2509 = vmatprep.subr.bf16.mxu0 %v1817
        %2510 = vmatpush1.bf16.msra.mxu0 %v1816
        %2511 = vmatprep.subr.bf16.mxu0 %v1827
        %2512 = vmatpush1.bf16.msra.mxu0 %v1826
        %2513 = vmatprep.subr.bf16.mxu0 %v1837
        %2514 = vmatpush1.bf16.msra.mxu0 %v1836
        %2515 = vmatprep.subr.bf16.mxu0 %v1847
        %2516 = vmatpush1.bf16.msra.mxu0 %v1846
        %2517 = vmatprep.subr.bf16.mxu0 %v1857
        %2518 = vmatpush1.bf16.msra.mxu0 %v1856
        %2519 = vmatprep.subr.bf16.mxu0 %v1867
        %2520 = vmatpush1.bf16.msra.mxu0 %v1866
        %2521 = vmatprep.subr.bf16.mxu0 %v1877
        %2522 = vmatpush1.bf16.msra.mxu0 %v1876
        %2523 = vmatprep.subr.bf16.mxu0 %v1887
        %2524 = vmatpush1.bf16.msra.mxu0 %v1886
        %2525 = vmatprep.subr.bf16.mxu0 %v1897
        %2526 = vmatpush1.bf16.msra.mxu0 %v1896
        %2527 = vmatprep.subr.bf16.mxu0 %v1907
        %2528 = vmatpush1.bf16.msra.mxu0 %v1906
        %2529 = vmatprep.subr.bf16.mxu0 %v1917
        %2530 = vmatpush1.bf16.msra.mxu0 %v1916
        %2531 = vmatprep.subr.bf16.mxu0 %v1927
        %2532 = vmatpush1.bf16.msra.mxu0 %v1926
        %2533 = vmatprep.subr.bf16.mxu0 %v1937
        %2534 = vmatpush1.bf16.msra.mxu0 %v1936
        %2535 = vmatprep.subr.bf16.mxu0 %v1947
        %2536 = vmatpush1.bf16.msra.mxu0 %v1946
        %2537 = vmatprep.mubr.bf16.mxu0 %v735
        %2538 = vmatmul.mubr.bf16.gmra.mrb[0].mxu0 %v734
        %v2539 = vpop.f32.mrb[0].mxu0
        %v2540 = vadd.f32 0.0, %v2539
        %v2541 = vpop.f32.mrb[0].mxu0
        %v2542 = vadd.f32 0.0, %v2541
        %v2543 = vpop.f32.mrb[0].mxu0
        %v2544 = vadd.f32 0.0, %v2543
        %v2545 = vpop.f32.mrb[0].mxu0
        %v2546 = vadd.f32 0.0, %v2545
        %2547 = vmatprep.mubr.bf16.mxu0 %v740
        %2548 = vmatmul.mubr.bf16.gmra.mrb[0].mxu0 %v739
        %v2549 = vpop.f32.mrb[0].mxu0
        %v2550 = vadd.f32 0.0, %v2549
        %v2551 = vpop.f32.mrb[0].mxu0
        %v2552 = vadd.f32 0.0, %v2551
        %v2553 = vpop.f32.mrb[0].mxu0
        %v2554 = vadd.f32 0.0, %v2553
        %v2555 = vpop.f32.mrb[0].mxu0
        %v2556 = vadd.f32 0.0, %v2555
        %2557 = vmatprep.mubr.bf16.mxu0 %v745
        %2558 = vmatmul.mubr.bf16.gmra.mrb[0].mxu0 %v744
        %v2559 = vpop.f32.mrb[0].mxu0
        %v2560 = vadd.f32 0.0, %v2559
        %v2561 = vpop.f32.mrb[0].mxu0
        %v2562 = vadd.f32 0.0, %v2561
        %v2563 = vpop.f32.mrb[0].mxu0
        %v2564 = vadd.f32 0.0, %v2563
        %v2565 = vpop.f32.mrb[0].mxu0
        %v2566 = vadd.f32 0.0, %v2565
        %2567 = vmatprep.mubr.bf16.mxu0 %v750
        %2568 = vmatmul.mubr.bf16.gmra.mrb[0].mxu0 %v749
        %v2569 = vpop.f32.mrb[0].mxu0
        %v2570 = vadd.f32 0.0, %v2569
        %v2571 = vpop.f32.mrb[0].mxu0
        %v2572 = vadd.f32 0.0, %v2571
        %v2573 = vpop.f32.mrb[0].mxu0
        %v2574 = vadd.f32 0.0, %v2573
        %v2575 = vpop.f32.mrb[0].mxu0
        %v2576 = vadd.f32 0.0, %v2575
        %2577 = vmatprep.mubr.bf16.mxu0 %v755
        %2578 = vmatmul.mubr.bf16.gmra.mrb[0].mxu0 %v754
        %v2579 = vpop.f32.mrb[0].mxu0
        %v2580 = vadd.f32 0.0, %v2579
        %v2581 = vpop.f32.mrb[0].mxu0
        %v2582 = vadd.f32 0.0, %v2581
        %v2583 = vpop.f32.mrb[0].mxu0
        %v2584 = vadd.f32 0.0, %v2583
        %v2585 = vpop.f32.mrb[0].mxu0
        %v2586 = vadd.f32 0.0, %v2585
        %2587 = vmatprep.mubr.bf16.mxu0 %v760
        %2588 = vmatmul.mubr.bf16.gmra.mrb[0].mxu0 %v759
        %v2589 = vpop.f32.mrb[0].mxu0
        %v2590 = vadd.f32 0.0, %v2589
        %v2591 = vpop.f32.mrb[0].mxu0
        %v2592 = vadd.f32 0.0, %v2591
        %v2593 = vpop.f32.mrb[0].mxu0
        %v2594 = vadd.f32 0.0, %v2593
        %v2595 = vpop.f32.mrb[0].mxu0
        %v2596 = vadd.f32 0.0, %v2595
        %2597 = vmatprep.mubr.bf16.mxu0 %v765
        %2598 = vmatmul.mubr.bf16.gmra.mrb[0].mxu0 %v764
        %v2599 = vpop.f32.mrb[0].mxu0
        %v2600 = vadd.f32 0.0, %v2599
        %v2601 = vpop.f32.mrb[0].mxu0
        %v2602 = vadd.f32 0.0, %v2601
        %v2603 = vpop.f32.mrb[0].mxu0
        %v2604 = vadd.f32 0.0, %v2603
        %v2605 = vpop.f32.mrb[0].mxu0
        %v2606 = vadd.f32 0.0, %v2605
        %2607 = vmatprep.mubr.bf16.mxu0 %v770
        %2608 = vmatmul.mubr.bf16.gmra.mrb[0].mxu0 %v769
        %v2609 = vpop.f32.mrb[0].mxu0
        %v2610 = vadd.f32 0.0, %v2609
        %v2611 = vpop.f32.mrb[0].mxu0
        %v2612 = vadd.f32 0.0, %v2611
        %v2613 = vpop.f32.mrb[0].mxu0
        %v2614 = vadd.f32 0.0, %v2613
        %v2615 = vpop.f32.mrb[0].mxu0
        %v2616 = vadd.f32 0.0, %v2615
        %2617 = vdwg.mxu0
        %2618 = vmatprep.subr.bf16.mxu0 %v1957
        %2619 = vmatpush1.bf16.msra.mxu0 %v1956
        %2620 = vmatprep.subr.bf16.mxu0 %v1967
        %2621 = vmatpush1.bf16.msra.mxu0 %v1966
        %2622 = vmatprep.subr.bf16.mxu0 %v1977
        %2623 = vmatpush1.bf16.msra.mxu0 %v1976
        %2624 = vmatprep.subr.bf16.mxu0 %v1987
        %2625 = vmatpush1.bf16.msra.mxu0 %v1986
        %2626 = vmatprep.subr.bf16.mxu0 %v1997
        %2627 = vmatpush1.bf16.msra.mxu0 %v1996
        %2628 = vmatprep.subr.bf16.mxu0 %v2007
        %2629 = vmatpush1.bf16.msra.mxu0 %v2006
        %2630 = vmatprep.subr.bf16.mxu0 %v2017
        %2631 = vmatpush1.bf16.msra.mxu0 %v2016
        %2632 = vmatprep.subr.bf16.mxu0 %v2027
        %2633 = vmatpush1.bf16.msra.mxu0 %v2026
        %2634 = vmatprep.subr.bf16.mxu0 %v2037
        %2635 = vmatpush1.bf16.msra.mxu0 %v2036
        %2636 = vmatprep.subr.bf16.mxu0 %v2047
        %2637 = vmatpush1.bf16.msra.mxu0 %v2046
        %2638 = vmatprep.subr.bf16.mxu0 %v2057
        %2639 = vmatpush1.bf16.msra.mxu0 %v2056
        %2640 = vmatprep.subr.bf16.mxu0 %v2067
        %2641 = vmatpush1.bf16.msra.mxu0 %v2066
        %2642 = vmatprep.subr.bf16.mxu0 %v2077
        %2643 = vmatpush1.bf16.msra.mxu0 %v2076
        %2644 = vmatprep.subr.bf16.mxu0 %v2087
        %2645 = vmatpush1.bf16.msra.mxu0 %v2086
        %2646 = vmatprep.subr.bf16.mxu0 %v2097
        %2647 = vmatpush1.bf16.msra.mxu0 %v2096
        %2648 = vmatprep.subr.bf16.mxu0 %v2107
        %2649 = vmatpush1.bf16.msra.mxu0 %v2106
        %2650 = vmatprep.mubr.bf16.mxu0 %v737
        %2651 = vmatmul.mubr.bf16.gmra.mrb[0].mxu0 %v736
        %v2652 = vpop.f32.mrb[0].mxu0
        %v2653 = vadd.f32 %v2540, %v2652
        %v2654 = vpop.f32.mrb[0].mxu0
        %v2655 = vadd.f32 %v2542, %v2654
        %v2656 = vpop.f32.mrb[0].mxu0
        %v2657 = vadd.f32 %v2544, %v2656
        %v2658 = vpop.f32.mrb[0].mxu0
        %v2659 = vadd.f32 %v2546, %v2658
        %2660 = vmatprep.mubr.bf16.mxu0 %v742
        %2661 = vmatmul.mubr.bf16.gmra.mrb[0].mxu0 %v741
        %v2662 = vpop.f32.mrb[0].mxu0
        %v2663 = vadd.f32 %v2550, %v2662
        %v2664 = vpop.f32.mrb[0].mxu0
        %v2665 = vadd.f32 %v2552, %v2664
        %v2666 = vpop.f32.mrb[0].mxu0
        %v2667 = vadd.f32 %v2554, %v2666
        %v2668 = vpop.f32.mrb[0].mxu0
        %v2669 = vadd.f32 %v2556, %v2668
        %2670 = vmatprep.mubr.bf16.mxu0 %v747
        %2671 = vmatmul.mubr.bf16.gmra.mrb[0].mxu0 %v746
        %v2672 = vpop.f32.mrb[0].mxu0
        %v2673 = vadd.f32 %v2560, %v2672
        %v2674 = vpop.f32.mrb[0].mxu0
        %v2675 = vadd.f32 %v2562, %v2674
        %v2676 = vpop.f32.mrb[0].mxu0
        %v2677 = vadd.f32 %v2564, %v2676
        %v2678 = vpop.f32.mrb[0].mxu0
        %v2679 = vadd.f32 %v2566, %v2678
        %2680 = vmatprep.mubr.bf16.mxu0 %v752
        %2681 = vmatmul.mubr.bf16.gmra.mrb[0].mxu0 %v751
        %v2682 = vpop.f32.mrb[0].mxu0
        %v2683 = vadd.f32 %v2570, %v2682
        %v2684 = vpop.f32.mrb[0].mxu0
        %v2685 = vadd.f32 %v2572, %v2684
        %v2686 = vpop.f32.mrb[0].mxu0
        %v2687 = vadd.f32 %v2574, %v2686
        %v2688 = vpop.f32.mrb[0].mxu0
        %v2689 = vadd.f32 %v2576, %v2688
        %2690 = vmatprep.mubr.bf16.mxu0 %v757
        %2691 = vmatmul.mubr.bf16.gmra.mrb[0].mxu0 %v756
        %v2692 = vpop.f32.mrb[0].mxu0
        %v2693 = vadd.f32 %v2580, %v2692
        %v2694 = vpop.f32.mrb[0].mxu0
        %v2695 = vadd.f32 %v2582, %v2694
        %v2696 = vpop.f32.mrb[0].mxu0
        %v2697 = vadd.f32 %v2584, %v2696
        %v2698 = vpop.f32.mrb[0].mxu0
        %v2699 = vadd.f32 %v2586, %v2698
        %2700 = vmatprep.mubr.bf16.mxu0 %v762
        %2701 = vmatmul.mubr.bf16.gmra.mrb[0].mxu0 %v761
        %v2702 = vpop.f32.mrb[0].mxu0
        %v2703 = vadd.f32 %v2590, %v2702
        %v2704 = vpop.f32.mrb[0].mxu0
        %v2705 = vadd.f32 %v2592, %v2704
        %v2706 = vpop.f32.mrb[0].mxu0
        %v2707 = vadd.f32 %v2594, %v2706
        %v2708 = vpop.f32.mrb[0].mxu0
        %v2709 = vadd.f32 %v2596, %v2708
        %2710 = vmatprep.mubr.bf16.mxu0 %v767
        %2711 = vmatmul.mubr.bf16.gmra.mrb[0].mxu0 %v766
        %v2712 = vpop.f32.mrb[0].mxu0
        %v2713 = vadd.f32 %v2600, %v2712
        %v2714 = vpop.f32.mrb[0].mxu0
        %v2715 = vadd.f32 %v2602, %v2714
        %v2716 = vpop.f32.mrb[0].mxu0
        %v2717 = vadd.f32 %v2604, %v2716
        %v2718 = vpop.f32.mrb[0].mxu0
        %v2719 = vadd.f32 %v2606, %v2718
        %2720 = vmatprep.mubr.bf16.mxu0 %v772
        %2721 = vmatmul.mubr.bf16.gmra.mrb[0].mxu0 %v771
        %v2722 = vpop.f32.mrb[0].mxu0
        %v2723 = vadd.f32 %v2610, %v2722
        %v2724 = vpop.f32.mrb[0].mxu0
        %v2725 = vadd.f32 %v2612, %v2724
        %v2726 = vpop.f32.mrb[0].mxu0
        %v2727 = vadd.f32 %v2614, %v2726
        %v2728 = vpop.f32.mrb[0].mxu0
        %v2729 = vadd.f32 %v2616, %v2728
        %2730 = vdwg.mxu0
        %2731 = vmatprep.subr.bf16.mxu0 %v2479
        %2732 = vmatpush1.bf16.msra.mxu0 %v2476
        %2733 = vmatprep.subr.bf16.mxu0 0
        %2734 = vmatpush1.bf16.msra.mxu0 0
        %2735 = vmatprep.subr.bf16.mxu0 0
        %2736 = vmatpush1.bf16.msra.mxu0 0
        %2737 = vmatprep.subr.bf16.mxu0 0
        %2738 = vmatpush1.bf16.msra.mxu0 0
        %2739 = vmatprep.subr.bf16.mxu0 0
        %2740 = vmatpush1.bf16.msra.mxu0 0
        %2741 = vmatprep.subr.bf16.mxu0 0
        %2742 = vmatpush1.bf16.msra.mxu0 0
        %2743 = vmatprep.subr.bf16.mxu0 0
        %2744 = vmatpush1.bf16.msra.mxu0 0
        %2745 = vmatprep.subr.bf16.mxu0 0
        %2746 = vmatpush1.bf16.msra.mxu0 0
        %2747 = vmatprep.subr.bf16.mxu0 0
        %2748 = vmatpush1.bf16.msra.mxu0 0
        %2749 = vmatprep.subr.bf16.mxu0 0
        %2750 = vmatpush1.bf16.msra.mxu0 0
        %2751 = vmatprep.subr.bf16.mxu0 0
        %2752 = vmatpush1.bf16.msra.mxu0 0
        %2753 = vmatprep.subr.bf16.mxu0 0
        %2754 = vmatpush1.bf16.msra.mxu0 0
        %2755 = vmatprep.subr.bf16.mxu0 0
        %2756 = vmatpush1.bf16.msra.mxu0 0
        %2757 = vmatprep.subr.bf16.mxu0 0
        %2758 = vmatpush1.bf16.msra.mxu0 0
        %2759 = vmatprep.subr.bf16.mxu0 0
        %2760 = vmatpush1.bf16.msra.mxu0 0
        %2761 = vmatprep.subr.bf16.mxu0 0
        %2762 = vmatpush1.bf16.msra.mxu0 0
        %2763 = vmatprep.mubr.bf16.mxu0 0
        %2764 = vmatmul.mubr.bf16.gmra.mrb[0].mxu0 %v2448
        %v2765 = vpop.f32.mrb[0].mxu0
        %v2766 = vadd.f32 %v2653, %v2765
        %v2767 = vpop.f32.mrb[0].mxu0
        %v2768 = vadd.f32 %v2655, %v2767
        %v2769 = vpop.f32.mrb[0].mxu0
        %v2770 = vadd.f32 %v2657, %v2769
        %v2771 = vpop.f32.mrb[0].mxu0
        %v2772 = vadd.f32 %v2659, %v2771
        %2773 = vmatprep.mubr.bf16.mxu0 0
        %2774 = vmatmul.mubr.bf16.gmra.mrb[0].mxu0 %v2451
        %v2775 = vpop.f32.mrb[0].mxu0
        %v2776 = vadd.f32 %v2663, %v2775
        %v2777 = vpop.f32.mrb[0].mxu0
        %v2778 = vadd.f32 %v2665, %v2777
        %v2779 = vpop.f32.mrb[0].mxu0
        %v2780 = vadd.f32 %v2667, %v2779
        %v2781 = vpop.f32.mrb[0].mxu0
        %v2782 = vadd.f32 %v2669, %v2781
        %2783 = vmatprep.mubr.bf16.mxu0 0
        %2784 = vmatmul.mubr.bf16.gmra.mrb[0].mxu0 %v2454
        %v2785 = vpop.f32.mrb[0].mxu0
        %v2786 = vadd.f32 %v2673, %v2785
        %v2787 = vpop.f32.mrb[0].mxu0
        %v2788 = vadd.f32 %v2675, %v2787
        %v2789 = vpop.f32.mrb[0].mxu0
        %v2790 = vadd.f32 %v2677, %v2789
        %v2791 = vpop.f32.mrb[0].mxu0
        %v2792 = vadd.f32 %v2679, %v2791
        %2793 = vmatprep.mubr.bf16.mxu0 0
        %2794 = vmatmul.mubr.bf16.gmra.mrb[0].mxu0 %v2457
        %v2795 = vpop.f32.mrb[0].mxu0
        %v2796 = vadd.f32 %v2683, %v2795
        %v2797 = vpop.f32.mrb[0].mxu0
        %v2798 = vadd.f32 %v2685, %v2797
        %v2799 = vpop.f32.mrb[0].mxu0
        %v2800 = vadd.f32 %v2687, %v2799
        %v2801 = vpop.f32.mrb[0].mxu0
        %v2802 = vadd.f32 %v2689, %v2801
        %2803 = vmatprep.mubr.bf16.mxu0 0
        %2804 = vmatmul.mubr.bf16.gmra.mrb[0].mxu0 %v2460
        %v2805 = vpop.f32.mrb[0].mxu0
        %v2806 = vadd.f32 %v2693, %v2805
        %v2807 = vpop.f32.mrb[0].mxu0
        %v2808 = vadd.f32 %v2695, %v2807
        %v2809 = vpop.f32.mrb[0].mxu0
        %v2810 = vadd.f32 %v2697, %v2809
        %v2811 = vpop.f32.mrb[0].mxu0
        %v2812 = vadd.f32 %v2699, %v2811
        %2813 = vmatprep.mubr.bf16.mxu0 0
        %2814 = vmatmul.mubr.bf16.gmra.mrb[0].mxu0 %v2463
        %v2815 = vpop.f32.mrb[0].mxu0
        %v2816 = vadd.f32 %v2703, %v2815
        %v2817 = vpop.f32.mrb[0].mxu0
        %v2818 = vadd.f32 %v2705, %v2817
        %v2819 = vpop.f32.mrb[0].mxu0
        %v2820 = vadd.f32 %v2707, %v2819
        %v2821 = vpop.f32.mrb[0].mxu0
        %v2822 = vadd.f32 %v2709, %v2821
        %2823 = vmatprep.mubr.bf16.mxu0 0
        %2824 = vmatmul.mubr.bf16.gmra.mrb[0].mxu0 %v2466
        %v2825 = vpop.f32.mrb[0].mxu0
        %v2826 = vadd.f32 %v2713, %v2825
        %v2827 = vpop.f32.mrb[0].mxu0
        %v2828 = vadd.f32 %v2715, %v2827
        %v2829 = vpop.f32.mrb[0].mxu0
        %v2830 = vadd.f32 %v2717, %v2829
        %v2831 = vpop.f32.mrb[0].mxu0
        %v2832 = vadd.f32 %v2719, %v2831
        %2833 = vmatprep.mubr.bf16.mxu0 0
        %2834 = vmatmul.mubr.bf16.gmra.mrb[0].mxu0 %v2469
        %v2835 = vpop.f32.mrb[0].mxu0
        %v2836 = vadd.f32 %v2723, %v2835
        %v2837 = vpop.f32.mrb[0].mxu0
        %v2838 = vadd.f32 %v2725, %v2837
        %v2839 = vpop.f32.mrb[0].mxu0
        %v2840 = vadd.f32 %v2727, %v2839
        %v2841 = vpop.f32.mrb[0].mxu0
        %v2842 = vadd.f32 %v2729, %v2841
        %2843 = vdwg.mxu0
        %2844 = vmatprep.subr.bf16.mxu0 %v1799
        %2845 = vmatpush1.bf16.msra.mxu0 %v1798
        %2846 = vmatprep.subr.bf16.mxu0 %v1809
        %2847 = vmatpush1.bf16.msra.mxu0 %v1808
        %2848 = vmatprep.subr.bf16.mxu0 %v1819
        %2849 = vmatpush1.bf16.msra.mxu0 %v1818
        %2850 = vmatprep.subr.bf16.mxu0 %v1829
        %2851 = vmatpush1.bf16.msra.mxu0 %v1828
        %2852 = vmatprep.subr.bf16.mxu0 %v1839
        %2853 = vmatpush1.bf16.msra.mxu0 %v1838
        %2854 = vmatprep.subr.bf16.mxu0 %v1849
        %2855 = vmatpush1.bf16.msra.mxu0 %v1848
        %2856 = vmatprep.subr.bf16.mxu0 %v1859
        %2857 = vmatpush1.bf16.msra.mxu0 %v1858
        %2858 = vmatprep.subr.bf16.mxu0 %v1869
        %2859 = vmatpush1.bf16.msra.mxu0 %v1868
        %2860 = vmatprep.subr.bf16.mxu0 %v1879
        %2861 = vmatpush1.bf16.msra.mxu0 %v1878
        %2862 = vmatprep.subr.bf16.mxu0 %v1889
        %2863 = vmatpush1.bf16.msra.mxu0 %v1888
        %2864 = vmatprep.subr.bf16.mxu0 %v1899
        %2865 = vmatpush1.bf16.msra.mxu0 %v1898
        %2866 = vmatprep.subr.bf16.mxu0 %v1909
        %2867 = vmatpush1.bf16.msra.mxu0 %v1908
        %2868 = vmatprep.subr.bf16.mxu0 %v1919
        %2869 = vmatpush1.bf16.msra.mxu0 %v1918
        %2870 = vmatprep.subr.bf16.mxu0 %v1929
        %2871 = vmatpush1.bf16.msra.mxu0 %v1928
        %2872 = vmatprep.subr.bf16.mxu0 %v1939
        %2873 = vmatpush1.bf16.msra.mxu0 %v1938
        %2874 = vmatprep.subr.bf16.mxu0 %v1949
        %2875 = vmatpush1.bf16.msra.mxu0 %v1948
        %2876 = vmatprep.mubr.bf16.mxu0 %v735
        %2877 = vmatmul.mubr.bf16.gmra.mrb[0].mxu0 %v734
        %v2878 = vpop.f32.mrb[0].mxu0
        %v2879 = vadd.f32 0.0, %v2878
        %v2880 = vpop.f32.mrb[0].mxu0
        %v2881 = vadd.f32 0.0, %v2880
        %v2882 = vpop.f32.mrb[0].mxu0
        %v2883 = vadd.f32 0.0, %v2882
        %v2884 = vpop.f32.mrb[0].mxu0
        %v2885 = vadd.f32 0.0, %v2884
        %2886 = vmatprep.mubr.bf16.mxu0 %v740
        %2887 = vmatmul.mubr.bf16.gmra.mrb[0].mxu0 %v739
        %v2888 = vpop.f32.mrb[0].mxu0
        %v2889 = vadd.f32 0.0, %v2888
        %v2890 = vpop.f32.mrb[0].mxu0
        %v2891 = vadd.f32 0.0, %v2890
        %v2892 = vpop.f32.mrb[0].mxu0
        %v2893 = vadd.f32 0.0, %v2892
        %v2894 = vpop.f32.mrb[0].mxu0
        %v2895 = vadd.f32 0.0, %v2894
        %2896 = vmatprep.mubr.bf16.mxu0 %v745
        %2897 = vmatmul.mubr.bf16.gmra.mrb[0].mxu0 %v744
        %v2898 = vpop.f32.mrb[0].mxu0
        %v2899 = vadd.f32 0.0, %v2898
        %v2900 = vpop.f32.mrb[0].mxu0
        %v2901 = vadd.f32 0.0, %v2900
        %v2902 = vpop.f32.mrb[0].mxu0
        %v2903 = vadd.f32 0.0, %v2902
        %v2904 = vpop.f32.mrb[0].mxu0
        %v2905 = vadd.f32 0.0, %v2904
        %2906 = vmatprep.mubr.bf16.mxu0 %v750
        %2907 = vmatmul.mubr.bf16.gmra.mrb[0].mxu0 %v749
        %v2908 = vpop.f32.mrb[0].mxu0
        %v2909 = vadd.f32 0.0, %v2908
        %v2910 = vpop.f32.mrb[0].mxu0
        %v2911 = vadd.f32 0.0, %v2910
        %v2912 = vpop.f32.mrb[0].mxu0
        %v2913 = vadd.f32 0.0, %v2912
        %v2914 = vpop.f32.mrb[0].mxu0
        %v2915 = vadd.f32 0.0, %v2914
        %2916 = vmatprep.mubr.bf16.mxu0 %v755
        %2917 = vmatmul.mubr.bf16.gmra.mrb[0].mxu0 %v754
        %v2918 = vpop.f32.mrb[0].mxu0
        %v2919 = vadd.f32 0.0, %v2918
        %v2920 = vpop.f32.mrb[0].mxu0
        %v2921 = vadd.f32 0.0, %v2920
        %v2922 = vpop.f32.mrb[0].mxu0
        %v2923 = vadd.f32 0.0, %v2922
        %v2924 = vpop.f32.mrb[0].mxu0
        %v2925 = vadd.f32 0.0, %v2924
        %2926 = vmatprep.mubr.bf16.mxu0 %v760
        %2927 = vmatmul.mubr.bf16.gmra.mrb[0].mxu0 %v759
        %v2928 = vpop.f32.mrb[0].mxu0
        %v2929 = vadd.f32 0.0, %v2928
        %v2930 = vpop.f32.mrb[0].mxu0
        %v2931 = vadd.f32 0.0, %v2930
        %v2932 = vpop.f32.mrb[0].mxu0
        %v2933 = vadd.f32 0.0, %v2932
        %v2934 = vpop.f32.mrb[0].mxu0
        %v2935 = vadd.f32 0.0, %v2934
        %2936 = vmatprep.mubr.bf16.mxu0 %v765
        %2937 = vmatmul.mubr.bf16.gmra.mrb[0].mxu0 %v764
        %v2938 = vpop.f32.mrb[0].mxu0
        %v2939 = vadd.f32 0.0, %v2938
        %v2940 = vpop.f32.mrb[0].mxu0
        %v2941 = vadd.f32 0.0, %v2940
        %v2942 = vpop.f32.mrb[0].mxu0
        %v2943 = vadd.f32 0.0, %v2942
        %v2944 = vpop.f32.mrb[0].mxu0
        %v2945 = vadd.f32 0.0, %v2944
        %2946 = vmatprep.mubr.bf16.mxu0 %v770
        %2947 = vmatmul.mubr.bf16.gmra.mrb[0].mxu0 %v769
        %v2948 = vpop.f32.mrb[0].mxu0
        %v2949 = vadd.f32 0.0, %v2948
        %v2950 = vpop.f32.mrb[0].mxu0
        %v2951 = vadd.f32 0.0, %v2950
        %v2952 = vpop.f32.mrb[0].mxu0
        %v2953 = vadd.f32 0.0, %v2952
        %v2954 = vpop.f32.mrb[0].mxu0
        %v2955 = vadd.f32 0.0, %v2954
        %2956 = vdwg.mxu0
        %2957 = vmatprep.subr.bf16.mxu0 %v1959
        %2958 = vmatpush1.bf16.msra.mxu0 %v1958
        %2959 = vmatprep.subr.bf16.mxu0 %v1969
        %2960 = vmatpush1.bf16.msra.mxu0 %v1968
        %2961 = vmatprep.subr.bf16.mxu0 %v1979
        %2962 = vmatpush1.bf16.msra.mxu0 %v1978
        %2963 = vmatprep.subr.bf16.mxu0 %v1989
        %2964 = vmatpush1.bf16.msra.mxu0 %v1988
        %2965 = vmatprep.subr.bf16.mxu0 %v1999
        %2966 = vmatpush1.bf16.msra.mxu0 %v1998
        %2967 = vmatprep.subr.bf16.mxu0 %v2009
        %2968 = vmatpush1.bf16.msra.mxu0 %v2008
        %2969 = vmatprep.subr.bf16.mxu0 %v2019
        %2970 = vmatpush1.bf16.msra.mxu0 %v2018
        %2971 = vmatprep.subr.bf16.mxu0 %v2029
        %2972 = vmatpush1.bf16.msra.mxu0 %v2028
        %2973 = vmatprep.subr.bf16.mxu0 %v2039
        %2974 = vmatpush1.bf16.msra.mxu0 %v2038
        %2975 = vmatprep.subr.bf16.mxu0 %v2049
        %2976 = vmatpush1.bf16.msra.mxu0 %v2048
        %2977 = vmatprep.subr.bf16.mxu0 %v2059
        %2978 = vmatpush1.bf16.msra.mxu0 %v2058
        %2979 = vmatprep.subr.bf16.mxu0 %v2069
        %2980 = vmatpush1.bf16.msra.mxu0 %v2068
        %2981 = vmatprep.subr.bf16.mxu0 %v2079
        %2982 = vmatpush1.bf16.msra.mxu0 %v2078
        %2983 = vmatprep.subr.bf16.mxu0 %v2089
        %2984 = vmatpush1.bf16.msra.mxu0 %v2088
        %2985 = vmatprep.subr.bf16.mxu0 %v2099
        %2986 = vmatpush1.bf16.msra.mxu0 %v2098
        %2987 = vmatprep.subr.bf16.mxu0 %v2109
        %2988 = vmatpush1.bf16.msra.mxu0 %v2108
        %2989 = vmatprep.mubr.bf16.mxu0 %v737
        %2990 = vmatmul.mubr.bf16.gmra.mrb[0].mxu0 %v736
        %v2991 = vpop.f32.mrb[0].mxu0
        %v2992 = vadd.f32 %v2879, %v2991
        %v2993 = vpop.f32.mrb[0].mxu0
        %v2994 = vadd.f32 %v2881, %v2993
        %v2995 = vpop.f32.mrb[0].mxu0
        %v2996 = vadd.f32 %v2883, %v2995
        %v2997 = vpop.f32.mrb[0].mxu0
        %v2998 = vadd.f32 %v2885, %v2997
        %2999 = vmatprep.mubr.bf16.mxu0 %v742
        %3000 = vmatmul.mubr.bf16.gmra.mrb[0].mxu0 %v741
        %v3001 = vpop.f32.mrb[0].mxu0
        %v3002 = vadd.f32 %v2889, %v3001
        %v3003 = vpop.f32.mrb[0].mxu0
        %v3004 = vadd.f32 %v2891, %v3003
        %v3005 = vpop.f32.mrb[0].mxu0
        %v3006 = vadd.f32 %v2893, %v3005
        %v3007 = vpop.f32.mrb[0].mxu0
        %v3008 = vadd.f32 %v2895, %v3007
        %3009 = vmatprep.mubr.bf16.mxu0 %v747
        %3010 = vmatmul.mubr.bf16.gmra.mrb[0].mxu0 %v746
        %v3011 = vpop.f32.mrb[0].mxu0
        %v3012 = vadd.f32 %v2899, %v3011
        %v3013 = vpop.f32.mrb[0].mxu0
        %v3014 = vadd.f32 %v2901, %v3013
        %v3015 = vpop.f32.mrb[0].mxu0
        %v3016 = vadd.f32 %v2903, %v3015
        %v3017 = vpop.f32.mrb[0].mxu0
        %v3018 = vadd.f32 %v2905, %v3017
        %3019 = vmatprep.mubr.bf16.mxu0 %v752
        %3020 = vmatmul.mubr.bf16.gmra.mrb[0].mxu0 %v751
        %v3021 = vpop.f32.mrb[0].mxu0
        %v3022 = vadd.f32 %v2909, %v3021
        %v3023 = vpop.f32.mrb[0].mxu0
        %v3024 = vadd.f32 %v2911, %v3023
        %v3025 = vpop.f32.mrb[0].mxu0
        %v3026 = vadd.f32 %v2913, %v3025
        %v3027 = vpop.f32.mrb[0].mxu0
        %v3028 = vadd.f32 %v2915, %v3027
        %3029 = vmatprep.mubr.bf16.mxu0 %v757
        %3030 = vmatmul.mubr.bf16.gmra.mrb[0].mxu0 %v756
        %v3031 = vpop.f32.mrb[0].mxu0
        %v3032 = vadd.f32 %v2919, %v3031
        %v3033 = vpop.f32.mrb[0].mxu0
        %v3034 = vadd.f32 %v2921, %v3033
        %v3035 = vpop.f32.mrb[0].mxu0
        %v3036 = vadd.f32 %v2923, %v3035
        %v3037 = vpop.f32.mrb[0].mxu0
        %v3038 = vadd.f32 %v2925, %v3037
        %3039 = vmatprep.mubr.bf16.mxu0 %v762
        %3040 = vmatmul.mubr.bf16.gmra.mrb[0].mxu0 %v761
        %v3041 = vpop.f32.mrb[0].mxu0
        %v3042 = vadd.f32 %v2929, %v3041
        %v3043 = vpop.f32.mrb[0].mxu0
        %v3044 = vadd.f32 %v2931, %v3043
        %v3045 = vpop.f32.mrb[0].mxu0
        %v3046 = vadd.f32 %v2933, %v3045
        %v3047 = vpop.f32.mrb[0].mxu0
        %v3048 = vadd.f32 %v2935, %v3047
        %3049 = vmatprep.mubr.bf16.mxu0 %v767
        %3050 = vmatmul.mubr.bf16.gmra.mrb[0].mxu0 %v766
        %v3051 = vpop.f32.mrb[0].mxu0
        %v3052 = vadd.f32 %v2939, %v3051
        %v3053 = vpop.f32.mrb[0].mxu0
        %v3054 = vadd.f32 %v2941, %v3053
        %v3055 = vpop.f32.mrb[0].mxu0
        %v3056 = vadd.f32 %v2943, %v3055
        %v3057 = vpop.f32.mrb[0].mxu0
        %v3058 = vadd.f32 %v2945, %v3057
        %3059 = vmatprep.mubr.bf16.mxu0 %v772
        %3060 = vmatmul.mubr.bf16.gmra.mrb[0].mxu0 %v771
        %v3061 = vpop.f32.mrb[0].mxu0
        %v3062 = vadd.f32 %v2949, %v3061
        %v3063 = vpop.f32.mrb[0].mxu0
        %v3064 = vadd.f32 %v2951, %v3063
        %v3065 = vpop.f32.mrb[0].mxu0
        %v3066 = vadd.f32 %v2953, %v3065
        %v3067 = vpop.f32.mrb[0].mxu0
        %v3068 = vadd.f32 %v2955, %v3067
        %3069 = vdwg.mxu0
        %3070 = vmatprep.subr.bf16.mxu0 %v2485
        %3071 = vmatpush1.bf16.msra.mxu0 %v2482
        %3072 = vmatprep.subr.bf16.mxu0 0
        %3073 = vmatpush1.bf16.msra.mxu0 0
        %3074 = vmatprep.subr.bf16.mxu0 0
        %3075 = vmatpush1.bf16.msra.mxu0 0
        %3076 = vmatprep.subr.bf16.mxu0 0
        %3077 = vmatpush1.bf16.msra.mxu0 0
        %3078 = vmatprep.subr.bf16.mxu0 0
        %3079 = vmatpush1.bf16.msra.mxu0 0
        %3080 = vmatprep.subr.bf16.mxu0 0
        %3081 = vmatpush1.bf16.msra.mxu0 0
        %3082 = vmatprep.subr.bf16.mxu0 0
        %3083 = vmatpush1.bf16.msra.mxu0 0
        %3084 = vmatprep.subr.bf16.mxu0 0
        %3085 = vmatpush1.bf16.msra.mxu0 0
        %3086 = vmatprep.subr.bf16.mxu0 0
        %3087 = vmatpush1.bf16.msra.mxu0 0
        %3088 = vmatprep.subr.bf16.mxu0 0
        %3089 = vmatpush1.bf16.msra.mxu0 0
        %3090 = vmatprep.subr.bf16.mxu0 0
        %3091 = vmatpush1.bf16.msra.mxu0 0
        %3092 = vmatprep.subr.bf16.mxu0 0
        %3093 = vmatpush1.bf16.msra.mxu0 0
        %3094 = vmatprep.subr.bf16.mxu0 0
        %3095 = vmatpush1.bf16.msra.mxu0 0
        %3096 = vmatprep.subr.bf16.mxu0 0
        %3097 = vmatpush1.bf16.msra.mxu0 0
        %3098 = vmatprep.subr.bf16.mxu0 0
        %3099 = vmatpush1.bf16.msra.mxu0 0
        %3100 = vmatprep.subr.bf16.mxu0 0
        %3101 = vmatpush1.bf16.msra.mxu0 0
        %3102 = vmatprep.mubr.bf16.mxu0 0
        %3103 = vmatmul.mubr.bf16.gmra.mrb[0].mxu0 %v2448
        %v3104 = vpop.f32.mrb[0].mxu0
        %v3105 = vadd.f32 %v2992, %v3104
        %v3106 = vpop.f32.mrb[0].mxu0
        %v3107 = vadd.f32 %v2994, %v3106
        %v3108 = vpop.f32.mrb[0].mxu0
        %v3109 = vadd.f32 %v2996, %v3108
        %v3110 = vpop.f32.mrb[0].mxu0
        %v3111 = vadd.f32 %v2998, %v3110
        %3112 = vmatprep.mubr.bf16.mxu0 0
        %3113 = vmatmul.mubr.bf16.gmra.mrb[0].mxu0 %v2451
        %v3114 = vpop.f32.mrb[0].mxu0
        %v3115 = vadd.f32 %v3002, %v3114
        %v3116 = vpop.f32.mrb[0].mxu0
        %v3117 = vadd.f32 %v3004, %v3116
        %v3118 = vpop.f32.mrb[0].mxu0
        %v3119 = vadd.f32 %v3006, %v3118
        %v3120 = vpop.f32.mrb[0].mxu0
        %v3121 = vadd.f32 %v3008, %v3120
        %3122 = vmatprep.mubr.bf16.mxu0 0
        %3123 = vmatmul.mubr.bf16.gmra.mrb[0].mxu0 %v2454
        %v3124 = vpop.f32.mrb[0].mxu0
        %v3125 = vadd.f32 %v3012, %v3124
        %v3126 = vpop.f32.mrb[0].mxu0
        %v3127 = vadd.f32 %v3014, %v3126
        %v3128 = vpop.f32.mrb[0].mxu0
        %v3129 = vadd.f32 %v3016, %v3128
        %v3130 = vpop.f32.mrb[0].mxu0
        %v3131 = vadd.f32 %v3018, %v3130
        %3132 = vmatprep.mubr.bf16.mxu0 0
        %3133 = vmatmul.mubr.bf16.gmra.mrb[0].mxu0 %v2457
        %v3134 = vpop.f32.mrb[0].mxu0
        %v3135 = vadd.f32 %v3022, %v3134
        %v3136 = vpop.f32.mrb[0].mxu0
        %v3137 = vadd.f32 %v3024, %v3136
        %v3138 = vpop.f32.mrb[0].mxu0
        %v3139 = vadd.f32 %v3026, %v3138
        %v3140 = vpop.f32.mrb[0].mxu0
        %v3141 = vadd.f32 %v3028, %v3140
        %3142 = vmatprep.mubr.bf16.mxu0 0
        %3143 = vmatmul.mubr.bf16.gmra.mrb[0].mxu0 %v2460
        %v3144 = vpop.f32.mrb[0].mxu0
        %v3145 = vadd.f32 %v3032, %v3144
        %v3146 = vpop.f32.mrb[0].mxu0
        %v3147 = vadd.f32 %v3034, %v3146
        %v3148 = vpop.f32.mrb[0].mxu0
        %v3149 = vadd.f32 %v3036, %v3148
        %v3150 = vpop.f32.mrb[0].mxu0
        %v3151 = vadd.f32 %v3038, %v3150
        %3152 = vmatprep.mubr.bf16.mxu0 0
        %3153 = vmatmul.mubr.bf16.gmra.mrb[0].mxu0 %v2463
        %v3154 = vpop.f32.mrb[0].mxu0
        %v3155 = vadd.f32 %v3042, %v3154
        %v3156 = vpop.f32.mrb[0].mxu0
        %v3157 = vadd.f32 %v3044, %v3156
        %v3158 = vpop.f32.mrb[0].mxu0
        %v3159 = vadd.f32 %v3046, %v3158
        %v3160 = vpop.f32.mrb[0].mxu0
        %v3161 = vadd.f32 %v3048, %v3160
        %3162 = vmatprep.mubr.bf16.mxu0 0
        %3163 = vmatmul.mubr.bf16.gmra.mrb[0].mxu0 %v2466
        %v3164 = vpop.f32.mrb[0].mxu0
        %v3165 = vadd.f32 %v3052, %v3164
        %v3166 = vpop.f32.mrb[0].mxu0
        %v3167 = vadd.f32 %v3054, %v3166
        %v3168 = vpop.f32.mrb[0].mxu0
        %v3169 = vadd.f32 %v3056, %v3168
        %v3170 = vpop.f32.mrb[0].mxu0
        %v3171 = vadd.f32 %v3058, %v3170
        %3172 = vmatprep.mubr.bf16.mxu0 0
        %3173 = vmatmul.mubr.bf16.gmra.mrb[0].mxu0 %v2469
        %v3174 = vpop.f32.mrb[0].mxu0
        %v3175 = vadd.f32 %v3062, %v3174
        %v3176 = vpop.f32.mrb[0].mxu0
        %v3177 = vadd.f32 %v3064, %v3176
        %v3178 = vpop.f32.mrb[0].mxu0
        %v3179 = vadd.f32 %v3066, %v3178
        %v3180 = vpop.f32.mrb[0].mxu0
        %v3181 = vadd.f32 %v3068, %v3180
        %3182 = vdwg.mxu0
        %3183 = vmatprep.subr.bf16.mxu0 %v1801
        %3184 = vmatpush1.bf16.msra.mxu0 %v1800
        %3185 = vmatprep.subr.bf16.mxu0 %v1811
        %3186 = vmatpush1.bf16.msra.mxu0 %v1810
        %3187 = vmatprep.subr.bf16.mxu0 %v1821
        %3188 = vmatpush1.bf16.msra.mxu0 %v1820
        %3189 = vmatprep.subr.bf16.mxu0 %v1831
        %3190 = vmatpush1.bf16.msra.mxu0 %v1830
        %3191 = vmatprep.subr.bf16.mxu0 %v1841
        %3192 = vmatpush1.bf16.msra.mxu0 %v1840
        %3193 = vmatprep.subr.bf16.mxu0 %v1851
        %3194 = vmatpush1.bf16.msra.mxu0 %v1850
        %3195 = vmatprep.subr.bf16.mxu0 %v1861
        %3196 = vmatpush1.bf16.msra.mxu0 %v1860
        %3197 = vmatprep.subr.bf16.mxu0 %v1871
        %3198 = vmatpush1.bf16.msra.mxu0 %v1870
        %3199 = vmatprep.subr.bf16.mxu0 %v1881
        %3200 = vmatpush1.bf16.msra.mxu0 %v1880
        %3201 = vmatprep.subr.bf16.mxu0 %v1891
        %3202 = vmatpush1.bf16.msra.mxu0 %v1890
        %3203 = vmatprep.subr.bf16.mxu0 %v1901
        %3204 = vmatpush1.bf16.msra.mxu0 %v1900
        %3205 = vmatprep.subr.bf16.mxu0 %v1911
        %3206 = vmatpush1.bf16.msra.mxu0 %v1910
        %3207 = vmatprep.subr.bf16.mxu0 %v1921
        %3208 = vmatpush1.bf16.msra.mxu0 %v1920
        %3209 = vmatprep.subr.bf16.mxu0 %v1931
        %3210 = vmatpush1.bf16.msra.mxu0 %v1930
        %3211 = vmatprep.subr.bf16.mxu0 %v1941
        %3212 = vmatpush1.bf16.msra.mxu0 %v1940
        %3213 = vmatprep.subr.bf16.mxu0 %v1951
        %3214 = vmatpush1.bf16.msra.mxu0 %v1950
        %3215 = vmatprep.mubr.bf16.mxu0 %v735
        %3216 = vmatmul.mubr.bf16.gmra.mrb[0].mxu0 %v734
        %v3217 = vpop.f32.mrb[0].mxu0
        %v3218 = vadd.f32 0.0, %v3217
        %v3219 = vpop.f32.mrb[0].mxu0
        %v3220 = vadd.f32 0.0, %v3219
        %v3221 = vpop.f32.mrb[0].mxu0
        %v3222 = vadd.f32 0.0, %v3221
        %v3223 = vpop.f32.mrb[0].mxu0
        %v3224 = vadd.f32 0.0, %v3223
        %3225 = vmatprep.mubr.bf16.mxu0 %v740
        %3226 = vmatmul.mubr.bf16.gmra.mrb[0].mxu0 %v739
        %v3227 = vpop.f32.mrb[0].mxu0
        %v3228 = vadd.f32 0.0, %v3227
        %v3229 = vpop.f32.mrb[0].mxu0
        %v3230 = vadd.f32 0.0, %v3229
        %v3231 = vpop.f32.mrb[0].mxu0
        %v3232 = vadd.f32 0.0, %v3231
        %v3233 = vpop.f32.mrb[0].mxu0
        %v3234 = vadd.f32 0.0, %v3233
        %3235 = vmatprep.mubr.bf16.mxu0 %v745
        %3236 = vmatmul.mubr.bf16.gmra.mrb[0].mxu0 %v744
        %v3237 = vpop.f32.mrb[0].mxu0
        %v3238 = vadd.f32 0.0, %v3237
        %v3239 = vpop.f32.mrb[0].mxu0
        %v3240 = vadd.f32 0.0, %v3239
        %v3241 = vpop.f32.mrb[0].mxu0
        %v3242 = vadd.f32 0.0, %v3241
        %v3243 = vpop.f32.mrb[0].mxu0
        %v3244 = vadd.f32 0.0, %v3243
        %3245 = vmatprep.mubr.bf16.mxu0 %v750
        %3246 = vmatmul.mubr.bf16.gmra.mrb[0].mxu0 %v749
        %v3247 = vpop.f32.mrb[0].mxu0
        %v3248 = vadd.f32 0.0, %v3247
        %v3249 = vpop.f32.mrb[0].mxu0
        %v3250 = vadd.f32 0.0, %v3249
        %v3251 = vpop.f32.mrb[0].mxu0
        %v3252 = vadd.f32 0.0, %v3251
        %v3253 = vpop.f32.mrb[0].mxu0
        %v3254 = vadd.f32 0.0, %v3253
        %3255 = vmatprep.mubr.bf16.mxu0 %v755
        %3256 = vmatmul.mubr.bf16.gmra.mrb[0].mxu0 %v754
        %v3257 = vpop.f32.mrb[0].mxu0
        %v3258 = vadd.f32 0.0, %v3257
        %v3259 = vpop.f32.mrb[0].mxu0
        %v3260 = vadd.f32 0.0, %v3259
        %v3261 = vpop.f32.mrb[0].mxu0
        %v3262 = vadd.f32 0.0, %v3261
        %v3263 = vpop.f32.mrb[0].mxu0
        %v3264 = vadd.f32 0.0, %v3263
        %3265 = vmatprep.mubr.bf16.mxu0 %v760
        %3266 = vmatmul.mubr.bf16.gmra.mrb[0].mxu0 %v759
        %v3267 = vpop.f32.mrb[0].mxu0
        %v3268 = vadd.f32 0.0, %v3267
        %v3269 = vpop.f32.mrb[0].mxu0
        %v3270 = vadd.f32 0.0, %v3269
        %v3271 = vpop.f32.mrb[0].mxu0
        %v3272 = vadd.f32 0.0, %v3271
        %v3273 = vpop.f32.mrb[0].mxu0
        %v3274 = vadd.f32 0.0, %v3273
        %3275 = vmatprep.mubr.bf16.mxu0 %v765
        %3276 = vmatmul.mubr.bf16.gmra.mrb[0].mxu0 %v764
        %v3277 = vpop.f32.mrb[0].mxu0
        %v3278 = vadd.f32 0.0, %v3277
        %v3279 = vpop.f32.mrb[0].mxu0
        %v3280 = vadd.f32 0.0, %v3279
        %v3281 = vpop.f32.mrb[0].mxu0
        %v3282 = vadd.f32 0.0, %v3281
        %v3283 = vpop.f32.mrb[0].mxu0
        %v3284 = vadd.f32 0.0, %v3283
        %3285 = vmatprep.mubr.bf16.mxu0 %v770
        %3286 = vmatmul.mubr.bf16.gmra.mrb[0].mxu0 %v769
        %v3287 = vpop.f32.mrb[0].mxu0
        %v3288 = vadd.f32 0.0, %v3287
        %v3289 = vpop.f32.mrb[0].mxu0
        %v3290 = vadd.f32 0.0, %v3289
        %v3291 = vpop.f32.mrb[0].mxu0
        %v3292 = vadd.f32 0.0, %v3291
        %v3293 = vpop.f32.mrb[0].mxu0
        %v3294 = vadd.f32 0.0, %v3293
        %3295 = vdwg.mxu0
        %3296 = vmatprep.subr.bf16.mxu0 %v1961
        %3297 = vmatpush1.bf16.msra.mxu0 %v1960
        %3298 = vmatprep.subr.bf16.mxu0 %v1971
        %3299 = vmatpush1.bf16.msra.mxu0 %v1970
        %3300 = vmatprep.subr.bf16.mxu0 %v1981
        %3301 = vmatpush1.bf16.msra.mxu0 %v1980
        %3302 = vmatprep.subr.bf16.mxu0 %v1991
        %3303 = vmatpush1.bf16.msra.mxu0 %v1990
        %3304 = vmatprep.subr.bf16.mxu0 %v2001
        %3305 = vmatpush1.bf16.msra.mxu0 %v2000
        %3306 = vmatprep.subr.bf16.mxu0 %v2011
        %3307 = vmatpush1.bf16.msra.mxu0 %v2010
        %3308 = vmatprep.subr.bf16.mxu0 %v2021
        %3309 = vmatpush1.bf16.msra.mxu0 %v2020
        %3310 = vmatprep.subr.bf16.mxu0 %v2031
        %3311 = vmatpush1.bf16.msra.mxu0 %v2030
        %3312 = vmatprep.subr.bf16.mxu0 %v2041
        %3313 = vmatpush1.bf16.msra.mxu0 %v2040
        %3314 = vmatprep.subr.bf16.mxu0 %v2051
        %3315 = vmatpush1.bf16.msra.mxu0 %v2050
        %3316 = vmatprep.subr.bf16.mxu0 %v2061
        %3317 = vmatpush1.bf16.msra.mxu0 %v2060
        %3318 = vmatprep.subr.bf16.mxu0 %v2071
        %3319 = vmatpush1.bf16.msra.mxu0 %v2070
        %3320 = vmatprep.subr.bf16.mxu0 %v2081
        %3321 = vmatpush1.bf16.msra.mxu0 %v2080
        %3322 = vmatprep.subr.bf16.mxu0 %v2091
        %3323 = vmatpush1.bf16.msra.mxu0 %v2090
        %3324 = vmatprep.subr.bf16.mxu0 %v2101
        %3325 = vmatpush1.bf16.msra.mxu0 %v2100
        %3326 = vmatprep.subr.bf16.mxu0 %v2111
        %3327 = vmatpush1.bf16.msra.mxu0 %v2110
        %3328 = vmatprep.mubr.bf16.mxu0 %v737
        %3329 = vmatmul.mubr.bf16.gmra.mrb[0].mxu0 %v736
        %v3330 = vpop.f32.mrb[0].mxu0
        %v3331 = vadd.f32 %v3218, %v3330
        %v3332 = vpop.f32.mrb[0].mxu0
        %v3333 = vadd.f32 %v3220, %v3332
        %v3334 = vpop.f32.mrb[0].mxu0
        %v3335 = vadd.f32 %v3222, %v3334
        %v3336 = vpop.f32.mrb[0].mxu0
        %v3337 = vadd.f32 %v3224, %v3336
        %3338 = vmatprep.mubr.bf16.mxu0 %v742
        %3339 = vmatmul.mubr.bf16.gmra.mrb[0].mxu0 %v741
        %v3340 = vpop.f32.mrb[0].mxu0
        %v3341 = vadd.f32 %v3228, %v3340
        %v3342 = vpop.f32.mrb[0].mxu0
        %v3343 = vadd.f32 %v3230, %v3342
        %v3344 = vpop.f32.mrb[0].mxu0
        %v3345 = vadd.f32 %v3232, %v3344
        %v3346 = vpop.f32.mrb[0].mxu0
        %v3347 = vadd.f32 %v3234, %v3346
        %3348 = vmatprep.mubr.bf16.mxu0 %v747
        %3349 = vmatmul.mubr.bf16.gmra.mrb[0].mxu0 %v746
        %v3350 = vpop.f32.mrb[0].mxu0
        %v3351 = vadd.f32 %v3238, %v3350
        %v3352 = vpop.f32.mrb[0].mxu0
        %v3353 = vadd.f32 %v3240, %v3352
        %v3354 = vpop.f32.mrb[0].mxu0
        %v3355 = vadd.f32 %v3242, %v3354
        %v3356 = vpop.f32.mrb[0].mxu0
        %v3357 = vadd.f32 %v3244, %v3356
        %3358 = vmatprep.mubr.bf16.mxu0 %v752
        %3359 = vmatmul.mubr.bf16.gmra.mrb[0].mxu0 %v751
        %v3360 = vpop.f32.mrb[0].mxu0
        %v3361 = vadd.f32 %v3248, %v3360
        %v3362 = vpop.f32.mrb[0].mxu0
        %v3363 = vadd.f32 %v3250, %v3362
        %v3364 = vpop.f32.mrb[0].mxu0
        %v3365 = vadd.f32 %v3252, %v3364
        %v3366 = vpop.f32.mrb[0].mxu0
        %v3367 = vadd.f32 %v3254, %v3366
        %3368 = vmatprep.mubr.bf16.mxu0 %v757
        %3369 = vmatmul.mubr.bf16.gmra.mrb[0].mxu0 %v756
        %v3370 = vpop.f32.mrb[0].mxu0
        %v3371 = vadd.f32 %v3258, %v3370
        %v3372 = vpop.f32.mrb[0].mxu0
        %v3373 = vadd.f32 %v3260, %v3372
        %v3374 = vpop.f32.mrb[0].mxu0
        %v3375 = vadd.f32 %v3262, %v3374
        %v3376 = vpop.f32.mrb[0].mxu0
        %v3377 = vadd.f32 %v3264, %v3376
        %3378 = vmatprep.mubr.bf16.mxu0 %v762
        %3379 = vmatmul.mubr.bf16.gmra.mrb[0].mxu0 %v761
        %v3380 = vpop.f32.mrb[0].mxu0
        %v3381 = vadd.f32 %v3268, %v3380
        %v3382 = vpop.f32.mrb[0].mxu0
        %v3383 = vadd.f32 %v3270, %v3382
        %v3384 = vpop.f32.mrb[0].mxu0
        %v3385 = vadd.f32 %v3272, %v3384
        %v3386 = vpop.f32.mrb[0].mxu0
        %v3387 = vadd.f32 %v3274, %v3386
        %3388 = vmatprep.mubr.bf16.mxu0 %v767
        %3389 = vmatmul.mubr.bf16.gmra.mrb[0].mxu0 %v766
        %v3390 = vpop.f32.mrb[0].mxu0
        %v3391 = vadd.f32 %v3278, %v3390
        %v3392 = vpop.f32.mrb[0].mxu0
        %v3393 = vadd.f32 %v3280, %v3392
        %v3394 = vpop.f32.mrb[0].mxu0
        %v3395 = vadd.f32 %v3282, %v3394
        %v3396 = vpop.f32.mrb[0].mxu0
        %v3397 = vadd.f32 %v3284, %v3396
        %3398 = vmatprep.mubr.bf16.mxu0 %v772
        %3399 = vmatmul.mubr.bf16.gmra.mrb[0].mxu0 %v771
        %v3400 = vpop.f32.mrb[0].mxu0
        %v3401 = vadd.f32 %v3288, %v3400
        %v3402 = vpop.f32.mrb[0].mxu0
        %v3403 = vadd.f32 %v3290, %v3402
        %v3404 = vpop.f32.mrb[0].mxu0
        %v3405 = vadd.f32 %v3292, %v3404
        %v3406 = vpop.f32.mrb[0].mxu0
        %v3407 = vadd.f32 %v3294, %v3406
        %3408 = vdwg.mxu0
        %3409 = vmatprep.subr.bf16.mxu0 %v2491
        %3410 = vmatpush1.bf16.msra.mxu0 %v2488
        %3411 = vmatprep.subr.bf16.mxu0 0
        %3412 = vmatpush1.bf16.msra.mxu0 0
        %3413 = vmatprep.subr.bf16.mxu0 0
        %3414 = vmatpush1.bf16.msra.mxu0 0
        %3415 = vmatprep.subr.bf16.mxu0 0
        %3416 = vmatpush1.bf16.msra.mxu0 0
        %3417 = vmatprep.subr.bf16.mxu0 0
        %3418 = vmatpush1.bf16.msra.mxu0 0
        %3419 = vmatprep.subr.bf16.mxu0 0
        %3420 = vmatpush1.bf16.msra.mxu0 0
        %3421 = vmatprep.subr.bf16.mxu0 0
        %3422 = vmatpush1.bf16.msra.mxu0 0
        %3423 = vmatprep.subr.bf16.mxu0 0
        %3424 = vmatpush1.bf16.msra.mxu0 0
        %3425 = vmatprep.subr.bf16.mxu0 0
        %3426 = vmatpush1.bf16.msra.mxu0 0
        %3427 = vmatprep.subr.bf16.mxu0 0
        %3428 = vmatpush1.bf16.msra.mxu0 0
        %3429 = vmatprep.subr.bf16.mxu0 0
        %3430 = vmatpush1.bf16.msra.mxu0 0
        %3431 = vmatprep.subr.bf16.mxu0 0
        %3432 = vmatpush1.bf16.msra.mxu0 0
        %3433 = vmatprep.subr.bf16.mxu0 0
        %3434 = vmatpush1.bf16.msra.mxu0 0
        %3435 = vmatprep.subr.bf16.mxu0 0
        %3436 = vmatpush1.bf16.msra.mxu0 0
        %3437 = vmatprep.subr.bf16.mxu0 0
        %3438 = vmatpush1.bf16.msra.mxu0 0
        %3439 = vmatprep.subr.bf16.mxu0 0
        %3440 = vmatpush1.bf16.msra.mxu0 0
        %3441 = vmatprep.mubr.bf16.mxu0 0
        %3442 = vmatmul.mubr.bf16.gmra.mrb[0].mxu0 %v2448
        %v3443 = vpop.f32.mrb[0].mxu0
        %v3444 = vadd.f32 %v3331, %v3443
        %v3445 = vpop.f32.mrb[0].mxu0
        %v3446 = vadd.f32 %v3333, %v3445
        %v3447 = vpop.f32.mrb[0].mxu0
        %v3448 = vadd.f32 %v3335, %v3447
        %v3449 = vpop.f32.mrb[0].mxu0
        %v3450 = vadd.f32 %v3337, %v3449
        %3451 = vmatprep.mubr.bf16.mxu0 0
        %3452 = vmatmul.mubr.bf16.gmra.mrb[0].mxu0 %v2451
        %v3453 = vpop.f32.mrb[0].mxu0
        %v3454 = vadd.f32 %v3341, %v3453
        %v3455 = vpop.f32.mrb[0].mxu0
        %v3456 = vadd.f32 %v3343, %v3455
        %v3457 = vpop.f32.mrb[0].mxu0
        %v3458 = vadd.f32 %v3345, %v3457
        %v3459 = vpop.f32.mrb[0].mxu0
        %v3460 = vadd.f32 %v3347, %v3459
        %3461 = vmatprep.mubr.bf16.mxu0 0
        %3462 = vmatmul.mubr.bf16.gmra.mrb[0].mxu0 %v2454
        %v3463 = vpop.f32.mrb[0].mxu0
        %v3464 = vadd.f32 %v3351, %v3463
        %v3465 = vpop.f32.mrb[0].mxu0
        %v3466 = vadd.f32 %v3353, %v3465
        %v3467 = vpop.f32.mrb[0].mxu0
        %v3468 = vadd.f32 %v3355, %v3467
        %v3469 = vpop.f32.mrb[0].mxu0
        %v3470 = vadd.f32 %v3357, %v3469
        %3471 = vmatprep.mubr.bf16.mxu0 0
        %3472 = vmatmul.mubr.bf16.gmra.mrb[0].mxu0 %v2457
        %v3473 = vpop.f32.mrb[0].mxu0
        %v3474 = vadd.f32 %v3361, %v3473
        %v3475 = vpop.f32.mrb[0].mxu0
        %v3476 = vadd.f32 %v3363, %v3475
        %v3477 = vpop.f32.mrb[0].mxu0
        %v3478 = vadd.f32 %v3365, %v3477
        %v3479 = vpop.f32.mrb[0].mxu0
        %v3480 = vadd.f32 %v3367, %v3479
        %3481 = vmatprep.mubr.bf16.mxu0 0
        %3482 = vmatmul.mubr.bf16.gmra.mrb[0].mxu0 %v2460
        %v3483 = vpop.f32.mrb[0].mxu0
        %v3484 = vadd.f32 %v3371, %v3483
        %v3485 = vpop.f32.mrb[0].mxu0
        %v3486 = vadd.f32 %v3373, %v3485
        %v3487 = vpop.f32.mrb[0].mxu0
        %v3488 = vadd.f32 %v3375, %v3487
        %v3489 = vpop.f32.mrb[0].mxu0
        %v3490 = vadd.f32 %v3377, %v3489
        %3491 = vmatprep.mubr.bf16.mxu0 0
        %3492 = vmatmul.mubr.bf16.gmra.mrb[0].mxu0 %v2463
        %v3493 = vpop.f32.mrb[0].mxu0
        %v3494 = vadd.f32 %v3381, %v3493
        %v3495 = vpop.f32.mrb[0].mxu0
        %v3496 = vadd.f32 %v3383, %v3495
        %v3497 = vpop.f32.mrb[0].mxu0
        %v3498 = vadd.f32 %v3385, %v3497
        %v3499 = vpop.f32.mrb[0].mxu0
        %v3500 = vadd.f32 %v3387, %v3499
        %3501 = vmatprep.mubr.bf16.mxu0 0
        %3502 = vmatmul.mubr.bf16.gmra.mrb[0].mxu0 %v2466
        %v3503 = vpop.f32.mrb[0].mxu0
        %v3504 = vadd.f32 %v3391, %v3503
        %v3505 = vpop.f32.mrb[0].mxu0
        %v3506 = vadd.f32 %v3393, %v3505
        %v3507 = vpop.f32.mrb[0].mxu0
        %v3508 = vadd.f32 %v3395, %v3507
        %v3509 = vpop.f32.mrb[0].mxu0
        %v3510 = vadd.f32 %v3397, %v3509
        %3511 = vmatprep.mubr.bf16.mxu0 0
        %3512 = vmatmul.mubr.bf16.gmra.mrb[0].mxu0 %v2469
        %v3513 = vpop.f32.mrb[0].mxu0
        %v3514 = vadd.f32 %v3401, %v3513
        %v3515 = vpop.f32.mrb[0].mxu0
        %v3516 = vadd.f32 %v3403, %v3515
        %v3517 = vpop.f32.mrb[0].mxu0
        %v3518 = vadd.f32 %v3405, %v3517
        %v3519 = vpop.f32.mrb[0].mxu0
        %v3520 = vadd.f32 %v3407, %v3519
        %3521 = vdwg.mxu0
        %3522 = vmatprep.subr.bf16.mxu0 %v1803
        %3523 = vmatpush1.bf16.msra.mxu0 %v1802
        %3524 = vmatprep.subr.bf16.mxu0 %v1813
        %3525 = vmatpush1.bf16.msra.mxu0 %v1812
        %3526 = vmatprep.subr.bf16.mxu0 %v1823
        %3527 = vmatpush1.bf16.msra.mxu0 %v1822
        %3528 = vmatprep.subr.bf16.mxu0 %v1833
        %3529 = vmatpush1.bf16.msra.mxu0 %v1832
        %3530 = vmatprep.subr.bf16.mxu0 %v1843
        %3531 = vmatpush1.bf16.msra.mxu0 %v1842
        %3532 = vmatprep.subr.bf16.mxu0 %v1853
        %3533 = vmatpush1.bf16.msra.mxu0 %v1852
        %3534 = vmatprep.subr.bf16.mxu0 %v1863
        %3535 = vmatpush1.bf16.msra.mxu0 %v1862
        %3536 = vmatprep.subr.bf16.mxu0 %v1873
        %3537 = vmatpush1.bf16.msra.mxu0 %v1872
        %3538 = vmatprep.subr.bf16.mxu0 %v1883
        %3539 = vmatpush1.bf16.msra.mxu0 %v1882
        %3540 = vmatprep.subr.bf16.mxu0 %v1893
        %3541 = vmatpush1.bf16.msra.mxu0 %v1892
        %3542 = vmatprep.subr.bf16.mxu0 %v1903
        %3543 = vmatpush1.bf16.msra.mxu0 %v1902
        %3544 = vmatprep.subr.bf16.mxu0 %v1913
        %3545 = vmatpush1.bf16.msra.mxu0 %v1912
        %3546 = vmatprep.subr.bf16.mxu0 %v1923
        %3547 = vmatpush1.bf16.msra.mxu0 %v1922
        %3548 = vmatprep.subr.bf16.mxu0 %v1933
        %3549 = vmatpush1.bf16.msra.mxu0 %v1932
        %3550 = vmatprep.subr.bf16.mxu0 %v1943
        %3551 = vmatpush1.bf16.msra.mxu0 %v1942
        %3552 = vmatprep.subr.bf16.mxu0 %v1953
        %3553 = vmatpush1.bf16.msra.mxu0 %v1952
        %3554 = vmatprep.mubr.bf16.mxu0 %v735
        %3555 = vmatmul.mubr.bf16.gmra.mrb[0].mxu0 %v734
        %v3556 = vpop.f32.mrb[0].mxu0
        %v3557 = vadd.f32 0.0, %v3556
        %v3558 = vpop.f32.mrb[0].mxu0
        %v3559 = vadd.f32 0.0, %v3558
        %v3560 = vpop.f32.mrb[0].mxu0
        %v3561 = vadd.f32 0.0, %v3560
        %v3562 = vpop.f32.mrb[0].mxu0
        %v3563 = vadd.f32 0.0, %v3562
        %3564 = vmatprep.mubr.bf16.mxu0 %v740
        %3565 = vmatmul.mubr.bf16.gmra.mrb[0].mxu0 %v739
        %v3566 = vpop.f32.mrb[0].mxu0
        %v3567 = vadd.f32 0.0, %v3566
        %v3568 = vpop.f32.mrb[0].mxu0
        %v3569 = vadd.f32 0.0, %v3568
        %v3570 = vpop.f32.mrb[0].mxu0
        %v3571 = vadd.f32 0.0, %v3570
        %v3572 = vpop.f32.mrb[0].mxu0
        %v3573 = vadd.f32 0.0, %v3572
        %3574 = vmatprep.mubr.bf16.mxu0 %v745
        %3575 = vmatmul.mubr.bf16.gmra.mrb[0].mxu0 %v744
        %v3576 = vpop.f32.mrb[0].mxu0
        %v3577 = vadd.f32 0.0, %v3576
        %v3578 = vpop.f32.mrb[0].mxu0
        %v3579 = vadd.f32 0.0, %v3578
        %v3580 = vpop.f32.mrb[0].mxu0
        %v3581 = vadd.f32 0.0, %v3580
        %v3582 = vpop.f32.mrb[0].mxu0
        %v3583 = vadd.f32 0.0, %v3582
        %3584 = vmatprep.mubr.bf16.mxu0 %v750
        %3585 = vmatmul.mubr.bf16.gmra.mrb[0].mxu0 %v749
        %v3586 = vpop.f32.mrb[0].mxu0
        %v3587 = vadd.f32 0.0, %v3586
        %v3588 = vpop.f32.mrb[0].mxu0
        %v3589 = vadd.f32 0.0, %v3588
        %v3590 = vpop.f32.mrb[0].mxu0
        %v3591 = vadd.f32 0.0, %v3590
        %v3592 = vpop.f32.mrb[0].mxu0
        %v3593 = vadd.f32 0.0, %v3592
        %3594 = vmatprep.mubr.bf16.mxu0 %v755
        %3595 = vmatmul.mubr.bf16.gmra.mrb[0].mxu0 %v754
        %v3596 = vpop.f32.mrb[0].mxu0
        %v3597 = vadd.f32 0.0, %v3596
        %v3598 = vpop.f32.mrb[0].mxu0
        %v3599 = vadd.f32 0.0, %v3598
        %v3600 = vpop.f32.mrb[0].mxu0
        %v3601 = vadd.f32 0.0, %v3600
        %v3602 = vpop.f32.mrb[0].mxu0
        %v3603 = vadd.f32 0.0, %v3602
        %3604 = vmatprep.mubr.bf16.mxu0 %v760
        %3605 = vmatmul.mubr.bf16.gmra.mrb[0].mxu0 %v759
        %v3606 = vpop.f32.mrb[0].mxu0
        %v3607 = vadd.f32 0.0, %v3606
        %v3608 = vpop.f32.mrb[0].mxu0
        %v3609 = vadd.f32 0.0, %v3608
        %v3610 = vpop.f32.mrb[0].mxu0
        %v3611 = vadd.f32 0.0, %v3610
        %v3612 = vpop.f32.mrb[0].mxu0
        %v3613 = vadd.f32 0.0, %v3612
        %3614 = vmatprep.mubr.bf16.mxu0 %v765
        %3615 = vmatmul.mubr.bf16.gmra.mrb[0].mxu0 %v764
        %v3616 = vpop.f32.mrb[0].mxu0
        %v3617 = vadd.f32 0.0, %v3616
        %v3618 = vpop.f32.mrb[0].mxu0
        %v3619 = vadd.f32 0.0, %v3618
        %v3620 = vpop.f32.mrb[0].mxu0
        %v3621 = vadd.f32 0.0, %v3620
        %v3622 = vpop.f32.mrb[0].mxu0
        %v3623 = vadd.f32 0.0, %v3622
        %3624 = vmatprep.mubr.bf16.mxu0 %v770
        %3625 = vmatmul.mubr.bf16.gmra.mrb[0].mxu0 %v769
        %v3626 = vpop.f32.mrb[0].mxu0
        %v3627 = vadd.f32 0.0, %v3626
        %v3628 = vpop.f32.mrb[0].mxu0
        %v3629 = vadd.f32 0.0, %v3628
        %v3630 = vpop.f32.mrb[0].mxu0
        %v3631 = vadd.f32 0.0, %v3630
        %v3632 = vpop.f32.mrb[0].mxu0
        %v3633 = vadd.f32 0.0, %v3632
        %3634 = vdwg.mxu0
        %3635 = vmatprep.subr.bf16.mxu0 %v1963
        %3636 = vmatpush1.bf16.msra.mxu0 %v1962
        %3637 = vmatprep.subr.bf16.mxu0 %v1973
        %3638 = vmatpush1.bf16.msra.mxu0 %v1972
        %3639 = vmatprep.subr.bf16.mxu0 %v1983
        %3640 = vmatpush1.bf16.msra.mxu0 %v1982
        %3641 = vmatprep.subr.bf16.mxu0 %v1993
        %3642 = vmatpush1.bf16.msra.mxu0 %v1992
        %3643 = vmatprep.subr.bf16.mxu0 %v2003
        %3644 = vmatpush1.bf16.msra.mxu0 %v2002
        %3645 = vmatprep.subr.bf16.mxu0 %v2013
        %3646 = vmatpush1.bf16.msra.mxu0 %v2012
        %3647 = vmatprep.subr.bf16.mxu0 %v2023
        %3648 = vmatpush1.bf16.msra.mxu0 %v2022
        %3649 = vmatprep.subr.bf16.mxu0 %v2033
        %3650 = vmatpush1.bf16.msra.mxu0 %v2032
        %3651 = vmatprep.subr.bf16.mxu0 %v2043
        %3652 = vmatpush1.bf16.msra.mxu0 %v2042
        %3653 = vmatprep.subr.bf16.mxu0 %v2053
        %3654 = vmatpush1.bf16.msra.mxu0 %v2052
        %3655 = vmatprep.subr.bf16.mxu0 %v2063
        %3656 = vmatpush1.bf16.msra.mxu0 %v2062
        %3657 = vmatprep.subr.bf16.mxu0 %v2073
        %3658 = vmatpush1.bf16.msra.mxu0 %v2072
        %3659 = vmatprep.subr.bf16.mxu0 %v2083
        %3660 = vmatpush1.bf16.msra.mxu0 %v2082
        %3661 = vmatprep.subr.bf16.mxu0 %v2093
        %3662 = vmatpush1.bf16.msra.mxu0 %v2092
        %3663 = vmatprep.subr.bf16.mxu0 %v2103
        %3664 = vmatpush1.bf16.msra.mxu0 %v2102
        %3665 = vmatprep.subr.bf16.mxu0 %v2113
        %3666 = vmatpush1.bf16.msra.mxu0 %v2112
        %3667 = vmatprep.mubr.bf16.mxu0 %v737
        %3668 = vmatmul.mubr.bf16.gmra.mrb[0].mxu0 %v736
        %v3669 = vpop.f32.mrb[0].mxu0
        %v3670 = vadd.f32 %v3557, %v3669
        %v3671 = vpop.f32.mrb[0].mxu0
        %v3672 = vadd.f32 %v3559, %v3671
        %v3673 = vpop.f32.mrb[0].mxu0
        %v3674 = vadd.f32 %v3561, %v3673
        %v3675 = vpop.f32.mrb[0].mxu0
        %v3676 = vadd.f32 %v3563, %v3675
        %3677 = vmatprep.mubr.bf16.mxu0 %v742
        %3678 = vmatmul.mubr.bf16.gmra.mrb[0].mxu0 %v741
        %v3679 = vpop.f32.mrb[0].mxu0
        %v3680 = vadd.f32 %v3567, %v3679
        %v3681 = vpop.f32.mrb[0].mxu0
        %v3682 = vadd.f32 %v3569, %v3681
        %v3683 = vpop.f32.mrb[0].mxu0
        %v3684 = vadd.f32 %v3571, %v3683
        %v3685 = vpop.f32.mrb[0].mxu0
        %v3686 = vadd.f32 %v3573, %v3685
        %3687 = vmatprep.mubr.bf16.mxu0 %v747
        %3688 = vmatmul.mubr.bf16.gmra.mrb[0].mxu0 %v746
        %v3689 = vpop.f32.mrb[0].mxu0
        %v3690 = vadd.f32 %v3577, %v3689
        %v3691 = vpop.f32.mrb[0].mxu0
        %v3692 = vadd.f32 %v3579, %v3691
        %v3693 = vpop.f32.mrb[0].mxu0
        %v3694 = vadd.f32 %v3581, %v3693
        %v3695 = vpop.f32.mrb[0].mxu0
        %v3696 = vadd.f32 %v3583, %v3695
        %3697 = vmatprep.mubr.bf16.mxu0 %v752
        %3698 = vmatmul.mubr.bf16.gmra.mrb[0].mxu0 %v751
        %v3699 = vpop.f32.mrb[0].mxu0
        %v3700 = vadd.f32 %v3587, %v3699
        %v3701 = vpop.f32.mrb[0].mxu0
        %v3702 = vadd.f32 %v3589, %v3701
        %v3703 = vpop.f32.mrb[0].mxu0
        %v3704 = vadd.f32 %v3591, %v3703
        %v3705 = vpop.f32.mrb[0].mxu0
        %v3706 = vadd.f32 %v3593, %v3705
        %3707 = vmatprep.mubr.bf16.mxu0 %v757
        %3708 = vmatmul.mubr.bf16.gmra.mrb[0].mxu0 %v756
        %v3709 = vpop.f32.mrb[0].mxu0
        %v3710 = vadd.f32 %v3597, %v3709
        %v3711 = vpop.f32.mrb[0].mxu0
        %v3712 = vadd.f32 %v3599, %v3711
        %v3713 = vpop.f32.mrb[0].mxu0
        %v3714 = vadd.f32 %v3601, %v3713
        %v3715 = vpop.f32.mrb[0].mxu0
        %v3716 = vadd.f32 %v3603, %v3715
        %3717 = vmatprep.mubr.bf16.mxu0 %v762
        %3718 = vmatmul.mubr.bf16.gmra.mrb[0].mxu0 %v761
        %v3719 = vpop.f32.mrb[0].mxu0
        %v3720 = vadd.f32 %v3607, %v3719
        %v3721 = vpop.f32.mrb[0].mxu0
        %v3722 = vadd.f32 %v3609, %v3721
        %v3723 = vpop.f32.mrb[0].mxu0
        %v3724 = vadd.f32 %v3611, %v3723
        %v3725 = vpop.f32.mrb[0].mxu0
        %v3726 = vadd.f32 %v3613, %v3725
        %3727 = vmatprep.mubr.bf16.mxu0 %v767
        %3728 = vmatmul.mubr.bf16.gmra.mrb[0].mxu0 %v766
        %v3729 = vpop.f32.mrb[0].mxu0
        %v3730 = vadd.f32 %v3617, %v3729
        %v3731 = vpop.f32.mrb[0].mxu0
        %v3732 = vadd.f32 %v3619, %v3731
        %v3733 = vpop.f32.mrb[0].mxu0
        %v3734 = vadd.f32 %v3621, %v3733
        %v3735 = vpop.f32.mrb[0].mxu0
        %v3736 = vadd.f32 %v3623, %v3735
        %3737 = vmatprep.mubr.bf16.mxu0 %v772
        %3738 = vmatmul.mubr.bf16.gmra.mrb[0].mxu0 %v771
        %v3739 = vpop.f32.mrb[0].mxu0
        %v3740 = vadd.f32 %v3627, %v3739
        %v3741 = vpop.f32.mrb[0].mxu0
        %v3742 = vadd.f32 %v3629, %v3741
        %v3743 = vpop.f32.mrb[0].mxu0
        %v3744 = vadd.f32 %v3631, %v3743
        %v3745 = vpop.f32.mrb[0].mxu0
        %v3746 = vadd.f32 %v3633, %v3745
        %3747 = vdwg.mxu0
        %3748 = vmatprep.subr.bf16.mxu0 %v2497
        %3749 = vmatpush1.bf16.msra.mxu0 %v2494
        %3750 = vmatprep.subr.bf16.mxu0 0
        %3751 = vmatpush1.bf16.msra.mxu0 0
        %3752 = vmatprep.subr.bf16.mxu0 0
        %3753 = vmatpush1.bf16.msra.mxu0 0
        %3754 = vmatprep.subr.bf16.mxu0 0
        %3755 = vmatpush1.bf16.msra.mxu0 0
        %3756 = vmatprep.subr.bf16.mxu0 0
        %3757 = vmatpush1.bf16.msra.mxu0 0
        %3758 = vmatprep.subr.bf16.mxu0 0
        %3759 = vmatpush1.bf16.msra.mxu0 0
        %3760 = vmatprep.subr.bf16.mxu0 0
        %3761 = vmatpush1.bf16.msra.mxu0 0
        %3762 = vmatprep.subr.bf16.mxu0 0
        %3763 = vmatpush1.bf16.msra.mxu0 0
        %3764 = vmatprep.subr.bf16.mxu0 0
        %3765 = vmatpush1.bf16.msra.mxu0 0
        %3766 = vmatprep.subr.bf16.mxu0 0
        %3767 = vmatpush1.bf16.msra.mxu0 0
        %3768 = vmatprep.subr.bf16.mxu0 0
        %3769 = vmatpush1.bf16.msra.mxu0 0
        %3770 = vmatprep.subr.bf16.mxu0 0
        %3771 = vmatpush1.bf16.msra.mxu0 0
        %3772 = vmatprep.subr.bf16.mxu0 0
        %3773 = vmatpush1.bf16.msra.mxu0 0
        %3774 = vmatprep.subr.bf16.mxu0 0
        %3775 = vmatpush1.bf16.msra.mxu0 0
        %3776 = vmatprep.subr.bf16.mxu0 0
        %3777 = vmatpush1.bf16.msra.mxu0 0
        %3778 = vmatprep.subr.bf16.mxu0 0
        %3779 = vmatpush1.bf16.msra.mxu0 0
        %3780 = vmatprep.mubr.bf16.mxu0 0
        %3781 = vmatmul.mubr.bf16.gmra.mrb[0].mxu0 %v2448
        %v3782 = vpop.f32.mrb[0].mxu0
        %v3783 = vadd.f32 %v3670, %v3782
        %v3784 = vpop.f32.mrb[0].mxu0
        %v3785 = vadd.f32 %v3672, %v3784
        %v3786 = vpop.f32.mrb[0].mxu0
        %v3787 = vadd.f32 %v3674, %v3786
        %v3788 = vpop.f32.mrb[0].mxu0
        %v3789 = vadd.f32 %v3676, %v3788
        %3790 = vmatprep.mubr.bf16.mxu0 0
        %3791 = vmatmul.mubr.bf16.gmra.mrb[0].mxu0 %v2451
        %v3792 = vpop.f32.mrb[0].mxu0
        %v3793 = vadd.f32 %v3680, %v3792
        %v3794 = vpop.f32.mrb[0].mxu0
        %v3795 = vadd.f32 %v3682, %v3794
        %v3796 = vpop.f32.mrb[0].mxu0
        %v3797 = vadd.f32 %v3684, %v3796
        %v3798 = vpop.f32.mrb[0].mxu0
        %v3799 = vadd.f32 %v3686, %v3798
        %3800 = vmatprep.mubr.bf16.mxu0 0
        %3801 = vmatmul.mubr.bf16.gmra.mrb[0].mxu0 %v2454
        %v3802 = vpop.f32.mrb[0].mxu0
        %v3803 = vadd.f32 %v3690, %v3802
        %v3804 = vpop.f32.mrb[0].mxu0
        %v3805 = vadd.f32 %v3692, %v3804
        %v3806 = vpop.f32.mrb[0].mxu0
        %v3807 = vadd.f32 %v3694, %v3806
        %v3808 = vpop.f32.mrb[0].mxu0
        %v3809 = vadd.f32 %v3696, %v3808
        %3810 = vmatprep.mubr.bf16.mxu0 0
        %3811 = vmatmul.mubr.bf16.gmra.mrb[0].mxu0 %v2457
        %v3812 = vpop.f32.mrb[0].mxu0
        %v3813 = vadd.f32 %v3700, %v3812
        %v3814 = vpop.f32.mrb[0].mxu0
        %v3815 = vadd.f32 %v3702, %v3814
        %v3816 = vpop.f32.mrb[0].mxu0
        %v3817 = vadd.f32 %v3704, %v3816
        %v3818 = vpop.f32.mrb[0].mxu0
        %v3819 = vadd.f32 %v3706, %v3818
        %3820 = vmatprep.mubr.bf16.mxu0 0
        %3821 = vmatmul.mubr.bf16.gmra.mrb[0].mxu0 %v2460
        %v3822 = vpop.f32.mrb[0].mxu0
        %v3823 = vadd.f32 %v3710, %v3822
        %v3824 = vpop.f32.mrb[0].mxu0
        %v3825 = vadd.f32 %v3712, %v3824
        %v3826 = vpop.f32.mrb[0].mxu0
        %v3827 = vadd.f32 %v3714, %v3826
        %v3828 = vpop.f32.mrb[0].mxu0
        %v3829 = vadd.f32 %v3716, %v3828
        %3830 = vmatprep.mubr.bf16.mxu0 0
        %3831 = vmatmul.mubr.bf16.gmra.mrb[0].mxu0 %v2463
        %v3832 = vpop.f32.mrb[0].mxu0
        %v3833 = vadd.f32 %v3720, %v3832
        %v3834 = vpop.f32.mrb[0].mxu0
        %v3835 = vadd.f32 %v3722, %v3834
        %v3836 = vpop.f32.mrb[0].mxu0
        %v3837 = vadd.f32 %v3724, %v3836
        %v3838 = vpop.f32.mrb[0].mxu0
        %v3839 = vadd.f32 %v3726, %v3838
        %3840 = vmatprep.mubr.bf16.mxu0 0
        %3841 = vmatmul.mubr.bf16.gmra.mrb[0].mxu0 %v2466
        %v3842 = vpop.f32.mrb[0].mxu0
        %v3843 = vadd.f32 %v3730, %v3842
        %v3844 = vpop.f32.mrb[0].mxu0
        %v3845 = vadd.f32 %v3732, %v3844
        %v3846 = vpop.f32.mrb[0].mxu0
        %v3847 = vadd.f32 %v3734, %v3846
        %v3848 = vpop.f32.mrb[0].mxu0
        %v3849 = vadd.f32 %v3736, %v3848
        %3850 = vmatprep.mubr.bf16.mxu0 0
        %3851 = vmatmul.mubr.bf16.gmra.mrb[0].mxu0 %v2469
        %v3852 = vpop.f32.mrb[0].mxu0
        %v3853 = vadd.f32 %v3740, %v3852
        %v3854 = vpop.f32.mrb[0].mxu0
        %v3855 = vadd.f32 %v3742, %v3854
        %v3856 = vpop.f32.mrb[0].mxu0
        %v3857 = vadd.f32 %v3744, %v3856
        %v3858 = vpop.f32.mrb[0].mxu0
        %v3859 = vadd.f32 %v3746, %v3858
        %3860 = vdwg.mxu0
        %3861 = vmatprep.subr.bf16.mxu0 %v1805
        %3862 = vmatpush1.bf16.msra.mxu0 %v1804
        %3863 = vmatprep.subr.bf16.mxu0 %v1815
        %3864 = vmatpush1.bf16.msra.mxu0 %v1814
        %3865 = vmatprep.subr.bf16.mxu0 %v1825
        %3866 = vmatpush1.bf16.msra.mxu0 %v1824
        %3867 = vmatprep.subr.bf16.mxu0 %v1835
        %3868 = vmatpush1.bf16.msra.mxu0 %v1834
        %3869 = vmatprep.subr.bf16.mxu0 %v1845
        %3870 = vmatpush1.bf16.msra.mxu0 %v1844
        %3871 = vmatprep.subr.bf16.mxu0 %v1855
        %3872 = vmatpush1.bf16.msra.mxu0 %v1854
        %3873 = vmatprep.subr.bf16.mxu0 %v1865
        %3874 = vmatpush1.bf16.msra.mxu0 %v1864
        %3875 = vmatprep.subr.bf16.mxu0 %v1875
        %3876 = vmatpush1.bf16.msra.mxu0 %v1874
        %3877 = vmatprep.subr.bf16.mxu0 %v1885
        %3878 = vmatpush1.bf16.msra.mxu0 %v1884
        %3879 = vmatprep.subr.bf16.mxu0 %v1895
        %3880 = vmatpush1.bf16.msra.mxu0 %v1894
        %3881 = vmatprep.subr.bf16.mxu0 %v1905
        %3882 = vmatpush1.bf16.msra.mxu0 %v1904
        %3883 = vmatprep.subr.bf16.mxu0 %v1915
        %3884 = vmatpush1.bf16.msra.mxu0 %v1914
        %3885 = vmatprep.subr.bf16.mxu0 %v1925
        %3886 = vmatpush1.bf16.msra.mxu0 %v1924
        %3887 = vmatprep.subr.bf16.mxu0 %v1935
        %3888 = vmatpush1.bf16.msra.mxu0 %v1934
        %3889 = vmatprep.subr.bf16.mxu0 %v1945
        %3890 = vmatpush1.bf16.msra.mxu0 %v1944
        %3891 = vmatprep.subr.bf16.mxu0 %v1955
        %3892 = vmatpush1.bf16.msra.mxu0 %v1954
        %3893 = vmatprep.mubr.bf16.mxu0 %v735
        %3894 = vmatmul.mubr.bf16.gmra.mrb[0].mxu0 %v734
        %v3895 = vpop.f32.mrb[0].mxu0
        %v3896 = vadd.f32 0.0, %v3895
        %v3897 = vpop.f32.mrb[0].mxu0
        %v3898 = vadd.f32 0.0, %v3897
        %v3899 = vpop.f32.mrb[0].mxu0
        %v3900 = vadd.f32 0.0, %v3899
        %v3901 = vpop.f32.mrb[0].mxu0
        %v3902 = vadd.f32 0.0, %v3901
        %3903 = vmatprep.mubr.bf16.mxu0 %v740
        %3904 = vmatmul.mubr.bf16.gmra.mrb[0].mxu0 %v739
        %v3905 = vpop.f32.mrb[0].mxu0
        %v3906 = vadd.f32 0.0, %v3905
        %v3907 = vpop.f32.mrb[0].mxu0
        %v3908 = vadd.f32 0.0, %v3907
        %v3909 = vpop.f32.mrb[0].mxu0
        %v3910 = vadd.f32 0.0, %v3909
        %v3911 = vpop.f32.mrb[0].mxu0
        %v3912 = vadd.f32 0.0, %v3911
        %3913 = vmatprep.mubr.bf16.mxu0 %v745
        %3914 = vmatmul.mubr.bf16.gmra.mrb[0].mxu0 %v744
        %v3915 = vpop.f32.mrb[0].mxu0
        %v3916 = vadd.f32 0.0, %v3915
        %v3917 = vpop.f32.mrb[0].mxu0
        %v3918 = vadd.f32 0.0, %v3917
        %v3919 = vpop.f32.mrb[0].mxu0
        %v3920 = vadd.f32 0.0, %v3919
        %v3921 = vpop.f32.mrb[0].mxu0
        %v3922 = vadd.f32 0.0, %v3921
        %3923 = vmatprep.mubr.bf16.mxu0 %v750
        %3924 = vmatmul.mubr.bf16.gmra.mrb[0].mxu0 %v749
        %v3925 = vpop.f32.mrb[0].mxu0
        %v3926 = vadd.f32 0.0, %v3925
        %v3927 = vpop.f32.mrb[0].mxu0
        %v3928 = vadd.f32 0.0, %v3927
        %v3929 = vpop.f32.mrb[0].mxu0
        %v3930 = vadd.f32 0.0, %v3929
        %v3931 = vpop.f32.mrb[0].mxu0
        %v3932 = vadd.f32 0.0, %v3931
        %3933 = vmatprep.mubr.bf16.mxu0 %v755
        %3934 = vmatmul.mubr.bf16.gmra.mrb[0].mxu0 %v754
        %v3935 = vpop.f32.mrb[0].mxu0
        %v3936 = vadd.f32 0.0, %v3935
        %v3937 = vpop.f32.mrb[0].mxu0
        %v3938 = vadd.f32 0.0, %v3937
        %v3939 = vpop.f32.mrb[0].mxu0
        %v3940 = vadd.f32 0.0, %v3939
        %v3941 = vpop.f32.mrb[0].mxu0
        %v3942 = vadd.f32 0.0, %v3941
        %3943 = vmatprep.mubr.bf16.mxu0 %v760
        %3944 = vmatmul.mubr.bf16.gmra.mrb[0].mxu0 %v759
        %v3945 = vpop.f32.mrb[0].mxu0
        %v3946 = vadd.f32 0.0, %v3945
        %v3947 = vpop.f32.mrb[0].mxu0
        %v3948 = vadd.f32 0.0, %v3947
        %v3949 = vpop.f32.mrb[0].mxu0
        %v3950 = vadd.f32 0.0, %v3949
        %v3951 = vpop.f32.mrb[0].mxu0
        %v3952 = vadd.f32 0.0, %v3951
        %3953 = vmatprep.mubr.bf16.mxu0 %v765
        %3954 = vmatmul.mubr.bf16.gmra.mrb[0].mxu0 %v764
        %v3955 = vpop.f32.mrb[0].mxu0
        %v3956 = vadd.f32 0.0, %v3955
        %v3957 = vpop.f32.mrb[0].mxu0
        %v3958 = vadd.f32 0.0, %v3957
        %v3959 = vpop.f32.mrb[0].mxu0
        %v3960 = vadd.f32 0.0, %v3959
        %v3961 = vpop.f32.mrb[0].mxu0
        %v3962 = vadd.f32 0.0, %v3961
        %3963 = vmatprep.mubr.bf16.mxu0 %v770
        %3964 = vmatmul.mubr.bf16.gmra.mrb[0].mxu0 %v769
        %v3965 = vpop.f32.mrb[0].mxu0
        %v3966 = vadd.f32 0.0, %v3965
        %v3967 = vpop.f32.mrb[0].mxu0
        %v3968 = vadd.f32 0.0, %v3967
        %v3969 = vpop.f32.mrb[0].mxu0
        %v3970 = vadd.f32 0.0, %v3969
        %v3971 = vpop.f32.mrb[0].mxu0
        %v3972 = vadd.f32 0.0, %v3971
        %3973 = vdwg.mxu0
        %3974 = vmatprep.subr.bf16.mxu0 %v1965
        %3975 = vmatpush1.bf16.msra.mxu0 %v1964
        %3976 = vmatprep.subr.bf16.mxu0 %v1975
        %3977 = vmatpush1.bf16.msra.mxu0 %v1974
        %3978 = vmatprep.subr.bf16.mxu0 %v1985
        %3979 = vmatpush1.bf16.msra.mxu0 %v1984
        %3980 = vmatprep.subr.bf16.mxu0 %v1995
        %3981 = vmatpush1.bf16.msra.mxu0 %v1994
        %3982 = vmatprep.subr.bf16.mxu0 %v2005
        %3983 = vmatpush1.bf16.msra.mxu0 %v2004
        %3984 = vmatprep.subr.bf16.mxu0 %v2015
        %3985 = vmatpush1.bf16.msra.mxu0 %v2014
        %3986 = vmatprep.subr.bf16.mxu0 %v2025
        %3987 = vmatpush1.bf16.msra.mxu0 %v2024
        %3988 = vmatprep.subr.bf16.mxu0 %v2035
        %3989 = vmatpush1.bf16.msra.mxu0 %v2034
        %3990 = vmatprep.subr.bf16.mxu0 %v2045
        %3991 = vmatpush1.bf16.msra.mxu0 %v2044
        %3992 = vmatprep.subr.bf16.mxu0 %v2055
        %3993 = vmatpush1.bf16.msra.mxu0 %v2054
        %3994 = vmatprep.subr.bf16.mxu0 %v2065
        %3995 = vmatpush1.bf16.msra.mxu0 %v2064
        %3996 = vmatprep.subr.bf16.mxu0 %v2075
        %3997 = vmatpush1.bf16.msra.mxu0 %v2074
        %3998 = vmatprep.subr.bf16.mxu0 %v2085
        %3999 = vmatpush1.bf16.msra.mxu0 %v2084
        %4000 = vmatprep.subr.bf16.mxu0 %v2095
        %4001 = vmatpush1.bf16.msra.mxu0 %v2094
        %4002 = vmatprep.subr.bf16.mxu0 %v2105
        %4003 = vmatpush1.bf16.msra.mxu0 %v2104
        %4004 = vmatprep.subr.bf16.mxu0 %v2115
        %4005 = vmatpush1.bf16.msra.mxu0 %v2114
        %4006 = vmatprep.mubr.bf16.mxu0 %v737
        %4007 = vmatmul.mubr.bf16.gmra.mrb[0].mxu0 %v736
        %v4008 = vpop.f32.mrb[0].mxu0
        %v4009 = vadd.f32 %v3896, %v4008
        %v4010 = vpop.f32.mrb[0].mxu0
        %v4011 = vadd.f32 %v3898, %v4010
        %v4012 = vpop.f32.mrb[0].mxu0
        %v4013 = vadd.f32 %v3900, %v4012
        %v4014 = vpop.f32.mrb[0].mxu0
        %v4015 = vadd.f32 %v3902, %v4014
        %4016 = vmatprep.mubr.bf16.mxu0 %v742
        %4017 = vmatmul.mubr.bf16.gmra.mrb[0].mxu0 %v741
        %v4018 = vpop.f32.mrb[0].mxu0
        %v4019 = vadd.f32 %v3906, %v4018
        %v4020 = vpop.f32.mrb[0].mxu0
        %v4021 = vadd.f32 %v3908, %v4020
        %v4022 = vpop.f32.mrb[0].mxu0
        %v4023 = vadd.f32 %v3910, %v4022
        %v4024 = vpop.f32.mrb[0].mxu0
        %v4025 = vadd.f32 %v3912, %v4024
        %4026 = vmatprep.mubr.bf16.mxu0 %v747
        %4027 = vmatmul.mubr.bf16.gmra.mrb[0].mxu0 %v746
        %v4028 = vpop.f32.mrb[0].mxu0
        %v4029 = vadd.f32 %v3916, %v4028
        %v4030 = vpop.f32.mrb[0].mxu0
        %v4031 = vadd.f32 %v3918, %v4030
        %v4032 = vpop.f32.mrb[0].mxu0
        %v4033 = vadd.f32 %v3920, %v4032
        %v4034 = vpop.f32.mrb[0].mxu0
        %v4035 = vadd.f32 %v3922, %v4034
        %4036 = vmatprep.mubr.bf16.mxu0 %v752
        %4037 = vmatmul.mubr.bf16.gmra.mrb[0].mxu0 %v751
        %v4038 = vpop.f32.mrb[0].mxu0
        %v4039 = vadd.f32 %v3926, %v4038
        %v4040 = vpop.f32.mrb[0].mxu0
        %v4041 = vadd.f32 %v3928, %v4040
        %v4042 = vpop.f32.mrb[0].mxu0
        %v4043 = vadd.f32 %v3930, %v4042
        %v4044 = vpop.f32.mrb[0].mxu0
        %v4045 = vadd.f32 %v3932, %v4044
        %4046 = vmatprep.mubr.bf16.mxu0 %v757
        %4047 = vmatmul.mubr.bf16.gmra.mrb[0].mxu0 %v756
        %v4048 = vpop.f32.mrb[0].mxu0
        %v4049 = vadd.f32 %v3936, %v4048
        %v4050 = vpop.f32.mrb[0].mxu0
        %v4051 = vadd.f32 %v3938, %v4050
        %v4052 = vpop.f32.mrb[0].mxu0
        %v4053 = vadd.f32 %v3940, %v4052
        %v4054 = vpop.f32.mrb[0].mxu0
        %v4055 = vadd.f32 %v3942, %v4054
        %4056 = vmatprep.mubr.bf16.mxu0 %v762
        %4057 = vmatmul.mubr.bf16.gmra.mrb[0].mxu0 %v761
        %v4058 = vpop.f32.mrb[0].mxu0
        %v4059 = vadd.f32 %v3946, %v4058
        %v4060 = vpop.f32.mrb[0].mxu0
        %v4061 = vadd.f32 %v3948, %v4060
        %v4062 = vpop.f32.mrb[0].mxu0
        %v4063 = vadd.f32 %v3950, %v4062
        %v4064 = vpop.f32.mrb[0].mxu0
        %v4065 = vadd.f32 %v3952, %v4064
        %4066 = vmatprep.mubr.bf16.mxu0 %v767
        %4067 = vmatmul.mubr.bf16.gmra.mrb[0].mxu0 %v766
        %v4068 = vpop.f32.mrb[0].mxu0
        %v4069 = vadd.f32 %v3956, %v4068
        %v4070 = vpop.f32.mrb[0].mxu0
        %v4071 = vadd.f32 %v3958, %v4070
        %v4072 = vpop.f32.mrb[0].mxu0
        %v4073 = vadd.f32 %v3960, %v4072
        %v4074 = vpop.f32.mrb[0].mxu0
        %v4075 = vadd.f32 %v3962, %v4074
        %4076 = vmatprep.mubr.bf16.mxu0 %v772
        %4077 = vmatmul.mubr.bf16.gmra.mrb[0].mxu0 %v771
        %v4078 = vpop.f32.mrb[0].mxu0
        %v4079 = vadd.f32 %v3966, %v4078
        %v4080 = vpop.f32.mrb[0].mxu0
        %v4081 = vadd.f32 %v3968, %v4080
        %v4082 = vpop.f32.mrb[0].mxu0
        %v4083 = vadd.f32 %v3970, %v4082
        %v4084 = vpop.f32.mrb[0].mxu0
        %v4085 = vadd.f32 %v3972, %v4084
        %4086 = vdwg.mxu0
        %4087 = vmatprep.subr.bf16.mxu0 %v2503
        %4088 = vmatpush1.bf16.msra.mxu0 %v2500
        %4089 = vmatprep.subr.bf16.mxu0 0
        %4090 = vmatpush1.bf16.msra.mxu0 0
        %4091 = vmatprep.subr.bf16.mxu0 0
        %4092 = vmatpush1.bf16.msra.mxu0 0
        %4093 = vmatprep.subr.bf16.mxu0 0
        %4094 = vmatpush1.bf16.msra.mxu0 0
        %4095 = vmatprep.subr.bf16.mxu0 0
        %4096 = vmatpush1.bf16.msra.mxu0 0
        %4097 = vmatprep.subr.bf16.mxu0 0
        %4098 = vmatpush1.bf16.msra.mxu0 0
        %4099 = vmatprep.subr.bf16.mxu0 0
        %4100 = vmatpush1.bf16.msra.mxu0 0
        %4101 = vmatprep.subr.bf16.mxu0 0
        %4102 = vmatpush1.bf16.msra.mxu0 0
        %4103 = vmatprep.subr.bf16.mxu0 0
        %4104 = vmatpush1.bf16.msra.mxu0 0
        %4105 = vmatprep.subr.bf16.mxu0 0
        %4106 = vmatpush1.bf16.msra.mxu0 0
        %4107 = vmatprep.subr.bf16.mxu0 0
        %4108 = vmatpush1.bf16.msra.mxu0 0
        %4109 = vmatprep.subr.bf16.mxu0 0
        %4110 = vmatpush1.bf16.msra.mxu0 0
        %4111 = vmatprep.subr.bf16.mxu0 0
        %4112 = vmatpush1.bf16.msra.mxu0 0
        %4113 = vmatprep.subr.bf16.mxu0 0
        %4114 = vmatpush1.bf16.msra.mxu0 0
        %4115 = vmatprep.subr.bf16.mxu0 0
        %4116 = vmatpush1.bf16.msra.mxu0 0
        %4117 = vmatprep.subr.bf16.mxu0 0
        %4118 = vmatpush1.bf16.msra.mxu0 0
        %4119 = vmatprep.mubr.bf16.mxu0 0
        %4120 = vmatmul.mubr.bf16.gmra.mrb[0].mxu0 %v2448
        %v4121 = vpop.f32.mrb[0].mxu0
        %v4122 = vadd.f32 %v4009, %v4121
        %v4123 = vpop.f32.mrb[0].mxu0
        %v4124 = vadd.f32 %v4011, %v4123
        %v4125 = vpop.f32.mrb[0].mxu0
        %v4126 = vadd.f32 %v4013, %v4125
        %v4127 = vpop.f32.mrb[0].mxu0
        %v4128 = vadd.f32 %v4015, %v4127
        %4129 = vmatprep.mubr.bf16.mxu0 0
        %4130 = vmatmul.mubr.bf16.gmra.mrb[0].mxu0 %v2451
        %v4131 = vpop.f32.mrb[0].mxu0
        %v4132 = vadd.f32 %v4019, %v4131
        %v4133 = vpop.f32.mrb[0].mxu0
        %v4134 = vadd.f32 %v4021, %v4133
        %v4135 = vpop.f32.mrb[0].mxu0
        %v4136 = vadd.f32 %v4023, %v4135
        %v4137 = vpop.f32.mrb[0].mxu0
        %v4138 = vadd.f32 %v4025, %v4137
        %4139 = vmatprep.mubr.bf16.mxu0 0
        %4140 = vmatmul.mubr.bf16.gmra.mrb[0].mxu0 %v2454
        %v4141 = vpop.f32.mrb[0].mxu0
        %v4142 = vadd.f32 %v4029, %v4141
        %v4143 = vpop.f32.mrb[0].mxu0
        %v4144 = vadd.f32 %v4031, %v4143
        %v4145 = vpop.f32.mrb[0].mxu0
        %v4146 = vadd.f32 %v4033, %v4145
        %v4147 = vpop.f32.mrb[0].mxu0
        %v4148 = vadd.f32 %v4035, %v4147
        %4149 = vmatprep.mubr.bf16.mxu0 0
        %4150 = vmatmul.mubr.bf16.gmra.mrb[0].mxu0 %v2457
        %v4151 = vpop.f32.mrb[0].mxu0
        %v4152 = vadd.f32 %v4039, %v4151
        %v4153 = vpop.f32.mrb[0].mxu0
        %v4154 = vadd.f32 %v4041, %v4153
        %v4155 = vpop.f32.mrb[0].mxu0
        %v4156 = vadd.f32 %v4043, %v4155
        %v4157 = vpop.f32.mrb[0].mxu0
        %v4158 = vadd.f32 %v4045, %v4157
        %4159 = vmatprep.mubr.bf16.mxu0 0
        %4160 = vmatmul.mubr.bf16.gmra.mrb[0].mxu0 %v2460
        %v4161 = vpop.f32.mrb[0].mxu0
        %v4162 = vadd.f32 %v4049, %v4161
        %v4163 = vpop.f32.mrb[0].mxu0
        %v4164 = vadd.f32 %v4051, %v4163
        %v4165 = vpop.f32.mrb[0].mxu0
        %v4166 = vadd.f32 %v4053, %v4165
        %v4167 = vpop.f32.mrb[0].mxu0
        %v4168 = vadd.f32 %v4055, %v4167
        %4169 = vmatprep.mubr.bf16.mxu0 0
        %4170 = vmatmul.mubr.bf16.gmra.mrb[0].mxu0 %v2463
        %v4171 = vpop.f32.mrb[0].mxu0
        %v4172 = vadd.f32 %v4059, %v4171
        %v4173 = vpop.f32.mrb[0].mxu0
        %v4174 = vadd.f32 %v4061, %v4173
        %v4175 = vpop.f32.mrb[0].mxu0
        %v4176 = vadd.f32 %v4063, %v4175
        %v4177 = vpop.f32.mrb[0].mxu0
        %v4178 = vadd.f32 %v4065, %v4177
        %4179 = vmatprep.mubr.bf16.mxu0 0
        %4180 = vmatmul.mubr.bf16.gmra.mrb[0].mxu0 %v2466
        %v4181 = vpop.f32.mrb[0].mxu0
        %v4182 = vadd.f32 %v4069, %v4181
        %v4183 = vpop.f32.mrb[0].mxu0
        %v4184 = vadd.f32 %v4071, %v4183
        %v4185 = vpop.f32.mrb[0].mxu0
        %v4186 = vadd.f32 %v4073, %v4185
        %v4187 = vpop.f32.mrb[0].mxu0
        %v4188 = vadd.f32 %v4075, %v4187
        %4189 = vmatprep.mubr.bf16.mxu0 0
        %4190 = vmatmul.mubr.bf16.gmra.mrb[0].mxu0 %v2469
        %v4191 = vpop.f32.mrb[0].mxu0
        %v4192 = vadd.f32 %v4079, %v4191
        %v4193 = vpop.f32.mrb[0].mxu0
        %v4194 = vadd.f32 %v4081, %v4193
        %v4195 = vpop.f32.mrb[0].mxu0
        %v4196 = vadd.f32 %v4083, %v4195
        %v4197 = vpop.f32.mrb[0].mxu0
        %v4198 = vadd.f32 %v4085, %v4197
        %4199 = vdwg.mxu0
        %v4200 = vld [vmem:[%s2] sm:$0xff]
        %v4201 = vld [vmem:[%s2 + $0x8] sm:$0xff]
        %v4202 = vld [vmem:[%s2 + $0x10] sm:$0xff]
        %v4203 = vld [vmem:[%s2 + $0x18] sm:$0xff]
        %v4204 = vld [vmem:[%s2 + $0x20] sm:$0xff]
        %v4205 = vld [vmem:[%s2 + $0x28] sm:$0xff]
        %v4206 = vld [vmem:[%s2 + $0x30] sm:$0xff]
        %v4207 = vld [vmem:[%s2 + $0x38] sm:$0xff]
        %v4208 = vld [vmem:[%s2 + $0x40] sm:$0xff]
        %v4209 = vld [vmem:[%s2 + $0x48] sm:$0xff]
        %v4210 = vld [vmem:[%s2 + $0x50] sm:$0xff]
        %v4211 = vld [vmem:[%s2 + $0x58] sm:$0xff]
        %v4212 = vld [vmem:[%s2 + $0x60] sm:$0xff]
        %v4213 = vld [vmem:[%s2 + $0x68] sm:$0xff]
        %v4214 = vld [vmem:[%s2 + $0x70] sm:$0xff]
        %v4215 = vld [vmem:[%s2 + $0x78] sm:$0xff]
        %4217 = vset.pattern.permute.xlu0 0
        %4218 = vperm.xlu0 %4217, %v4200
        %v4219 = vpop.permute.xlu0 %4218
        %4222 = vset.pattern.permute.xlu0 0
        %4223 = vperm.xlu0 %4222, %v4201
        %v4224 = vpop.permute.xlu0 %4223
        %4227 = vset.pattern.permute.xlu0 0
        %4228 = vperm.xlu0 %4227, %v4202
        %v4229 = vpop.permute.xlu0 %4228
        %4232 = vset.pattern.permute.xlu0 0
        %4233 = vperm.xlu0 %4232, %v4203
        %v4234 = vpop.permute.xlu0 %4233
        %4237 = vset.pattern.permute.xlu0 0
        %4238 = vperm.xlu0 %4237, %v4204
        %v4239 = vpop.permute.xlu0 %4238
        %4242 = vset.pattern.permute.xlu0 0
        %4243 = vperm.xlu0 %4242, %v4205
        %v4244 = vpop.permute.xlu0 %4243
        %4247 = vset.pattern.permute.xlu0 0
        %4248 = vperm.xlu0 %4247, %v4206
        %v4249 = vpop.permute.xlu0 %4248
        %4252 = vset.pattern.permute.xlu0 0
        %4253 = vperm.xlu0 %4252, %v4207
        %v4254 = vpop.permute.xlu0 %4253
        %4257 = vset.pattern.permute.xlu0 0
        %4258 = vperm.xlu0 %4257, %v4208
        %v4259 = vpop.permute.xlu0 %4258
        %4262 = vset.pattern.permute.xlu0 0
        %4263 = vperm.xlu0 %4262, %v4209
        %v4264 = vpop.permute.xlu0 %4263
        %4267 = vset.pattern.permute.xlu0 0
        %4268 = vperm.xlu0 %4267, %v4210
        %v4269 = vpop.permute.xlu0 %4268
        %4272 = vset.pattern.permute.xlu0 0
        %4273 = vperm.xlu0 %4272, %v4211
        %v4274 = vpop.permute.xlu0 %4273
        %4277 = vset.pattern.permute.xlu0 0
        %4278 = vperm.xlu0 %4277, %v4212
        %v4279 = vpop.permute.xlu0 %4278
        %4282 = vset.pattern.permute.xlu0 0
        %4283 = vperm.xlu0 %4282, %v4213
        %v4284 = vpop.permute.xlu0 %4283
        %4287 = vset.pattern.permute.xlu0 0
        %4288 = vperm.xlu0 %4287, %v4214
        %v4289 = vpop.permute.xlu0 %4288
        %4292 = vset.pattern.permute.xlu0 0
        %4293 = vperm.xlu0 %4292, %v4215
        %v4294 = vpop.permute.xlu0 %4293
        %v4296 = vmul.f32 %v2766, %v4219
        %v4297 = vmul.f32 %v2768, %v4219
        %v4298 = vmul.f32 %v3105, %v4219
        %v4299 = vmul.f32 %v3107, %v4219
        %v4300 = vmul.f32 %v3444, %v4219
        %v4301 = vmul.f32 %v3446, %v4219
        %v4302 = vmul.f32 %v3783, %v4219
        %v4303 = vmul.f32 %v3785, %v4219
        %v4304 = vmul.f32 %v4122, %v4219
        %v4305 = vmul.f32 %v4124, %v4219
        %v4306 = vmul.f32 %v2770, %v4224
        %v4307 = vmul.f32 %v2772, %v4224
        %v4308 = vmul.f32 %v3109, %v4224
        %v4309 = vmul.f32 %v3111, %v4224
        %v4310 = vmul.f32 %v3448, %v4224
        %v4311 = vmul.f32 %v3450, %v4224
        %v4312 = vmul.f32 %v3787, %v4224
        %v4313 = vmul.f32 %v3789, %v4224
        %v4314 = vmul.f32 %v4126, %v4224
        %v4315 = vmul.f32 %v4128, %v4224
        %v4316 = vmul.f32 %v2776, %v4229
        %v4317 = vmul.f32 %v2778, %v4229
        %v4318 = vmul.f32 %v3115, %v4229
        %v4319 = vmul.f32 %v3117, %v4229
        %v4320 = vmul.f32 %v3454, %v4229
        %v4321 = vmul.f32 %v3456, %v4229
        %v4322 = vmul.f32 %v3793, %v4229
        %v4323 = vmul.f32 %v3795, %v4229
        %v4324 = vmul.f32 %v4132, %v4229
        %v4325 = vmul.f32 %v4134, %v4229
        %v4326 = vmul.f32 %v2780, %v4234
        %v4327 = vmul.f32 %v2782, %v4234
        %v4328 = vmul.f32 %v3119, %v4234
        %v4329 = vmul.f32 %v3121, %v4234
        %v4330 = vmul.f32 %v3458, %v4234
        %v4331 = vmul.f32 %v3460, %v4234
        %v4332 = vmul.f32 %v3797, %v4234
        %v4333 = vmul.f32 %v3799, %v4234
        %v4334 = vmul.f32 %v4136, %v4234
        %v4335 = vmul.f32 %v4138, %v4234
        %v4336 = vmul.f32 %v2786, %v4239
        %v4337 = vmul.f32 %v2788, %v4239
        %v4338 = vmul.f32 %v3125, %v4239
        %v4339 = vmul.f32 %v3127, %v4239
        %v4340 = vmul.f32 %v3464, %v4239
        %v4341 = vmul.f32 %v3466, %v4239
        %v4342 = vmul.f32 %v3803, %v4239
        %v4343 = vmul.f32 %v3805, %v4239
        %v4344 = vmul.f32 %v4142, %v4239
        %v4345 = vmul.f32 %v4144, %v4239
        %v4346 = vmul.f32 %v2790, %v4244
        %v4347 = vmul.f32 %v2792, %v4244
        %v4348 = vmul.f32 %v3129, %v4244
        %v4349 = vmul.f32 %v3131, %v4244
        %v4350 = vmul.f32 %v3468, %v4244
        %v4351 = vmul.f32 %v3470, %v4244
        %v4352 = vmul.f32 %v3807, %v4244
        %v4353 = vmul.f32 %v3809, %v4244
        %v4354 = vmul.f32 %v4146, %v4244
        %v4355 = vmul.f32 %v4148, %v4244
        %v4356 = vmul.f32 %v2796, %v4249
        %v4357 = vmul.f32 %v2798, %v4249
        %v4358 = vmul.f32 %v3135, %v4249
        %v4359 = vmul.f32 %v3137, %v4249
        %v4360 = vmul.f32 %v3474, %v4249
        %v4361 = vmul.f32 %v3476, %v4249
        %v4362 = vmul.f32 %v3813, %v4249
        %v4363 = vmul.f32 %v3815, %v4249
        %v4364 = vmul.f32 %v4152, %v4249
        %v4365 = vmul.f32 %v4154, %v4249
        %v4366 = vmul.f32 %v2800, %v4254
        %v4367 = vmul.f32 %v2802, %v4254
        %v4368 = vmul.f32 %v3139, %v4254
        %v4369 = vmul.f32 %v3141, %v4254
        %v4370 = vmul.f32 %v3478, %v4254
        %v4371 = vmul.f32 %v3480, %v4254
        %v4372 = vmul.f32 %v3817, %v4254
        %v4373 = vmul.f32 %v3819, %v4254
        %v4374 = vmul.f32 %v4156, %v4254
        %v4375 = vmul.f32 %v4158, %v4254
        %v4376 = vmul.f32 %v2806, %v4259
        %v4377 = vmul.f32 %v2808, %v4259
        %v4378 = vmul.f32 %v3145, %v4259
        %v4379 = vmul.f32 %v3147, %v4259
        %v4380 = vmul.f32 %v3484, %v4259
        %v4381 = vmul.f32 %v3486, %v4259
        %v4382 = vmul.f32 %v3823, %v4259
        %v4383 = vmul.f32 %v3825, %v4259
        %v4384 = vmul.f32 %v4162, %v4259
        %v4385 = vmul.f32 %v4164, %v4259
        %v4386 = vmul.f32 %v2810, %v4264
        %v4387 = vmul.f32 %v2812, %v4264
        %v4388 = vmul.f32 %v3149, %v4264
        %v4389 = vmul.f32 %v3151, %v4264
        %v4390 = vmul.f32 %v3488, %v4264
        %v4391 = vmul.f32 %v3490, %v4264
        %v4392 = vmul.f32 %v3827, %v4264
        %v4393 = vmul.f32 %v3829, %v4264
        %v4394 = vmul.f32 %v4166, %v4264
        %v4395 = vmul.f32 %v4168, %v4264
        %v4396 = vmul.f32 %v2816, %v4269
        %v4397 = vmul.f32 %v2818, %v4269
        %v4398 = vmul.f32 %v3155, %v4269
        %v4399 = vmul.f32 %v3157, %v4269
        %v4400 = vmul.f32 %v3494, %v4269
        %v4401 = vmul.f32 %v3496, %v4269
        %v4402 = vmul.f32 %v3833, %v4269
        %v4403 = vmul.f32 %v3835, %v4269
        %v4404 = vmul.f32 %v4172, %v4269
        %v4405 = vmul.f32 %v4174, %v4269
        %v4406 = vmul.f32 %v2820, %v4274
        %v4407 = vmul.f32 %v2822, %v4274
        %v4408 = vmul.f32 %v3159, %v4274
        %v4409 = vmul.f32 %v3161, %v4274
        %v4410 = vmul.f32 %v3498, %v4274
        %v4411 = vmul.f32 %v3500, %v4274
        %v4412 = vmul.f32 %v3837, %v4274
        %v4413 = vmul.f32 %v3839, %v4274
        %v4414 = vmul.f32 %v4176, %v4274
        %v4415 = vmul.f32 %v4178, %v4274
        %v4416 = vmul.f32 %v2826, %v4279
        %v4417 = vmul.f32 %v2828, %v4279
        %v4418 = vmul.f32 %v3165, %v4279
        %v4419 = vmul.f32 %v3167, %v4279
        %v4420 = vmul.f32 %v3504, %v4279
        %v4421 = vmul.f32 %v3506, %v4279
        %v4422 = vmul.f32 %v3843, %v4279
        %v4423 = vmul.f32 %v3845, %v4279
        %v4424 = vmul.f32 %v4182, %v4279
        %v4425 = vmul.f32 %v4184, %v4279
        %v4426 = vmul.f32 %v2830, %v4284
        %v4427 = vmul.f32 %v2832, %v4284
        %v4428 = vmul.f32 %v3169, %v4284
        %v4429 = vmul.f32 %v3171, %v4284
        %v4430 = vmul.f32 %v3508, %v4284
        %v4431 = vmul.f32 %v3510, %v4284
        %v4432 = vmul.f32 %v3847, %v4284
        %v4433 = vmul.f32 %v3849, %v4284
        %v4434 = vmul.f32 %v4186, %v4284
        %v4435 = vmul.f32 %v4188, %v4284
        %v4436 = vmul.f32 %v2836, %v4289
        %v4437 = vmul.f32 %v2838, %v4289
        %v4438 = vmul.f32 %v3175, %v4289
        %v4439 = vmul.f32 %v3177, %v4289
        %v4440 = vmul.f32 %v3514, %v4289
        %v4441 = vmul.f32 %v3516, %v4289
        %v4442 = vmul.f32 %v3853, %v4289
        %v4443 = vmul.f32 %v3855, %v4289
        %v4444 = vmul.f32 %v4192, %v4289
        %v4445 = vmul.f32 %v4194, %v4289
        %v4446 = vmul.f32 %v2840, %v4294
        %v4447 = vmul.f32 %v2842, %v4294
        %v4448 = vmul.f32 %v3179, %v4294
        %v4449 = vmul.f32 %v3181, %v4294
        %v4450 = vmul.f32 %v3518, %v4294
        %v4451 = vmul.f32 %v3520, %v4294
        %v4452 = vmul.f32 %v3857, %v4294
        %v4453 = vmul.f32 %v3859, %v4294
        %v4454 = vmul.f32 %v4196, %v4294
        %v4455 = vmul.f32 %v4198, %v4294
        %v4456 = vld [vmem:[%s3] sm:$0xff]
        %v4457 = vld [vmem:[%s3 + $0x8] sm:$0xff]
        %v4458 = vld [vmem:[%s3 + $0x10] sm:$0xff]
        %v4459 = vld [vmem:[%s3 + $0x18] sm:$0xff]
        %v4460 = vld [vmem:[%s3 + $0x20] sm:$0xff]
        %v4461 = vld [vmem:[%s3 + $0x28] sm:$0xff]
        %v4462 = vld [vmem:[%s3 + $0x30] sm:$0xff]
        %v4463 = vld [vmem:[%s3 + $0x38] sm:$0xff]
        %v4464 = vld [vmem:[%s3 + $0x40] sm:$0xff]
        %v4465 = vld [vmem:[%s3 + $0x48] sm:$0xff]
        %v4466 = vld [vmem:[%s3 + $0x50] sm:$0xff]
        %v4467 = vld [vmem:[%s3 + $0x58] sm:$0xff]
        %v4468 = vld [vmem:[%s3 + $0x60] sm:$0xff]
        %v4469 = vld [vmem:[%s3 + $0x68] sm:$0xff]
        %v4470 = vld [vmem:[%s3 + $0x70] sm:$0xff]
        %v4471 = vld [vmem:[%s3 + $0x78] sm:$0xff]
        %4473 = vset.pattern.permute.xlu0 0
        %4474 = vperm.xlu0 %4473, %v4456
        %v4475 = vpop.permute.xlu0 %4474
        %4478 = vset.pattern.permute.xlu0 0
        %4479 = vperm.xlu0 %4478, %v4457
        %v4480 = vpop.permute.xlu0 %4479
        %4483 = vset.pattern.permute.xlu0 0
        %4484 = vperm.xlu0 %4483, %v4458
        %v4485 = vpop.permute.xlu0 %4484
        %4488 = vset.pattern.permute.xlu0 0
        %4489 = vperm.xlu0 %4488, %v4459
        %v4490 = vpop.permute.xlu0 %4489
        %4493 = vset.pattern.permute.xlu0 0
        %4494 = vperm.xlu0 %4493, %v4460
        %v4495 = vpop.permute.xlu0 %4494
        %4498 = vset.pattern.permute.xlu0 0
        %4499 = vperm.xlu0 %4498, %v4461
        %v4500 = vpop.permute.xlu0 %4499
        %4503 = vset.pattern.permute.xlu0 0
        %4504 = vperm.xlu0 %4503, %v4462
        %v4505 = vpop.permute.xlu0 %4504
        %4508 = vset.pattern.permute.xlu0 0
        %4509 = vperm.xlu0 %4508, %v4463
        %v4510 = vpop.permute.xlu0 %4509
        %4513 = vset.pattern.permute.xlu0 0
        %4514 = vperm.xlu0 %4513, %v4464
        %v4515 = vpop.permute.xlu0 %4514
        %4518 = vset.pattern.permute.xlu0 0
        %4519 = vperm.xlu0 %4518, %v4465
        %v4520 = vpop.permute.xlu0 %4519
        %4523 = vset.pattern.permute.xlu0 0
        %4524 = vperm.xlu0 %4523, %v4466
        %v4525 = vpop.permute.xlu0 %4524
        %4528 = vset.pattern.permute.xlu0 0
        %4529 = vperm.xlu0 %4528, %v4467
        %v4530 = vpop.permute.xlu0 %4529
        %4533 = vset.pattern.permute.xlu0 0
        %4534 = vperm.xlu0 %4533, %v4468
        %v4535 = vpop.permute.xlu0 %4534
        %4538 = vset.pattern.permute.xlu0 0
        %4539 = vperm.xlu0 %4538, %v4469
        %v4540 = vpop.permute.xlu0 %4539
        %4543 = vset.pattern.permute.xlu0 0
        %4544 = vperm.xlu0 %4543, %v4470
        %v4545 = vpop.permute.xlu0 %4544
        %4548 = vset.pattern.permute.xlu0 0
        %4549 = vperm.xlu0 %4548, %v4471
        %v4550 = vpop.permute.xlu0 %4549
        %v4552 = vadd.f32 %v4296, %v4475
        %v4553 = vadd.f32 %v4297, %v4475
        %v4554 = vadd.f32 %v4298, %v4475
        %v4555 = vadd.f32 %v4299, %v4475
        %v4556 = vadd.f32 %v4300, %v4475
        %v4557 = vadd.f32 %v4301, %v4475
        %v4558 = vadd.f32 %v4302, %v4475
        %v4559 = vadd.f32 %v4303, %v4475
        %v4560 = vadd.f32 %v4304, %v4475
        %v4561 = vadd.f32 %v4305, %v4475
        %v4562 = vadd.f32 %v4306, %v4480
        %v4563 = vadd.f32 %v4307, %v4480
        %v4564 = vadd.f32 %v4308, %v4480
        %v4565 = vadd.f32 %v4309, %v4480
        %v4566 = vadd.f32 %v4310, %v4480
        %v4567 = vadd.f32 %v4311, %v4480
        %v4568 = vadd.f32 %v4312, %v4480
        %v4569 = vadd.f32 %v4313, %v4480
        %v4570 = vadd.f32 %v4314, %v4480
        %v4571 = vadd.f32 %v4315, %v4480
        %v4572 = vadd.f32 %v4316, %v4485
        %v4573 = vadd.f32 %v4317, %v4485
        %v4574 = vadd.f32 %v4318, %v4485
        %v4575 = vadd.f32 %v4319, %v4485
        %v4576 = vadd.f32 %v4320, %v4485
        %v4577 = vadd.f32 %v4321, %v4485
        %v4578 = vadd.f32 %v4322, %v4485
        %v4579 = vadd.f32 %v4323, %v4485
        %v4580 = vadd.f32 %v4324, %v4485
        %v4581 = vadd.f32 %v4325, %v4485
        %v4582 = vadd.f32 %v4326, %v4490
        %v4583 = vadd.f32 %v4327, %v4490
        %v4584 = vadd.f32 %v4328, %v4490
        %v4585 = vadd.f32 %v4329, %v4490
        %v4586 = vadd.f32 %v4330, %v4490
        %v4587 = vadd.f32 %v4331, %v4490
        %v4588 = vadd.f32 %v4332, %v4490
        %v4589 = vadd.f32 %v4333, %v4490
        %v4590 = vadd.f32 %v4334, %v4490
        %v4591 = vadd.f32 %v4335, %v4490
        %v4592 = vadd.f32 %v4336, %v4495
        %v4593 = vadd.f32 %v4337, %v4495
        %v4594 = vadd.f32 %v4338, %v4495
        %v4595 = vadd.f32 %v4339, %v4495
        %v4596 = vadd.f32 %v4340, %v4495
        %v4597 = vadd.f32 %v4341, %v4495
        %v4598 = vadd.f32 %v4342, %v4495
        %v4599 = vadd.f32 %v4343, %v4495
        %v4600 = vadd.f32 %v4344, %v4495
        %v4601 = vadd.f32 %v4345, %v4495
        %v4602 = vadd.f32 %v4346, %v4500
        %v4603 = vadd.f32 %v4347, %v4500
        %v4604 = vadd.f32 %v4348, %v4500
        %v4605 = vadd.f32 %v4349, %v4500
        %v4606 = vadd.f32 %v4350, %v4500
        %v4607 = vadd.f32 %v4351, %v4500
        %v4608 = vadd.f32 %v4352, %v4500
        %v4609 = vadd.f32 %v4353, %v4500
        %v4610 = vadd.f32 %v4354, %v4500
        %v4611 = vadd.f32 %v4355, %v4500
        %v4612 = vadd.f32 %v4356, %v4505
        %v4613 = vadd.f32 %v4357, %v4505
        %v4614 = vadd.f32 %v4358, %v4505
        %v4615 = vadd.f32 %v4359, %v4505
        %v4616 = vadd.f32 %v4360, %v4505
        %v4617 = vadd.f32 %v4361, %v4505
        %v4618 = vadd.f32 %v4362, %v4505
        %v4619 = vadd.f32 %v4363, %v4505
        %v4620 = vadd.f32 %v4364, %v4505
        %v4621 = vadd.f32 %v4365, %v4505
        %v4622 = vadd.f32 %v4366, %v4510
        %v4623 = vadd.f32 %v4367, %v4510
        %v4624 = vadd.f32 %v4368, %v4510
        %v4625 = vadd.f32 %v4369, %v4510
        %v4626 = vadd.f32 %v4370, %v4510
        %v4627 = vadd.f32 %v4371, %v4510
        %v4628 = vadd.f32 %v4372, %v4510
        %v4629 = vadd.f32 %v4373, %v4510
        %v4630 = vadd.f32 %v4374, %v4510
        %v4631 = vadd.f32 %v4375, %v4510
        %v4632 = vadd.f32 %v4376, %v4515
        %v4633 = vadd.f32 %v4377, %v4515
        %v4634 = vadd.f32 %v4378, %v4515
        %v4635 = vadd.f32 %v4379, %v4515
        %v4636 = vadd.f32 %v4380, %v4515
        %v4637 = vadd.f32 %v4381, %v4515
        %v4638 = vadd.f32 %v4382, %v4515
        %v4639 = vadd.f32 %v4383, %v4515
        %v4640 = vadd.f32 %v4384, %v4515
        %v4641 = vadd.f32 %v4385, %v4515
        %v4642 = vadd.f32 %v4386, %v4520
        %v4643 = vadd.f32 %v4387, %v4520
        %v4644 = vadd.f32 %v4388, %v4520
        %v4645 = vadd.f32 %v4389, %v4520
        %v4646 = vadd.f32 %v4390, %v4520
        %v4647 = vadd.f32 %v4391, %v4520
        %v4648 = vadd.f32 %v4392, %v4520
        %v4649 = vadd.f32 %v4393, %v4520
        %v4650 = vadd.f32 %v4394, %v4520
        %v4651 = vadd.f32 %v4395, %v4520
        %v4652 = vadd.f32 %v4396, %v4525
        %v4653 = vadd.f32 %v4397, %v4525
        %v4654 = vadd.f32 %v4398, %v4525
        %v4655 = vadd.f32 %v4399, %v4525
        %v4656 = vadd.f32 %v4400, %v4525
        %v4657 = vadd.f32 %v4401, %v4525
        %v4658 = vadd.f32 %v4402, %v4525
        %v4659 = vadd.f32 %v4403, %v4525
        %v4660 = vadd.f32 %v4404, %v4525
        %v4661 = vadd.f32 %v4405, %v4525
        %v4662 = vadd.f32 %v4406, %v4530
        %v4663 = vadd.f32 %v4407, %v4530
        %v4664 = vadd.f32 %v4408, %v4530
        %v4665 = vadd.f32 %v4409, %v4530
        %v4666 = vadd.f32 %v4410, %v4530
        %v4667 = vadd.f32 %v4411, %v4530
        %v4668 = vadd.f32 %v4412, %v4530
        %v4669 = vadd.f32 %v4413, %v4530
        %v4670 = vadd.f32 %v4414, %v4530
        %v4671 = vadd.f32 %v4415, %v4530
        %v4672 = vadd.f32 %v4416, %v4535
        %v4673 = vadd.f32 %v4417, %v4535
        %v4674 = vadd.f32 %v4418, %v4535
        %v4675 = vadd.f32 %v4419, %v4535
        %v4676 = vadd.f32 %v4420, %v4535
        %v4677 = vadd.f32 %v4421, %v4535
        %v4678 = vadd.f32 %v4422, %v4535
        %v4679 = vadd.f32 %v4423, %v4535
        %v4680 = vadd.f32 %v4424, %v4535
        %v4681 = vadd.f32 %v4425, %v4535
        %v4682 = vadd.f32 %v4426, %v4540
        %v4683 = vadd.f32 %v4427, %v4540
        %v4684 = vadd.f32 %v4428, %v4540
        %v4685 = vadd.f32 %v4429, %v4540
        %v4686 = vadd.f32 %v4430, %v4540
        %v4687 = vadd.f32 %v4431, %v4540
        %v4688 = vadd.f32 %v4432, %v4540
        %v4689 = vadd.f32 %v4433, %v4540
        %v4690 = vadd.f32 %v4434, %v4540
        %v4691 = vadd.f32 %v4435, %v4540
        %v4692 = vadd.f32 %v4436, %v4545
        %v4693 = vadd.f32 %v4437, %v4545
        %v4694 = vadd.f32 %v4438, %v4545
        %v4695 = vadd.f32 %v4439, %v4545
        %v4696 = vadd.f32 %v4440, %v4545
        %v4697 = vadd.f32 %v4441, %v4545
        %v4698 = vadd.f32 %v4442, %v4545
        %v4699 = vadd.f32 %v4443, %v4545
        %v4700 = vadd.f32 %v4444, %v4545
        %v4701 = vadd.f32 %v4445, %v4545
        %v4702 = vadd.f32 %v4446, %v4550
        %v4703 = vadd.f32 %v4447, %v4550
        %v4704 = vadd.f32 %v4448, %v4550
        %v4705 = vadd.f32 %v4449, %v4550
        %v4706 = vadd.f32 %v4450, %v4550
        %v4707 = vadd.f32 %v4451, %v4550
        %v4708 = vadd.f32 %v4452, %v4550
        %v4709 = vadd.f32 %v4453, %v4550
        %v4710 = vadd.f32 %v4454, %v4550
        %v4711 = vadd.f32 %v4455, %v4550
        %v4712 = vmax.f32 %v4552, 0.0
        %v4713 = vmax.f32 %v4553, 0.0
        %v4714 = vmax.f32 %v4554, 0.0
        %v4715 = vmax.f32 %v4555, 0.0
        %v4716 = vmax.f32 %v4556, 0.0
        %v4717 = vmax.f32 %v4557, 0.0
        %v4718 = vmax.f32 %v4558, 0.0
        %v4719 = vmax.f32 %v4559, 0.0
        %v4720 = vmax.f32 %v4560, 0.0
        %v4721 = vmax.f32 %v4561, 0.0
        %v4722 = vmax.f32 %v4562, 0.0
        %v4723 = vmax.f32 %v4563, 0.0
        %v4724 = vmax.f32 %v4564, 0.0
        %v4725 = vmax.f32 %v4565, 0.0
        %v4726 = vmax.f32 %v4566, 0.0
        %v4727 = vmax.f32 %v4567, 0.0
        %v4728 = vmax.f32 %v4568, 0.0
        %v4729 = vmax.f32 %v4569, 0.0
        %v4730 = vmax.f32 %v4570, 0.0
        %v4731 = vmax.f32 %v4571, 0.0
        %v4732 = vmax.f32 %v4572, 0.0
        %v4733 = vmax.f32 %v4573, 0.0
        %v4734 = vmax.f32 %v4574, 0.0
        %v4735 = vmax.f32 %v4575, 0.0
        %v4736 = vmax.f32 %v4576, 0.0
        %v4737 = vmax.f32 %v4577, 0.0
        %v4738 = vmax.f32 %v4578, 0.0
        %v4739 = vmax.f32 %v4579, 0.0
        %v4740 = vmax.f32 %v4580, 0.0
        %v4741 = vmax.f32 %v4581, 0.0
        %v4742 = vmax.f32 %v4582, 0.0
        %v4743 = vmax.f32 %v4583, 0.0
        %v4744 = vmax.f32 %v4584, 0.0
        %v4745 = vmax.f32 %v4585, 0.0
        %v4746 = vmax.f32 %v4586, 0.0
        %v4747 = vmax.f32 %v4587, 0.0
        %v4748 = vmax.f32 %v4588, 0.0
        %v4749 = vmax.f32 %v4589, 0.0
        %v4750 = vmax.f32 %v4590, 0.0
        %v4751 = vmax.f32 %v4591, 0.0
        %v4752 = vmax.f32 %v4592, 0.0
        %v4753 = vmax.f32 %v4593, 0.0
        %v4754 = vmax.f32 %v4594, 0.0
        %v4755 = vmax.f32 %v4595, 0.0
        %v4756 = vmax.f32 %v4596, 0.0
        %v4757 = vmax.f32 %v4597, 0.0
        %v4758 = vmax.f32 %v4598, 0.0
        %v4759 = vmax.f32 %v4599, 0.0
        %v4760 = vmax.f32 %v4600, 0.0
        %v4761 = vmax.f32 %v4601, 0.0
        %v4762 = vmax.f32 %v4602, 0.0
        %v4763 = vmax.f32 %v4603, 0.0
        %v4764 = vmax.f32 %v4604, 0.0
        %v4765 = vmax.f32 %v4605, 0.0
        %v4766 = vmax.f32 %v4606, 0.0
        %v4767 = vmax.f32 %v4607, 0.0
        %v4768 = vmax.f32 %v4608, 0.0
        %v4769 = vmax.f32 %v4609, 0.0
        %v4770 = vmax.f32 %v4610, 0.0
        %v4771 = vmax.f32 %v4611, 0.0
        %v4772 = vmax.f32 %v4612, 0.0
        %v4773 = vmax.f32 %v4613, 0.0
        %v4774 = vmax.f32 %v4614, 0.0
        %v4775 = vmax.f32 %v4615, 0.0
        %v4776 = vmax.f32 %v4616, 0.0
        %v4777 = vmax.f32 %v4617, 0.0
        %v4778 = vmax.f32 %v4618, 0.0
        %v4779 = vmax.f32 %v4619, 0.0
        %v4780 = vmax.f32 %v4620, 0.0
        %v4781 = vmax.f32 %v4621, 0.0
        %v4782 = vmax.f32 %v4622, 0.0
        %v4783 = vmax.f32 %v4623, 0.0
        %v4784 = vmax.f32 %v4624, 0.0
        %v4785 = vmax.f32 %v4625, 0.0
        %v4786 = vmax.f32 %v4626, 0.0
        %v4787 = vmax.f32 %v4627, 0.0
        %v4788 = vmax.f32 %v4628, 0.0
        %v4789 = vmax.f32 %v4629, 0.0
        %v4790 = vmax.f32 %v4630, 0.0
        %v4791 = vmax.f32 %v4631, 0.0
        %v4792 = vmax.f32 %v4632, 0.0
        %v4793 = vmax.f32 %v4633, 0.0
        %v4794 = vmax.f32 %v4634, 0.0
        %v4795 = vmax.f32 %v4635, 0.0
        %v4796 = vmax.f32 %v4636, 0.0
        %v4797 = vmax.f32 %v4637, 0.0
        %v4798 = vmax.f32 %v4638, 0.0
        %v4799 = vmax.f32 %v4639, 0.0
        %v4800 = vmax.f32 %v4640, 0.0
        %v4801 = vmax.f32 %v4641, 0.0
        %v4802 = vmax.f32 %v4642, 0.0
        %v4803 = vmax.f32 %v4643, 0.0
        %v4804 = vmax.f32 %v4644, 0.0
        %v4805 = vmax.f32 %v4645, 0.0
        %v4806 = vmax.f32 %v4646, 0.0
        %v4807 = vmax.f32 %v4647, 0.0
        %v4808 = vmax.f32 %v4648, 0.0
        %v4809 = vmax.f32 %v4649, 0.0
        %v4810 = vmax.f32 %v4650, 0.0
        %v4811 = vmax.f32 %v4651, 0.0
        %v4812 = vmax.f32 %v4652, 0.0
        %v4813 = vmax.f32 %v4653, 0.0
        %v4814 = vmax.f32 %v4654, 0.0
        %v4815 = vmax.f32 %v4655, 0.0
        %v4816 = vmax.f32 %v4656, 0.0
        %v4817 = vmax.f32 %v4657, 0.0
        %v4818 = vmax.f32 %v4658, 0.0
        %v4819 = vmax.f32 %v4659, 0.0
        %v4820 = vmax.f32 %v4660, 0.0
        %v4821 = vmax.f32 %v4661, 0.0
        %v4822 = vmax.f32 %v4662, 0.0
        %v4823 = vmax.f32 %v4663, 0.0
        %v4824 = vmax.f32 %v4664, 0.0
        %v4825 = vmax.f32 %v4665, 0.0
        %v4826 = vmax.f32 %v4666, 0.0
        %v4827 = vmax.f32 %v4667, 0.0
        %v4828 = vmax.f32 %v4668, 0.0
        %v4829 = vmax.f32 %v4669, 0.0
        %v4830 = vmax.f32 %v4670, 0.0
        %v4831 = vmax.f32 %v4671, 0.0
        %v4832 = vmax.f32 %v4672, 0.0
        %v4833 = vmax.f32 %v4673, 0.0
        %v4834 = vmax.f32 %v4674, 0.0
        %v4835 = vmax.f32 %v4675, 0.0
        %v4836 = vmax.f32 %v4676, 0.0
        %v4837 = vmax.f32 %v4677, 0.0
        %v4838 = vmax.f32 %v4678, 0.0
        %v4839 = vmax.f32 %v4679, 0.0
        %v4840 = vmax.f32 %v4680, 0.0
        %v4841 = vmax.f32 %v4681, 0.0
        %v4842 = vmax.f32 %v4682, 0.0
        %v4843 = vmax.f32 %v4683, 0.0
        %v4844 = vmax.f32 %v4684, 0.0
        %v4845 = vmax.f32 %v4685, 0.0
        %v4846 = vmax.f32 %v4686, 0.0
        %v4847 = vmax.f32 %v4687, 0.0
        %v4848 = vmax.f32 %v4688, 0.0
        %v4849 = vmax.f32 %v4689, 0.0
        %v4850 = vmax.f32 %v4690, 0.0
        %v4851 = vmax.f32 %v4691, 0.0
        %v4852 = vmax.f32 %v4692, 0.0
        %v4853 = vmax.f32 %v4693, 0.0
        %v4854 = vmax.f32 %v4694, 0.0
        %v4855 = vmax.f32 %v4695, 0.0
        %v4856 = vmax.f32 %v4696, 0.0
        %v4857 = vmax.f32 %v4697, 0.0
        %v4858 = vmax.f32 %v4698, 0.0
        %v4859 = vmax.f32 %v4699, 0.0
        %v4860 = vmax.f32 %v4700, 0.0
        %v4861 = vmax.f32 %v4701, 0.0
        %v4862 = vmax.f32 %v4702, 0.0
        %v4863 = vmax.f32 %v4703, 0.0
        %v4864 = vmax.f32 %v4704, 0.0
        %v4865 = vmax.f32 %v4705, 0.0
        %v4866 = vmax.f32 %v4706, 0.0
        %v4867 = vmax.f32 %v4707, 0.0
        %v4868 = vmax.f32 %v4708, 0.0
        %v4869 = vmax.f32 %v4709, 0.0
        %v4870 = vmax.f32 %v4710, 0.0
        %v4871 = vmax.f32 %v4711, 0.0
        %4872 = vst [vmem:[%s215] sm:$0xff] %v4712
        %4873 = vst [vmem:[%s215 + $0x8] sm:$0xff] %v4713
        %4874 = vst [vmem:[%s215 + $0x10] sm:$0xff] %v4714
        %4875 = vst [vmem:[%s215 + $0x18] sm:$0xff] %v4715
        %4876 = vst [vmem:[%s215 + $0x20] sm:$0xff] %v4716
        %4877 = vst [vmem:[%s215 + $0x28] sm:$0xff] %v4717
        %4878 = vst [vmem:[%s215 + $0x30] sm:$0xff] %v4718
        %4879 = vst [vmem:[%s215 + $0x38] sm:$0xff] %v4719
        %4880 = vst [vmem:[%s215 + $0x40] sm:$0xff] %v4720
        %4881 = vst [vmem:[%s215 + $0x48] sm:$0xff] %v4721
        %4882 = vst [vmem:[%s215 + $0x50] sm:$0xff] %v4722
        %4883 = vst [vmem:[%s215 + $0x58] sm:$0xff] %v4723
        %4884 = vst [vmem:[%s215 + $0x60] sm:$0xff] %v4724
        %4885 = vst [vmem:[%s215 + $0x68] sm:$0xff] %v4725
        %4886 = vst [vmem:[%s215 + $0x70] sm:$0xff] %v4726
        %4887 = vst [vmem:[%s215 + $0x78] sm:$0xff] %v4727
        %4888 = vst [vmem:[%s215 + $0x80] sm:$0xff] %v4728
        %4889 = vst [vmem:[%s215 + $0x88] sm:$0xff] %v4729
        %4890 = vst [vmem:[%s215 + $0x90] sm:$0xff] %v4730
        %4891 = vst [vmem:[%s215 + $0x98] sm:$0xff] %v4731
        %4892 = vst [vmem:[%s215 + $0xa0] sm:$0xff] %v4732
        %4893 = vst [vmem:[%s215 + $0xa8] sm:$0xff] %v4733
        %4894 = vst [vmem:[%s215 + $0xb0] sm:$0xff] %v4734
        %4895 = vst [vmem:[%s215 + $0xb8] sm:$0xff] %v4735
        %4896 = vst [vmem:[%s215 + $0xc0] sm:$0xff] %v4736
        %4897 = vst [vmem:[%s215 + $0xc8] sm:$0xff] %v4737
        %4898 = vst [vmem:[%s215 + $0xd0] sm:$0xff] %v4738
        %4899 = vst [vmem:[%s215 + $0xd8] sm:$0xff] %v4739
        %4900 = vst [vmem:[%s215 + $0xe0] sm:$0xff] %v4740
        %4901 = vst [vmem:[%s215 + $0xe8] sm:$0xff] %v4741
        %4902 = vst [vmem:[%s215 + $0xf0] sm:$0xff] %v4742
        %4903 = vst [vmem:[%s215 + $0xf8] sm:$0xff] %v4743
        %4904 = vst [vmem:[%s215 + $0x100] sm:$0xff] %v4744
        %4905 = vst [vmem:[%s215 + $0x108] sm:$0xff] %v4745
        %4906 = vst [vmem:[%s215 + $0x110] sm:$0xff] %v4746
        %4907 = vst [vmem:[%s215 + $0x118] sm:$0xff] %v4747
        %4908 = vst [vmem:[%s215 + $0x120] sm:$0xff] %v4748
        %4909 = vst [vmem:[%s215 + $0x128] sm:$0xff] %v4749
        %4910 = vst [vmem:[%s215 + $0x130] sm:$0xff] %v4750
        %4911 = vst [vmem:[%s215 + $0x138] sm:$0xff] %v4751
        %4912 = vst [vmem:[%s215 + $0x140] sm:$0xff] %v4752
        %4913 = vst [vmem:[%s215 + $0x148] sm:$0xff] %v4753
        %4914 = vst [vmem:[%s215 + $0x150] sm:$0xff] %v4754
        %4915 = vst [vmem:[%s215 + $0x158] sm:$0xff] %v4755
        %4916 = vst [vmem:[%s215 + $0x160] sm:$0xff] %v4756
        %4917 = vst [vmem:[%s215 + $0x168] sm:$0xff] %v4757
        %4918 = vst [vmem:[%s215 + $0x170] sm:$0xff] %v4758
        %4919 = vst [vmem:[%s215 + $0x178] sm:$0xff] %v4759
        %4920 = vst [vmem:[%s215 + $0x180] sm:$0xff] %v4760
        %4921 = vst [vmem:[%s215 + $0x188] sm:$0xff] %v4761
        %4922 = vst [vmem:[%s215 + $0x190] sm:$0xff] %v4762
        %4923 = vst [vmem:[%s215 + $0x198] sm:$0xff] %v4763
        %4924 = vst [vmem:[%s215 + $0x1a0] sm:$0xff] %v4764
        %4925 = vst [vmem:[%s215 + $0x1a8] sm:$0xff] %v4765
        %4926 = vst [vmem:[%s215 + $0x1b0] sm:$0xff] %v4766
        %4927 = vst [vmem:[%s215 + $0x1b8] sm:$0xff] %v4767
        %4928 = vst [vmem:[%s215 + $0x1c0] sm:$0xff] %v4768
        %4929 = vst [vmem:[%s215 + $0x1c8] sm:$0xff] %v4769
        %4930 = vst [vmem:[%s215 + $0x1d0] sm:$0xff] %v4770
        %4931 = vst [vmem:[%s215 + $0x1d8] sm:$0xff] %v4771
        %4932 = vst [vmem:[%s215 + $0x1e0] sm:$0xff] %v4772
        %4933 = vst [vmem:[%s215 + $0x1e8] sm:$0xff] %v4773
        %4934 = vst [vmem:[%s215 + $0x1f0] sm:$0xff] %v4774
        %4935 = vst [vmem:[%s215 + $0x1f8] sm:$0xff] %v4775
        %4936 = vst [vmem:[%s215 + $0x200] sm:$0xff] %v4776
        %4937 = vst [vmem:[%s215 + $0x208] sm:$0xff] %v4777
        %4938 = vst [vmem:[%s215 + $0x210] sm:$0xff] %v4778
        %4939 = vst [vmem:[%s215 + $0x218] sm:$0xff] %v4779
        %4940 = vst [vmem:[%s215 + $0x220] sm:$0xff] %v4780
        %4941 = vst [vmem:[%s215 + $0x228] sm:$0xff] %v4781
        %4942 = vst [vmem:[%s215 + $0x230] sm:$0xff] %v4782
        %4943 = vst [vmem:[%s215 + $0x238] sm:$0xff] %v4783
        %4944 = vst [vmem:[%s215 + $0x240] sm:$0xff] %v4784
        %4945 = vst [vmem:[%s215 + $0x248] sm:$0xff] %v4785
        %4946 = vst [vmem:[%s215 + $0x250] sm:$0xff] %v4786
        %4947 = vst [vmem:[%s215 + $0x258] sm:$0xff] %v4787
        %4948 = vst [vmem:[%s215 + $0x260] sm:$0xff] %v4788
        %4949 = vst [vmem:[%s215 + $0x268] sm:$0xff] %v4789
        %4950 = vst [vmem:[%s215 + $0x270] sm:$0xff] %v4790
        %4951 = vst [vmem:[%s215 + $0x278] sm:$0xff] %v4791
        %4952 = vst [vmem:[%s215 + $0x280] sm:$0xff] %v4792
        %4953 = vst [vmem:[%s215 + $0x288] sm:$0xff] %v4793
        %4954 = vst [vmem:[%s215 + $0x290] sm:$0xff] %v4794
        %4955 = vst [vmem:[%s215 + $0x298] sm:$0xff] %v4795
        %4956 = vst [vmem:[%s215 + $0x2a0] sm:$0xff] %v4796
        %4957 = vst [vmem:[%s215 + $0x2a8] sm:$0xff] %v4797
        %4958 = vst [vmem:[%s215 + $0x2b0] sm:$0xff] %v4798
        %4959 = vst [vmem:[%s215 + $0x2b8] sm:$0xff] %v4799
        %4960 = vst [vmem:[%s215 + $0x2c0] sm:$0xff] %v4800
        %4961 = vst [vmem:[%s215 + $0x2c8] sm:$0xff] %v4801
        %4962 = vst [vmem:[%s215 + $0x2d0] sm:$0xff] %v4802
        %4963 = vst [vmem:[%s215 + $0x2d8] sm:$0xff] %v4803
        %4964 = vst [vmem:[%s215 + $0x2e0] sm:$0xff] %v4804
        %4965 = vst [vmem:[%s215 + $0x2e8] sm:$0xff] %v4805
        %4966 = vst [vmem:[%s215 + $0x2f0] sm:$0xff] %v4806
        %4967 = vst [vmem:[%s215 + $0x2f8] sm:$0xff] %v4807
        %4968 = vst [vmem:[%s215 + $0x300] sm:$0xff] %v4808
        %4969 = vst [vmem:[%s215 + $0x308] sm:$0xff] %v4809
        %4970 = vst [vmem:[%s215 + $0x310] sm:$0xff] %v4810
        %4971 = vst [vmem:[%s215 + $0x318] sm:$0xff] %v4811
        %4972 = vst [vmem:[%s215 + $0x320] sm:$0xff] %v4812
        %4973 = vst [vmem:[%s215 + $0x328] sm:$0xff] %v4813
        %4974 = vst [vmem:[%s215 + $0x330] sm:$0xff] %v4814
        %4975 = vst [vmem:[%s215 + $0x338] sm:$0xff] %v4815
        %4976 = vst [vmem:[%s215 + $0x340] sm:$0xff] %v4816
        %4977 = vst [vmem:[%s215 + $0x348] sm:$0xff] %v4817
        %4978 = vst [vmem:[%s215 + $0x350] sm:$0xff] %v4818
        %4979 = vst [vmem:[%s215 + $0x358] sm:$0xff] %v4819
        %4980 = vst [vmem:[%s215 + $0x360] sm:$0xff] %v4820
        %4981 = vst [vmem:[%s215 + $0x368] sm:$0xff] %v4821
        %4982 = vst [vmem:[%s215 + $0x370] sm:$0xff] %v4822
        %4983 = vst [vmem:[%s215 + $0x378] sm:$0xff] %v4823
        %4984 = vst [vmem:[%s215 + $0x380] sm:$0xff] %v4824
        %4985 = vst [vmem:[%s215 + $0x388] sm:$0xff] %v4825
        %4986 = vst [vmem:[%s215 + $0x390] sm:$0xff] %v4826
        %4987 = vst [vmem:[%s215 + $0x398] sm:$0xff] %v4827
        %4988 = vst [vmem:[%s215 + $0x3a0] sm:$0xff] %v4828
        %4989 = vst [vmem:[%s215 + $0x3a8] sm:$0xff] %v4829
        %4990 = vst [vmem:[%s215 + $0x3b0] sm:$0xff] %v4830
        %4991 = vst [vmem:[%s215 + $0x3b8] sm:$0xff] %v4831
        %4992 = vst [vmem:[%s215 + $0x3c0] sm:$0xff] %v4832
        %4993 = vst [vmem:[%s215 + $0x3c8] sm:$0xff] %v4833
        %4994 = vst [vmem:[%s215 + $0x3d0] sm:$0xff] %v4834
        %4995 = vst [vmem:[%s215 + $0x3d8] sm:$0xff] %v4835
        %4996 = vst [vmem:[%s215 + $0x3e0] sm:$0xff] %v4836
        %4997 = vst [vmem:[%s215 + $0x3e8] sm:$0xff] %v4837
        %4998 = vst [vmem:[%s215 + $0x3f0] sm:$0xff] %v4838
        %4999 = vst [vmem:[%s215 + $0x3f8] sm:$0xff] %v4839
        %5000 = vst [vmem:[%s215 + $0x400] sm:$0xff] %v4840
        %5001 = vst [vmem:[%s215 + $0x408] sm:$0xff] %v4841
        %5002 = vst [vmem:[%s215 + $0x410] sm:$0xff] %v4842
        %5003 = vst [vmem:[%s215 + $0x418] sm:$0xff] %v4843
        %5004 = vst [vmem:[%s215 + $0x420] sm:$0xff] %v4844
        %5005 = vst [vmem:[%s215 + $0x428] sm:$0xff] %v4845
        %5006 = vst [vmem:[%s215 + $0x430] sm:$0xff] %v4846
        %5007 = vst [vmem:[%s215 + $0x438] sm:$0xff] %v4847
        %5008 = vst [vmem:[%s215 + $0x440] sm:$0xff] %v4848
        %5009 = vst [vmem:[%s215 + $0x448] sm:$0xff] %v4849
        %5010 = vst [vmem:[%s215 + $0x450] sm:$0xff] %v4850
        %5011 = vst [vmem:[%s215 + $0x458] sm:$0xff] %v4851
        %5012 = vst [vmem:[%s215 + $0x460] sm:$0xff] %v4852
        %5013 = vst [vmem:[%s215 + $0x468] sm:$0xff] %v4853
        %5014 = vst [vmem:[%s215 + $0x470] sm:$0xff] %v4854
        %5015 = vst [vmem:[%s215 + $0x478] sm:$0xff] %v4855
        %5016 = vst [vmem:[%s215 + $0x480] sm:$0xff] %v4856
        %5017 = vst [vmem:[%s215 + $0x488] sm:$0xff] %v4857
        %5018 = vst [vmem:[%s215 + $0x490] sm:$0xff] %v4858
        %5019 = vst [vmem:[%s215 + $0x498] sm:$0xff] %v4859
        %5020 = vst [vmem:[%s215 + $0x4a0] sm:$0xff] %v4860
        %5021 = vst [vmem:[%s215 + $0x4a8] sm:$0xff] %v4861
        %5022 = vst [vmem:[%s215 + $0x4b0] sm:$0xff] %v4862
        %5023 = vst [vmem:[%s215 + $0x4b8] sm:$0xff] %v4863
        %5024 = vst [vmem:[%s215 + $0x4c0] sm:$0xff] %v4864
        %5025 = vst [vmem:[%s215 + $0x4c8] sm:$0xff] %v4865
        %5026 = vst [vmem:[%s215 + $0x4d0] sm:$0xff] %v4866
        %5027 = vst [vmem:[%s215 + $0x4d8] sm:$0xff] %v4867
        %5028 = vst [vmem:[%s215 + $0x4e0] sm:$0xff] %v4868
        %5029 = vst [vmem:[%s215 + $0x4e8] sm:$0xff] %v4869
        %5030 = vst [vmem:[%s215 + $0x4f0] sm:$0xff] %v4870
        %5031 = vst [vmem:[%s215 + $0x4f8] sm:$0xff] %v4871
        %s5032 = sand.u32 %s131, 1
        %s5033 = scalar_lea.sflag [#allocation3], %s5032
        %s5034 = sand.u32 %s131, 1
        %s5035 = smul.addr %s5034, 1280
        %s5036 = scalar_lea.vmem [#allocation2], %s5035
        // Predicated region
        $region37: #{tpu_custom_call.1} parent=35 // pred_check
          %p5037 = pneg %p141
        $region38: #{tpu_custom_call.1} parent=35 // pred_check_branch
          %5039 = sbr.rel (%p5037) target = $region40
        $region39: #{tpu_custom_call.1} parent=35 // pred_region
          %s5040 = smul.u32 10, %s23
          %s5042 = ssub.s32 20480, 20480
          %5043 = vsyncadd %s5033, %s5042
          %s5044 = smul.addr %s22, 160
          %s5045 = sadd.s32 %s5040, %s5044
          %s5046 = smul.addr %s5045, 128
          %s5047 = scalar_lea.hbm %s4, %s5046
          %s5048 = sshll.u32 %s5036, 4
          %s5049 = int_to_ptr.vmem [resolvable:$true] %s5048
          %5054 = dma.vmem_to_hbm [thread:$0]  %s5049, 20480, %s5047, %s5033, 1280, 1280, 80
        $region40: #{tpu_custom_call.1} parent=35 // pred_fallthru
          _
      $region36: #{tpu_custom_call.1} parent=5 // pred_fallthru
        _
      %p5055 = scmp.le.s32.totalorder 2, %s13
      // Predicated region
      $region41: #{tpu_custom_call.1} parent=5 // pred_check
        %p5056 = pneg %p5055
      $region42: #{tpu_custom_call.1} parent=5 // pred_check_branch
        %5058 = sbr.rel (%p5056) target = $region44
      $region43: #{tpu_custom_call.1} parent=5 // pred_region
        %s5059 = ssub.s32 %s13, 2
        // Predicated region
        $region45: #{tpu_custom_call.1} parent=43 // pred_check
          %p5060 = pneg %p147
        $region46: #{tpu_custom_call.1} parent=43 // pred_check_branch
          %5062 = sbr.rel (%p5060) target = $region48
        $region47: #{tpu_custom_call.1} parent=43 // pred_region
          %s5063 = sand.u32 %s132, 1
          %s5064 = scalar_lea.sflag [#allocation3], %s5063
          %s5065 = sand.u32 %s132, 1
          %s5066 = smul.addr %s5065, 1280
          %s5067 = scalar_lea.vmem [#allocation2], %s5066
          %5068 = dma.done %s5064, 20480
        $region48: #{tpu_custom_call.1} parent=43 // pred_fallthru
          _
      $region44: #{tpu_custom_call.1} parent=5 // pred_fallthru
        _
    $region6: #{tpu_custom_call.1} parent=1 // loop_footer
      %s17 = sadd.s32 1, %s13
    $region7: #{tpu_custom_call.1} parent=1 // loop_footer_branch
      %12 = sbr.rel target = $region3
    $region8: #{tpu_custom_call.1} parent=1 // loop_exit
      _
    %5069 = vsyncpa [#allocation3], 1
    %s5070 = scalar_lea.sflag [#allocation3], 1
    %5071 = vsyncpa %s5070, 1

</llo_original>
